<compile_context>
chip_gen: v6e
topology: v6e:2x2x1
jax: 0.10.0
libtpu: 0.0.40
codegen_flags: <defaults>
</compile_context>

<pallas_src>
import numpy as np
import jax
import jax.numpy as jnp
from jax.experimental import pallas as pl
from jax.experimental.pallas import tpu as pltpu

# Synthetic inner-net dimensions.
C_IN, C_OUT, H, W, HIDDEN = 4, 8, 16, 16, 32
KH, KW = 3, 3
LANES = W * C_OUT          # 128 -> lane-dense conv intermediate
KDIM = C_IN * W            # 64  -> conv contraction depth per kh tap


# ----------------------------------------------------------------------------
# Fused Pallas kernel: Conv2d(3x3, pad=1) + bias + per-channel PReLU + Linear,
# for a block of BM images per grid step.  The (BM*H, 128) conv activation
# stays in VMEM/registers and is consumed by the FC stage in the same kernel.
# ----------------------------------------------------------------------------
def _fused_forward_kernel(x_ref, wtoe_ref, cbias_ref, calpha_ref,
                          wfc_ref, fbias_ref, o_ref):
    bm = x_ref.shape[0]

    # ---- Conv: 3 width-Toeplitz matmuls (one per kh tap), M=bm*H, K=64 ------
    acc = jnp.zeros((bm * H, LANES), jnp.float32)
    for kh in range(KH):
        xs = x_ref[:, kh:kh + H, :].reshape(bm * H, KDIM)            # (bm*16, 64) bf16
        acc = acc + jnp.dot(xs, wtoe_ref[kh],
                            preferred_element_type=jnp.float32)      # (bm*16, 128)

    # ---- bias + per-output-channel PReLU (f32 elementwise) ------------------
    y = acc + cbias_ref[...]
    y = jnp.where(y >= 0.0, y, calpha_ref[...] * y)
    y = y.astype(jnp.bfloat16).reshape(bm, H, LANES)

    # ---- Linear(2048 -> 32): sum over h of (bm, 128) @ (128, 32) ------------
    out = jnp.zeros((bm, HIDDEN), jnp.float32)
    for h in range(H):
        out = out + jnp.dot(y[:, h, :], wfc_ref[h],
                            preferred_element_type=jnp.float32)      # (bm, 32)

    o_ref[...] = (out + fbias_ref[...]).astype(o_ref.dtype)


def _pick_bm(batch):
    if batch >= 32:
        return 16      # conv M = 256 (v6e/v7x MXU height), >= 2 grid steps
    if batch >= 16:
        return 8       # conv M = 128 (v5e MXU height), >= 2 grid steps
    return batch       # tiny batch: one step covers everything


def trainable_net_forward(x_nchw, prep, bm=None):
    """x_nchw: (B, C_IN, H, W) f32 (NCHW, like PyTorch) -> (B, HIDDEN) f32."""
    B = x_nchw.shape[0]
    if bm is None:
        bm = _pick_bm(B)
    n_steps = -(-B // bm)
    Bp = n_steps * bm

    # Zero-pad the batch to a multiple of bm and pad H by 1 on each side (the
    # W-direction padding is folded into the Toeplitz weights).  Then move C
    # next to W -> (Bp, H+2, C_IN*W) and cast to bf16 once (halves the DMA).
    xp = jnp.pad(x_nchw, ((0, Bp - B), (0, 0), (1, 1), (0, 0)))      # (Bp,4,18,16)
    xl = jnp.transpose(xp, (0, 2, 1, 3)).reshape(Bp, H + 2, KDIM)
    xl = xl.astype(jnp.bfloat16)

    out = pl.pallas_call(
        _fused_forward_kernel,
        out_shape=jax.ShapeDtypeStruct((Bp, HIDDEN), jnp.float32),
        grid=(n_steps,),
        in_specs=[
            pl.BlockSpec((bm, H + 2, KDIM), lambda i: (i, 0, 0)),
            pl.BlockSpec((KH, KDIM, LANES), lambda i: (0, 0, 0)),
            pl.BlockSpec((1, LANES), lambda i: (0, 0)),
            pl.BlockSpec((1, LANES), lambda i: (0, 0)),
            pl.BlockSpec((H, LANES, HIDDEN), lambda i: (0, 0, 0)),
            pl.BlockSpec((1, HIDDEN), lambda i: (0, 0)),
        ],
        out_specs=pl.BlockSpec((bm, HIDDEN), lambda i: (i, 0)),
        compiler_params=pltpu.CompilerParams(
            dimension_semantics=("parallel",),      # batch blocks -> both TCs on v7x
            vmem_limit_bytes=32 * 1024 * 1024,      # v7x-safe (usage ~2 MiB)
        ),
    )(xl, prep["w_toe"], prep["conv_b_tile"], prep["prelu_a_tile"],
      prep["w_fc_perm"], prep["fc_b_row"])
    return out[:B]


# ----------------------------------------------------------------------------
# One-time parameter re-layout (host side, outside the per-call path).
# ----------------------------------------------------------------------------
def prepare_params(params):
    conv_w = np.asarray(params["conv_w"], np.float32)    # (C_OUT, C_IN, 3, 3)
    conv_b = np.asarray(params["conv_b"], np.float32)    # (C_OUT,)
    prelu_a = np.asarray(params["prelu_a"], np.float32)  # (C_OUT,)
    fc_w = np.asarray(params["fc_w"], np.float32)        # (HIDDEN, C_OUT*H*W)
    fc_b = np.asarray(params["fc_b"], np.float32)        # (HIDDEN,)

    # Width-Toeplitz conv weights grouped by kh tap, with C_IN folded into K:
    #   w_toe[kh, c*W + w_in, w*C_OUT + co] = conv_w[co, c, kh, kw]
    #   with w_in = w + kw - 1 (W-direction zero padding handled by omission).
    w_toe = np.zeros((KH, KDIM, LANES), np.float32)
    for kh in range(KH):
        for c in range(C_IN):
            for w in range(W):
                for kw in range(KW):
                    w_in = w + kw - 1
                    if 0 <= w_in < W:
                        w_toe[kh, c * W + w_in, w * C_OUT:(w + 1) * C_OUT] = \
                            conv_w[:, c, kh, kw]

    # FC weight permuted so its rows match the in-kernel (h, w*C_OUT+co)
    # activation layout (torch flatten order of NCHW is (co, h, w)); stored as
    # (H, LANES, HIDDEN) so the kernel contracts (bm, 128) x (128, 32) per h.
    fcw4 = fc_w.reshape(HIDDEN, C_OUT, H, W)
    w_fc_perm = np.transpose(fcw4, (2, 3, 1, 0)).reshape(H, W * C_OUT, HIDDEN)

    return {
        "w_toe": jnp.asarray(w_toe, jnp.bfloat16),
        "conv_b_tile": jnp.asarray(np.tile(conv_b, W).reshape(1, LANES), jnp.float32),
        "prelu_a_tile": jnp.asarray(np.tile(prelu_a, W).reshape(1, LANES), jnp.float32),
        "w_fc_perm": jnp.asarray(w_fc_perm, jnp.bfloat16),
        "fc_b_row": jnp.asarray(fc_b.reshape(1, HIDDEN), jnp.float32),
    }


# ----------------------------------------------------------------------------
# Deterministic parameter init (synthetic) and pure-JAX reference.
# ----------------------------------------------------------------------------
def init_params(key):
    k1, k2, k3, k4 = jax.random.split(key, 4)
    conv_w = 0.1 * jax.random.normal(k1, (C_OUT, C_IN, 3, 3), jnp.float32)
    conv_b = 0.1 * jax.random.normal(k2, (C_OUT,), jnp.float32)
    prelu_a = jnp.full((C_OUT,), 0.25, jnp.float32)     # torch PReLU default
    fc_w = 0.05 * jax.random.normal(k3, (HIDDEN, C_OUT * H * W), jnp.float32)
    fc_b = 0.05 * jax.random.normal(k4, (HIDDEN,), jnp.float32)
    return dict(conv_w=conv_w, conv_b=conv_b, prelu_a=prelu_a, fc_w=fc_w, fc_b=fc_b)


def reference_forward(x_nchw, params):
    y = jax.lax.conv_general_dilated(
        x_nchw, params["conv_w"], window_strides=(1, 1), padding="SAME",
        dimension_numbers=("NCHW", "OIHW", "NCHW"))
    y = y + params["conv_b"][None, :, None, None]
    a = params["prelu_a"][None, :, None, None]
    y = jnp.where(y >= 0, y, a * y)
    flat = y.reshape(x_nchw.shape[0], -1)
    return flat @ params["fc_w"].T + params["fc_b"][None, :]


if __name__ == "__main__":
    key = jax.random.PRNGKey(0)
    kx, kp = jax.random.split(key)
    params = init_params(kp)
    prep = prepare_params(params)            # one-time weight re-layout

    fwd = jax.jit(trainable_net_forward)

    # B=32 exercises the batched path (BM=16, 2 parallel grid steps);
    # B=2 exercises the tiny-batch single-step path.
    for B in (32, 2):
        x = jax.random.normal(jax.random.fold_in(kx, B),
                              (B, C_IN, H, W), jnp.float32)   # NCHW like PyTorch
        out = jax.block_until_ready(fwd(x, prep))
        assert out.shape == (B, HIDDEN) and out.dtype == jnp.float32
        assert bool(jnp.all(jnp.isfinite(out)))
        ref = jax.block_until_ready(reference_forward(x, params))
        assert bool(jnp.allclose(out, ref, rtol=5e-2, atol=5e-2)), \
            float(jnp.max(jnp.abs(out - ref)))
    print("KERNEL_OK")
</pallas_src>

<mosaic_0001>
module attributes {stable_mosaic.version = 11 : i64} {
  func.func @_fused_forward_kernel(%arg0: i32, %arg1: memref<16x18x64xbf16, #tpu.memory_space<vmem>>, %arg2: memref<3x64x128xbf16, #tpu.memory_space<vmem>>, %arg3: memref<1x128xf32, #tpu.memory_space<vmem>>, %arg4: memref<1x128xf32, #tpu.memory_space<vmem>>, %arg5: memref<16x128x32xbf16, #tpu.memory_space<vmem>>, %arg6: memref<1x32xf32, #tpu.memory_space<vmem>>, %arg7: memref<16x32xf32, #tpu.memory_space<vmem>>) attributes {dimension_semantics = [#tpu.dimension_semantics<parallel>], iteration_bounds = array<i64: 2>, scalar_prefetch = 0 : i64, scratch_operands = 0 : i64, tpu.core_type = #tpu.core_type<tc>, window_params = [{transform_indices = @transform_0, window_bounds = array<i64: 16, 18, 64>}, {pipeline_mode = #tpu.pipeline_mode<synchronous>, transform_indices = @transform_1, window_bounds = array<i64: 3, 64, 128>}, {pipeline_mode = #tpu.pipeline_mode<synchronous>, transform_indices = @transform_2, window_bounds = array<i64: 1, 128>}, {pipeline_mode = #tpu.pipeline_mode<synchronous>, transform_indices = @transform_3, window_bounds = array<i64: 1, 128>}, {pipeline_mode = #tpu.pipeline_mode<synchronous>, transform_indices = @transform_4, window_bounds = array<i64: 16, 128, 32>}, {pipeline_mode = #tpu.pipeline_mode<synchronous>, transform_indices = @transform_5, window_bounds = array<i64: 1, 32>}, {transform_indices = @transform_6, window_bounds = array<i64: 16, 32>}]} {
    %cst = arith.constant 0.000000e+00 : f32
    %0 = vector.broadcast %cst : f32 to vector<256x128xf32>
    %c0 = arith.constant 0 : index
    %c0_0 = arith.constant 0 : index
    %c0_1 = arith.constant 0 : index
    %1 = vector.load %arg1[%c0, %c0_0, %c0_1] : memref<16x18x64xbf16, #tpu.memory_space<vmem>>, vector<16x16x64xbf16>
    %2 = vector.shape_cast %1 : vector<16x16x64xbf16> to vector<256x64xbf16>
    %c0_2 = arith.constant 0 : index
    %c0_3 = arith.constant 0 : index
    %c0_4 = arith.constant 0 : index
    %3 = vector.load %arg2[%c0_2, %c0_3, %c0_4] : memref<3x64x128xbf16, #tpu.memory_space<vmem>>, vector<1x64x128xbf16>
    %4 = vector.shape_cast %3 : vector<1x64x128xbf16> to vector<64x128xbf16>
    %cst_5 = arith.constant dense<0.000000e+00> : vector<256x128xf32>
    %5 = tpu.matmul %2, %4, %cst_5 {dimension_numbers = #tpu.dot_dimension_numbers<[1], [0], [0], [1], [0, 0, 1, 1], [], []>} : vector<256x64xbf16>, vector<64x128xbf16>, vector<256x128xf32> -> vector<256x128xf32>
    %6 = arith.addf %0, %5 : vector<256x128xf32>
    %c0_6 = arith.constant 0 : index
    %c1 = arith.constant 1 : index
    %c0_7 = arith.constant 0 : index
    %7 = vector.load %arg1[%c0_6, %c1, %c0_7] : memref<16x18x64xbf16, #tpu.memory_space<vmem>>, vector<16x16x64xbf16>
    %8 = vector.shape_cast %7 : vector<16x16x64xbf16> to vector<256x64xbf16>
    %c1_8 = arith.constant 1 : index
    %c0_9 = arith.constant 0 : index
    %c0_10 = arith.constant 0 : index
    %9 = vector.load %arg2[%c1_8, %c0_9, %c0_10] : memref<3x64x128xbf16, #tpu.memory_space<vmem>>, vector<1x64x128xbf16>
    %10 = vector.shape_cast %9 : vector<1x64x128xbf16> to vector<64x128xbf16>
    %cst_11 = arith.constant dense<0.000000e+00> : vector<256x128xf32>
    %11 = tpu.matmul %8, %10, %cst_11 {dimension_numbers = #tpu.dot_dimension_numbers<[1], [0], [0], [1], [0, 0, 1, 1], [], []>} : vector<256x64xbf16>, vector<64x128xbf16>, vector<256x128xf32> -> vector<256x128xf32>
    %12 = arith.addf %6, %11 : vector<256x128xf32>
    %c0_12 = arith.constant 0 : index
    %c2 = arith.constant 2 : index
    %c0_13 = arith.constant 0 : index
    %13 = vector.load %arg1[%c0_12, %c2, %c0_13] : memref<16x18x64xbf16, #tpu.memory_space<vmem>>, vector<16x16x64xbf16>
    %14 = vector.shape_cast %13 : vector<16x16x64xbf16> to vector<256x64xbf16>
    %c2_14 = arith.constant 2 : index
    %c0_15 = arith.constant 0 : index
    %c0_16 = arith.constant 0 : index
    %15 = vector.load %arg2[%c2_14, %c0_15, %c0_16] : memref<3x64x128xbf16, #tpu.memory_space<vmem>>, vector<1x64x128xbf16>
    %16 = vector.shape_cast %15 : vector<1x64x128xbf16> to vector<64x128xbf16>
    %cst_17 = arith.constant dense<0.000000e+00> : vector<256x128xf32>
    %17 = tpu.matmul %14, %16, %cst_17 {dimension_numbers = #tpu.dot_dimension_numbers<[1], [0], [0], [1], [0, 0, 1, 1], [], []>} : vector<256x64xbf16>, vector<64x128xbf16>, vector<256x128xf32> -> vector<256x128xf32>
    %18 = arith.addf %12, %17 : vector<256x128xf32>
    %c0_18 = arith.constant 0 : index
    %c0_19 = arith.constant 0 : index
    %19 = vector.load %arg3[%c0_18, %c0_19] : memref<1x128xf32, #tpu.memory_space<vmem>>, vector<1x128xf32>
    %20 = vector.broadcast %19 : vector<1x128xf32> to vector<256x128xf32>
    %21 = arith.addf %18, %20 : vector<256x128xf32>
    %cst_20 = arith.constant 0.000000e+00 : f32
    %22 = vector.broadcast %cst_20 : f32 to vector<256x128xf32>
    %23 = arith.cmpf oge, %21, %22 : vector<256x128xf32>
    %c0_21 = arith.constant 0 : index
    %c0_22 = arith.constant 0 : index
    %24 = vector.load %arg4[%c0_21, %c0_22] : memref<1x128xf32, #tpu.memory_space<vmem>>, vector<1x128xf32>
    %25 = vector.broadcast %24 : vector<1x128xf32> to vector<256x128xf32>
    %26 = arith.mulf %25, %21 : vector<256x128xf32>
    %27 = arith.select %23, %21, %26 : vector<256x128xi1>, vector<256x128xf32>
    %28 = arith.truncf %27 : vector<256x128xf32> to vector<256x128xbf16>
    %29 = vector.shape_cast %28 : vector<256x128xbf16> to vector<16x16x128xbf16>
    %cst_23 = arith.constant 0.000000e+00 : f32
    %30 = vector.broadcast %cst_23 : f32 to vector<16x32xf32>
    %31 = vector.extract_strided_slice %29 {offsets = [0, 0, 0], sizes = [16, 1, 128], strides = [1, 1, 1]} : vector<16x16x128xbf16> to vector<16x1x128xbf16>
    %32 = vector.shape_cast %31 : vector<16x1x128xbf16> to vector<16x128xbf16>
    %c0_24 = arith.constant 0 : index
    %c0_25 = arith.constant 0 : index
    %c0_26 = arith.constant 0 : index
    %33 = vector.load %arg5[%c0_24, %c0_25, %c0_26] : memref<16x128x32xbf16, #tpu.memory_space<vmem>>, vector<1x128x32xbf16>
    %34 = vector.shape_cast %33 : vector<1x128x32xbf16> to vector<128x32xbf16>
    %cst_27 = arith.constant dense<0.000000e+00> : vector<16x32xf32>
    %35 = tpu.matmul %32, %34, %cst_27 {dimension_numbers = #tpu.dot_dimension_numbers<[1], [0], [0], [1], [0, 0, 1, 1], [], []>} : vector<16x128xbf16>, vector<128x32xbf16>, vector<16x32xf32> -> vector<16x32xf32>
    %36 = arith.addf %30, %35 : vector<16x32xf32>
    %37 = vector.extract_strided_slice %29 {offsets = [0, 1, 0], sizes = [16, 1, 128], strides = [1, 1, 1]} : vector<16x16x128xbf16> to vector<16x1x128xbf16>
    %38 = vector.shape_cast %37 : vector<16x1x128xbf16> to vector<16x128xbf16>
    %c1_28 = arith.constant 1 : index
    %c0_29 = arith.constant 0 : index
    %c0_30 = arith.constant 0 : index
    %39 = vector.load %arg5[%c1_28, %c0_29, %c0_30] : memref<16x128x32xbf16, #tpu.memory_space<vmem>>, vector<1x128x32xbf16>
    %40 = vector.shape_cast %39 : vector<1x128x32xbf16> to vector<128x32xbf16>
    %cst_31 = arith.constant dense<0.000000e+00> : vector<16x32xf32>
    %41 = tpu.matmul %38, %40, %cst_31 {dimension_numbers = #tpu.dot_dimension_numbers<[1], [0], [0], [1], [0, 0, 1, 1], [], []>} : vector<16x128xbf16>, vector<128x32xbf16>, vector<16x32xf32> -> vector<16x32xf32>
    %42 = arith.addf %36, %41 : vector<16x32xf32>
    %43 = vector.extract_strided_slice %29 {offsets = [0, 2, 0], sizes = [16, 1, 128], strides = [1, 1, 1]} : vector<16x16x128xbf16> to vector<16x1x128xbf16>
    %44 = vector.shape_cast %43 : vector<16x1x128xbf16> to vector<16x128xbf16>
    %c2_32 = arith.constant 2 : index
    %c0_33 = arith.constant 0 : index
    %c0_34 = arith.constant 0 : index
    %45 = vector.load %arg5[%c2_32, %c0_33, %c0_34] : memref<16x128x32xbf16, #tpu.memory_space<vmem>>, vector<1x128x32xbf16>
    %46 = vector.shape_cast %45 : vector<1x128x32xbf16> to vector<128x32xbf16>
    %cst_35 = arith.constant dense<0.000000e+00> : vector<16x32xf32>
    %47 = tpu.matmul %44, %46, %cst_35 {dimension_numbers = #tpu.dot_dimension_numbers<[1], [0], [0], [1], [0, 0, 1, 1], [], []>} : vector<16x128xbf16>, vector<128x32xbf16>, vector<16x32xf32> -> vector<16x32xf32>
    %48 = arith.addf %42, %47 : vector<16x32xf32>
    %49 = vector.extract_strided_slice %29 {offsets = [0, 3, 0], sizes = [16, 1, 128], strides = [1, 1, 1]} : vector<16x16x128xbf16> to vector<16x1x128xbf16>
    %50 = vector.shape_cast %49 : vector<16x1x128xbf16> to vector<16x128xbf16>
    %c3 = arith.constant 3 : index
    %c0_36 = arith.constant 0 : index
    %c0_37 = arith.constant 0 : index
    %51 = vector.load %arg5[%c3, %c0_36, %c0_37] : memref<16x128x32xbf16, #tpu.memory_space<vmem>>, vector<1x128x32xbf16>
    %52 = vector.shape_cast %51 : vector<1x128x32xbf16> to vector<128x32xbf16>
    %cst_38 = arith.constant dense<0.000000e+00> : vector<16x32xf32>
    %53 = tpu.matmul %50, %52, %cst_38 {dimension_numbers = #tpu.dot_dimension_numbers<[1], [0], [0], [1], [0, 0, 1, 1], [], []>} : vector<16x128xbf16>, vector<128x32xbf16>, vector<16x32xf32> -> vector<16x32xf32>
    %54 = arith.addf %48, %53 : vector<16x32xf32>
    %55 = vector.extract_strided_slice %29 {offsets = [0, 4, 0], sizes = [16, 1, 128], strides = [1, 1, 1]} : vector<16x16x128xbf16> to vector<16x1x128xbf16>
    %56 = vector.shape_cast %55 : vector<16x1x128xbf16> to vector<16x128xbf16>
    %c4 = arith.constant 4 : index
    %c0_39 = arith.constant 0 : index
    %c0_40 = arith.constant 0 : index
    %57 = vector.load %arg5[%c4, %c0_39, %c0_40] : memref<16x128x32xbf16, #tpu.memory_space<vmem>>, vector<1x128x32xbf16>
    %58 = vector.shape_cast %57 : vector<1x128x32xbf16> to vector<128x32xbf16>
    %cst_41 = arith.constant dense<0.000000e+00> : vector<16x32xf32>
    %59 = tpu.matmul %56, %58, %cst_41 {dimension_numbers = #tpu.dot_dimension_numbers<[1], [0], [0], [1], [0, 0, 1, 1], [], []>} : vector<16x128xbf16>, vector<128x32xbf16>, vector<16x32xf32> -> vector<16x32xf32>
    %60 = arith.addf %54, %59 : vector<16x32xf32>
    %61 = vector.extract_strided_slice %29 {offsets = [0, 5, 0], sizes = [16, 1, 128], strides = [1, 1, 1]} : vector<16x16x128xbf16> to vector<16x1x128xbf16>
    %62 = vector.shape_cast %61 : vector<16x1x128xbf16> to vector<16x128xbf16>
    %c5 = arith.constant 5 : index
    %c0_42 = arith.constant 0 : index
    %c0_43 = arith.constant 0 : index
    %63 = vector.load %arg5[%c5, %c0_42, %c0_43] : memref<16x128x32xbf16, #tpu.memory_space<vmem>>, vector<1x128x32xbf16>
    %64 = vector.shape_cast %63 : vector<1x128x32xbf16> to vector<128x32xbf16>
    %cst_44 = arith.constant dense<0.000000e+00> : vector<16x32xf32>
    %65 = tpu.matmul %62, %64, %cst_44 {dimension_numbers = #tpu.dot_dimension_numbers<[1], [0], [0], [1], [0, 0, 1, 1], [], []>} : vector<16x128xbf16>, vector<128x32xbf16>, vector<16x32xf32> -> vector<16x32xf32>
    %66 = arith.addf %60, %65 : vector<16x32xf32>
    %67 = vector.extract_strided_slice %29 {offsets = [0, 6, 0], sizes = [16, 1, 128], strides = [1, 1, 1]} : vector<16x16x128xbf16> to vector<16x1x128xbf16>
    %68 = vector.shape_cast %67 : vector<16x1x128xbf16> to vector<16x128xbf16>
    %c6 = arith.constant 6 : index
    %c0_45 = arith.constant 0 : index
    %c0_46 = arith.constant 0 : index
    %69 = vector.load %arg5[%c6, %c0_45, %c0_46] : memref<16x128x32xbf16, #tpu.memory_space<vmem>>, vector<1x128x32xbf16>
    %70 = vector.shape_cast %69 : vector<1x128x32xbf16> to vector<128x32xbf16>
    %cst_47 = arith.constant dense<0.000000e+00> : vector<16x32xf32>
    %71 = tpu.matmul %68, %70, %cst_47 {dimension_numbers = #tpu.dot_dimension_numbers<[1], [0], [0], [1], [0, 0, 1, 1], [], []>} : vector<16x128xbf16>, vector<128x32xbf16>, vector<16x32xf32> -> vector<16x32xf32>
    %72 = arith.addf %66, %71 : vector<16x32xf32>
    %73 = vector.extract_strided_slice %29 {offsets = [0, 7, 0], sizes = [16, 1, 128], strides = [1, 1, 1]} : vector<16x16x128xbf16> to vector<16x1x128xbf16>
    %74 = vector.shape_cast %73 : vector<16x1x128xbf16> to vector<16x128xbf16>
    %c7 = arith.constant 7 : index
    %c0_48 = arith.constant 0 : index
    %c0_49 = arith.constant 0 : index
    %75 = vector.load %arg5[%c7, %c0_48, %c0_49] : memref<16x128x32xbf16, #tpu.memory_space<vmem>>, vector<1x128x32xbf16>
    %76 = vector.shape_cast %75 : vector<1x128x32xbf16> to vector<128x32xbf16>
    %cst_50 = arith.constant dense<0.000000e+00> : vector<16x32xf32>
    %77 = tpu.matmul %74, %76, %cst_50 {dimension_numbers = #tpu.dot_dimension_numbers<[1], [0], [0], [1], [0, 0, 1, 1], [], []>} : vector<16x128xbf16>, vector<128x32xbf16>, vector<16x32xf32> -> vector<16x32xf32>
    %78 = arith.addf %72, %77 : vector<16x32xf32>
    %79 = vector.extract_strided_slice %29 {offsets = [0, 8, 0], sizes = [16, 1, 128], strides = [1, 1, 1]} : vector<16x16x128xbf16> to vector<16x1x128xbf16>
    %80 = vector.shape_cast %79 : vector<16x1x128xbf16> to vector<16x128xbf16>
    %c8 = arith.constant 8 : index
    %c0_51 = arith.constant 0 : index
    %c0_52 = arith.constant 0 : index
    %81 = vector.load %arg5[%c8, %c0_51, %c0_52] : memref<16x128x32xbf16, #tpu.memory_space<vmem>>, vector<1x128x32xbf16>
    %82 = vector.shape_cast %81 : vector<1x128x32xbf16> to vector<128x32xbf16>
    %cst_53 = arith.constant dense<0.000000e+00> : vector<16x32xf32>
    %83 = tpu.matmul %80, %82, %cst_53 {dimension_numbers = #tpu.dot_dimension_numbers<[1], [0], [0], [1], [0, 0, 1, 1], [], []>} : vector<16x128xbf16>, vector<128x32xbf16>, vector<16x32xf32> -> vector<16x32xf32>
    %84 = arith.addf %78, %83 : vector<16x32xf32>
    %85 = vector.extract_strided_slice %29 {offsets = [0, 9, 0], sizes = [16, 1, 128], strides = [1, 1, 1]} : vector<16x16x128xbf16> to vector<16x1x128xbf16>
    %86 = vector.shape_cast %85 : vector<16x1x128xbf16> to vector<16x128xbf16>
    %c9 = arith.constant 9 : index
    %c0_54 = arith.constant 0 : index
    %c0_55 = arith.constant 0 : index
    %87 = vector.load %arg5[%c9, %c0_54, %c0_55] : memref<16x128x32xbf16, #tpu.memory_space<vmem>>, vector<1x128x32xbf16>
    %88 = vector.shape_cast %87 : vector<1x128x32xbf16> to vector<128x32xbf16>
    %cst_56 = arith.constant dense<0.000000e+00> : vector<16x32xf32>
    %89 = tpu.matmul %86, %88, %cst_56 {dimension_numbers = #tpu.dot_dimension_numbers<[1], [0], [0], [1], [0, 0, 1, 1], [], []>} : vector<16x128xbf16>, vector<128x32xbf16>, vector<16x32xf32> -> vector<16x32xf32>
    %90 = arith.addf %84, %89 : vector<16x32xf32>
    %91 = vector.extract_strided_slice %29 {offsets = [0, 10, 0], sizes = [16, 1, 128], strides = [1, 1, 1]} : vector<16x16x128xbf16> to vector<16x1x128xbf16>
    %92 = vector.shape_cast %91 : vector<16x1x128xbf16> to vector<16x128xbf16>
    %c10 = arith.constant 10 : index
    %c0_57 = arith.constant 0 : index
    %c0_58 = arith.constant 0 : index
    %93 = vector.load %arg5[%c10, %c0_57, %c0_58] : memref<16x128x32xbf16, #tpu.memory_space<vmem>>, vector<1x128x32xbf16>
    %94 = vector.shape_cast %93 : vector<1x128x32xbf16> to vector<128x32xbf16>
    %cst_59 = arith.constant dense<0.000000e+00> : vector<16x32xf32>
    %95 = tpu.matmul %92, %94, %cst_59 {dimension_numbers = #tpu.dot_dimension_numbers<[1], [0], [0], [1], [0, 0, 1, 1], [], []>} : vector<16x128xbf16>, vector<128x32xbf16>, vector<16x32xf32> -> vector<16x32xf32>
    %96 = arith.addf %90, %95 : vector<16x32xf32>
    %97 = vector.extract_strided_slice %29 {offsets = [0, 11, 0], sizes = [16, 1, 128], strides = [1, 1, 1]} : vector<16x16x128xbf16> to vector<16x1x128xbf16>
    %98 = vector.shape_cast %97 : vector<16x1x128xbf16> to vector<16x128xbf16>
    %c11 = arith.constant 11 : index
    %c0_60 = arith.constant 0 : index
    %c0_61 = arith.constant 0 : index
    %99 = vector.load %arg5[%c11, %c0_60, %c0_61] : memref<16x128x32xbf16, #tpu.memory_space<vmem>>, vector<1x128x32xbf16>
    %100 = vector.shape_cast %99 : vector<1x128x32xbf16> to vector<128x32xbf16>
    %cst_62 = arith.constant dense<0.000000e+00> : vector<16x32xf32>
    %101 = tpu.matmul %98, %100, %cst_62 {dimension_numbers = #tpu.dot_dimension_numbers<[1], [0], [0], [1], [0, 0, 1, 1], [], []>} : vector<16x128xbf16>, vector<128x32xbf16>, vector<16x32xf32> -> vector<16x32xf32>
    %102 = arith.addf %96, %101 : vector<16x32xf32>
    %103 = vector.extract_strided_slice %29 {offsets = [0, 12, 0], sizes = [16, 1, 128], strides = [1, 1, 1]} : vector<16x16x128xbf16> to vector<16x1x128xbf16>
    %104 = vector.shape_cast %103 : vector<16x1x128xbf16> to vector<16x128xbf16>
    %c12 = arith.constant 12 : index
    %c0_63 = arith.constant 0 : index
    %c0_64 = arith.constant 0 : index
    %105 = vector.load %arg5[%c12, %c0_63, %c0_64] : memref<16x128x32xbf16, #tpu.memory_space<vmem>>, vector<1x128x32xbf16>
    %106 = vector.shape_cast %105 : vector<1x128x32xbf16> to vector<128x32xbf16>
    %cst_65 = arith.constant dense<0.000000e+00> : vector<16x32xf32>
    %107 = tpu.matmul %104, %106, %cst_65 {dimension_numbers = #tpu.dot_dimension_numbers<[1], [0], [0], [1], [0, 0, 1, 1], [], []>} : vector<16x128xbf16>, vector<128x32xbf16>, vector<16x32xf32> -> vector<16x32xf32>
    %108 = arith.addf %102, %107 : vector<16x32xf32>
    %109 = vector.extract_strided_slice %29 {offsets = [0, 13, 0], sizes = [16, 1, 128], strides = [1, 1, 1]} : vector<16x16x128xbf16> to vector<16x1x128xbf16>
    %110 = vector.shape_cast %109 : vector<16x1x128xbf16> to vector<16x128xbf16>
    %c13 = arith.constant 13 : index
    %c0_66 = arith.constant 0 : index
    %c0_67 = arith.constant 0 : index
    %111 = vector.load %arg5[%c13, %c0_66, %c0_67] : memref<16x128x32xbf16, #tpu.memory_space<vmem>>, vector<1x128x32xbf16>
    %112 = vector.shape_cast %111 : vector<1x128x32xbf16> to vector<128x32xbf16>
    %cst_68 = arith.constant dense<0.000000e+00> : vector<16x32xf32>
    %113 = tpu.matmul %110, %112, %cst_68 {dimension_numbers = #tpu.dot_dimension_numbers<[1], [0], [0], [1], [0, 0, 1, 1], [], []>} : vector<16x128xbf16>, vector<128x32xbf16>, vector<16x32xf32> -> vector<16x32xf32>
    %114 = arith.addf %108, %113 : vector<16x32xf32>
    %115 = vector.extract_strided_slice %29 {offsets = [0, 14, 0], sizes = [16, 1, 128], strides = [1, 1, 1]} : vector<16x16x128xbf16> to vector<16x1x128xbf16>
    %116 = vector.shape_cast %115 : vector<16x1x128xbf16> to vector<16x128xbf16>
    %c14 = arith.constant 14 : index
    %c0_69 = arith.constant 0 : index
    %c0_70 = arith.constant 0 : index
    %117 = vector.load %arg5[%c14, %c0_69, %c0_70] : memref<16x128x32xbf16, #tpu.memory_space<vmem>>, vector<1x128x32xbf16>
    %118 = vector.shape_cast %117 : vector<1x128x32xbf16> to vector<128x32xbf16>
    %cst_71 = arith.constant dense<0.000000e+00> : vector<16x32xf32>
    %119 = tpu.matmul %116, %118, %cst_71 {dimension_numbers = #tpu.dot_dimension_numbers<[1], [0], [0], [1], [0, 0, 1, 1], [], []>} : vector<16x128xbf16>, vector<128x32xbf16>, vector<16x32xf32> -> vector<16x32xf32>
    %120 = arith.addf %114, %119 : vector<16x32xf32>
    %121 = vector.extract_strided_slice %29 {offsets = [0, 15, 0], sizes = [16, 1, 128], strides = [1, 1, 1]} : vector<16x16x128xbf16> to vector<16x1x128xbf16>
    %122 = vector.shape_cast %121 : vector<16x1x128xbf16> to vector<16x128xbf16>
    %c15 = arith.constant 15 : index
    %c0_72 = arith.constant 0 : index
    %c0_73 = arith.constant 0 : index
    %123 = vector.load %arg5[%c15, %c0_72, %c0_73] : memref<16x128x32xbf16, #tpu.memory_space<vmem>>, vector<1x128x32xbf16>
    %124 = vector.shape_cast %123 : vector<1x128x32xbf16> to vector<128x32xbf16>
    %cst_74 = arith.constant dense<0.000000e+00> : vector<16x32xf32>
    %125 = tpu.matmul %122, %124, %cst_74 {dimension_numbers = #tpu.dot_dimension_numbers<[1], [0], [0], [1], [0, 0, 1, 1], [], []>} : vector<16x128xbf16>, vector<128x32xbf16>, vector<16x32xf32> -> vector<16x32xf32>
    %126 = arith.addf %120, %125 : vector<16x32xf32>
    %c0_75 = arith.constant 0 : index
    %c0_76 = arith.constant 0 : index
    %127 = vector.load %arg6[%c0_75, %c0_76] : memref<1x32xf32, #tpu.memory_space<vmem>>, vector<1x32xf32>
    %128 = vector.broadcast %127 : vector<1x32xf32> to vector<16x32xf32>
    %129 = arith.addf %126, %128 : vector<16x32xf32>
    %c0_77 = arith.constant 0 : index
    %c0_78 = arith.constant 0 : index
    %130 = vector.load %arg7[%c0_77, %c0_78] : memref<16x32xf32, #tpu.memory_space<vmem>>, vector<16x32xf32>
    tpu.vector_store %arg7[%c0_77, %c0_78], %129 {strides = array<i32>} : memref<16x32xf32, #tpu.memory_space<vmem>>, vector<16x32xf32>,
    return
  }
  func.func @transform_0(%arg0: i32) -> (i32, i32, i32) {
    %c0_i32 = arith.constant 0 : i32
    %c0_i32_0 = arith.constant 0 : i32
    %c0_i32_1 = arith.constant 0 : i32
    return %arg0, %c0_i32, %c0_i32_0 : i32, i32, i32
  }
  func.func @transform_1(%arg0: i32) -> (i32, i32, i32) {
    %c0_i32 = arith.constant 0 : i32
    %c0_i32_0 = arith.constant 0 : i32
    %c0_i32_1 = arith.constant 0 : i32
    %c0_i32_2 = arith.constant 0 : i32
    return %c0_i32, %c0_i32_0, %c0_i32_1 : i32, i32, i32
  }
  func.func @transform_2(%arg0: i32) -> (i32, i32) {
    %c0_i32 = arith.constant 0 : i32
    %c0_i32_0 = arith.constant 0 : i32
    %c0_i32_1 = arith.constant 0 : i32
    return %c0_i32, %c0_i32_0 : i32, i32
  }
  func.func @transform_3(%arg0: i32) -> (i32, i32) {
    %c0_i32 = arith.constant 0 : i32
    %c0_i32_0 = arith.constant 0 : i32
    %c0_i32_1 = arith.constant 0 : i32
    return %c0_i32, %c0_i32_0 : i32, i32
  }
  func.func @transform_4(%arg0: i32) -> (i32, i32, i32) {
    %c0_i32 = arith.constant 0 : i32
    %c0_i32_0 = arith.constant 0 : i32
    %c0_i32_1 = arith.constant 0 : i32
    %c0_i32_2 = arith.constant 0 : i32
    return %c0_i32, %c0_i32_0, %c0_i32_1 : i32, i32, i32
  }
  func.func @transform_5(%arg0: i32) -> (i32, i32) {
    %c0_i32 = arith.constant 0 : i32
    %c0_i32_0 = arith.constant 0 : i32
    %c0_i32_1 = arith.constant 0 : i32
    return %c0_i32, %c0_i32_0 : i32, i32
  }
  func.func @transform_6(%arg0: i32) -> (i32, i32) {
    %c0_i32 = arith.constant 0 : i32
    %c0_i32_0 = arith.constant 0 : i32
    return %arg0, %c0_i32 : i32, i32
  }
}

</mosaic_0001>

<llo_original>
// kernel: trainable_net_forward.1
$region0: #{trainable_net_forward.1}
  #allocation0 [shape = 'u32[]', space=smem, size = 0x4, offset = 0x4, fixed_abs, tag = 'smem constant byte address 0x4 - core index']
  #allocation1 [shape = 'u32[144,128]{1,0:T(1,128)}', space=vmem, size = 0x12000, scoped, tag = 'internal scratch']
  %s0 = inlined_call_operand.vmem [shape: bf16[32,18,64], index: 0, kind: input, shape index: {}]
  %s1 = inlined_call_operand.vmem [shape: bf16[3,64,128], index: 1, kind: input, shape index: {}]
  %s2 = inlined_call_operand.vmem [shape: f32[1,128], index: 2, kind: input, shape index: {}]
  %s3 = inlined_call_operand.vmem [shape: f32[1,128], index: 3, kind: input, shape index: {}]
  %s4 = inlined_call_operand.vmem [shape: bf16[16,128,32], index: 4, kind: input, shape index: {}]
  %s5 = inlined_call_operand.vmem [shape: f32[1,32], index: 5, kind: input, shape index: {}]
  %s6 = inlined_call_operand.hbm [shape: f32[32,32], index: 6, kind: output, shape index: {}]
  %s7 = sld [smem:[#allocation0]]
  $region57: #{trainable_net_forward.1} parent=0
    _
  %s9 = ssub.s32 1, %s7
  %s10 = scalar_select 0, %s9, %s7
  $region1: #{trainable_net_forward.1} parent=0
    #allocation2 [shape = 'u8[16384]{0}', space=vmem, size = 0x4000, scoped, tag = 'output window, operand 0']
    #allocation3 [shape = 's32[2]{0}', space=sflag, size = 0x8, scoped, tag = 'scoped memory for trainable_net_forward.1']
    %11 = vsyncpa [#allocation3], 0
    %s12 = scalar_lea.sflag [#allocation3], 1
    %13 = vsyncpa %s12, 0
    loop: start=0, step=1, limit=4
    $region2: #{trainable_net_forward.1} parent=1 // loop_pre_header
      _
    $region3: #{trainable_net_forward.1} parent=1 // loop_header
      %s15 = sphi 0, %s19
      %p16 = scmp.ge.s32.totalorder %s15, 4
      %s25 = sphi 0, %s27
      %s28 = sphi 0, %s25
      %s29 = sphi 0, %s28
      %s45 = sphi 0, %s29
      %s49 = sphi 0, %s49
      %s51 = sphi 0, %s49
      %s52 = sphi 0, %s51
      %s66 = sphi 0, %s52
      %s70 = sphi 0, %s70
      %s72 = sphi 0, %s70
      %s73 = sphi 0, %s72
      %s87 = sphi 0, %s73
      %s91 = sphi 0, %s91
      %s93 = sphi 0, %s91
      %s94 = sphi 0, %s93
      %s108 = sphi 0, %s94
      %s112 = sphi 0, %s112
      %s114 = sphi 0, %s112
      %s115 = sphi 0, %s114
      %s129 = sphi 0, %s115
      %s133 = sphi 0, %s133
      %s135 = sphi 0, %s133
      %s136 = sphi 0, %s135
      %s150 = sphi 0, %s136
      %s156 = sphi 0, %s158
      %s159 = sphi 0, %s156
      %s160 = sphi 0, %s159
      %s176 = sphi 0, %s160
    $region4: #{trainable_net_forward.1} parent=1 // loop_header_branch
      %18 = sbr.rel (%p16) target = $region8
    $region5: #{trainable_net_forward.1} parent=1 // loop_body
      %s20 = ssub.s32 %s15, 1
      %s21 = ssub.s32 %s15, 2
      %s22 = sadd.s32 %s15, 1
      %s23 = ssub.s32 %s15, %s22
      %p24 = scmp.eq.s32.totalorder %s23, 0
      %s26 = sadd.s32 %s25, 1
      %s27 = scalar_select %p24, %s25, %s26
      %p30 = pneg %p24
      %p31 = scmp.eq.s32.totalorder %s15, 1
      %p32 = por %p30, %p31
      %p33 = scmp.ne.s32.totalorder %s25, %s28
      %p34 = scmp.eq.s32.totalorder %s15, 0
      %p35 = por %p33, %p34
      %p36 = scmp.ne.s32.totalorder %s25, %s28
      %p37 = scmp.eq.s32.totalorder %s20, 1
      %p38 = por %p36, %p37
      %p39 = scmp.ne.s32.totalorder %s28, %s29
      %p40 = scmp.eq.s32.totalorder %s20, 0
      %p41 = por %p39, %p40
      %p42 = scmp.ne.s32.totalorder %s28, %s29
      %p43 = scmp.eq.s32.totalorder %s21, 1
      %p44 = por %p42, %p43
      %p46 = scmp.ne.s32.totalorder %s29, %s45
      %p47 = scmp.eq.s32.totalorder %s21, 0
      %p48 = por %p46, %p47
      %s50 = sadd.s32 %s49, 1
      %p53 = scmp.eq.s32.totalorder %s15, 1
      %p54 = scmp.ne.s32.totalorder %s49, %s51
      %p55 = scmp.eq.s32.totalorder %s15, 0
      %p56 = por %p54, %p55
      %p57 = scmp.ne.s32.totalorder %s49, %s51
      %p58 = scmp.eq.s32.totalorder %s20, 1
      %p59 = por %p57, %p58
      %p60 = scmp.ne.s32.totalorder %s51, %s52
      %p61 = scmp.eq.s32.totalorder %s20, 0
      %p62 = por %p60, %p61
      %p63 = scmp.ne.s32.totalorder %s51, %s52
      %p64 = scmp.eq.s32.totalorder %s21, 1
      %p65 = por %p63, %p64
      %p67 = scmp.ne.s32.totalorder %s52, %s66
      %p68 = scmp.eq.s32.totalorder %s21, 0
      %p69 = por %p67, %p68
      %s71 = sadd.s32 %s70, 1
      %p74 = scmp.eq.s32.totalorder %s15, 1
      %p75 = scmp.ne.s32.totalorder %s70, %s72
      %p76 = scmp.eq.s32.totalorder %s15, 0
      %p77 = por %p75, %p76
      %p78 = scmp.ne.s32.totalorder %s70, %s72
      %p79 = scmp.eq.s32.totalorder %s20, 1
      %p80 = por %p78, %p79
      %p81 = scmp.ne.s32.totalorder %s72, %s73
      %p82 = scmp.eq.s32.totalorder %s20, 0
      %p83 = por %p81, %p82
      %p84 = scmp.ne.s32.totalorder %s72, %s73
      %p85 = scmp.eq.s32.totalorder %s21, 1
      %p86 = por %p84, %p85
      %p88 = scmp.ne.s32.totalorder %s73, %s87
      %p89 = scmp.eq.s32.totalorder %s21, 0
      %p90 = por %p88, %p89
      %s92 = sadd.s32 %s91, 1
      %p95 = scmp.eq.s32.totalorder %s15, 1
      %p96 = scmp.ne.s32.totalorder %s91, %s93
      %p97 = scmp.eq.s32.totalorder %s15, 0
      %p98 = por %p96, %p97
      %p99 = scmp.ne.s32.totalorder %s91, %s93
      %p100 = scmp.eq.s32.totalorder %s20, 1
      %p101 = por %p99, %p100
      %p102 = scmp.ne.s32.totalorder %s93, %s94
      %p103 = scmp.eq.s32.totalorder %s20, 0
      %p104 = por %p102, %p103
      %p105 = scmp.ne.s32.totalorder %s93, %s94
      %p106 = scmp.eq.s32.totalorder %s21, 1
      %p107 = por %p105, %p106
      %p109 = scmp.ne.s32.totalorder %s94, %s108
      %p110 = scmp.eq.s32.totalorder %s21, 0
      %p111 = por %p109, %p110
      %s113 = sadd.s32 %s112, 1
      %p116 = scmp.eq.s32.totalorder %s15, 1
      %p117 = scmp.ne.s32.totalorder %s112, %s114
      %p118 = scmp.eq.s32.totalorder %s15, 0
      %p119 = por %p117, %p118
      %p120 = scmp.ne.s32.totalorder %s112, %s114
      %p121 = scmp.eq.s32.totalorder %s20, 1
      %p122 = por %p120, %p121
      %p123 = scmp.ne.s32.totalorder %s114, %s115
      %p124 = scmp.eq.s32.totalorder %s20, 0
      %p125 = por %p123, %p124
      %p126 = scmp.ne.s32.totalorder %s114, %s115
      %p127 = scmp.eq.s32.totalorder %s21, 1
      %p128 = por %p126, %p127
      %p130 = scmp.ne.s32.totalorder %s115, %s129
      %p131 = scmp.eq.s32.totalorder %s21, 0
      %p132 = por %p130, %p131
      %s134 = sadd.s32 %s133, 1
      %p137 = scmp.eq.s32.totalorder %s15, 1
      %p138 = scmp.ne.s32.totalorder %s133, %s135
      %p139 = scmp.eq.s32.totalorder %s15, 0
      %p140 = por %p138, %p139
      %p141 = scmp.ne.s32.totalorder %s133, %s135
      %p142 = scmp.eq.s32.totalorder %s20, 1
      %p143 = por %p141, %p142
      %p144 = scmp.ne.s32.totalorder %s135, %s136
      %p145 = scmp.eq.s32.totalorder %s20, 0
      %p146 = por %p144, %p145
      %p147 = scmp.ne.s32.totalorder %s135, %s136
      %p148 = scmp.eq.s32.totalorder %s21, 1
      %p149 = por %p147, %p148
      %p151 = scmp.ne.s32.totalorder %s136, %s150
      %p152 = scmp.eq.s32.totalorder %s21, 0
      %p153 = por %p151, %p152
      %s154 = ssub.s32 %s15, %s22
      %p155 = scmp.eq.s32.totalorder %s154, 0
      %s157 = sadd.s32 %s156, 1
      %s158 = scalar_select %p155, %s156, %s157
      %p161 = pneg %p155
      %p162 = scmp.eq.s32.totalorder %s15, 1
      %p163 = por %p161, %p162
      %p164 = scmp.ne.s32.totalorder %s156, %s159
      %p165 = scmp.eq.s32.totalorder %s15, 0
      %p166 = por %p164, %p165
      %p167 = scmp.ne.s32.totalorder %s156, %s159
      %p168 = scmp.eq.s32.totalorder %s20, 1
      %p169 = por %p167, %p168
      %p170 = scmp.ne.s32.totalorder %s159, %s160
      %p171 = scmp.eq.s32.totalorder %s20, 0
      %p172 = por %p170, %p171
      %p173 = scmp.ne.s32.totalorder %s159, %s160
      %p174 = scmp.eq.s32.totalorder %s21, 1
      %p175 = por %p173, %p174
      %p177 = scmp.ne.s32.totalorder %s160, %s176
      %p178 = scmp.eq.s32.totalorder %s21, 0
      %p179 = por %p177, %p178
      %p180 = scmp.le.s32.totalorder 1, %s15
      %p181 = scmp.lt.s32.totalorder %s15, 3
      %p182 = pnand %p180, %p181
      %p183 = pneg %p182
      // Predicated region
      $region9: #{trainable_net_forward.1} parent=5 // pred_check
        _
      $region10: #{trainable_net_forward.1} parent=5 // pred_check_branch
        %185 = sbr.rel (%p182) target = $region12
      $region11: #{trainable_net_forward.1} parent=5 // pred_region
        %s186 = ssub.s32 %s15, 1
        // Predicated region
        $region13: #{trainable_net_forward.1} parent=11 // pred_check
          %p187 = pneg %p62
        $region14: #{trainable_net_forward.1} parent=11 // pred_check_branch
          %189 = sbr.rel (%p187) target = $region16
        $region15: #{trainable_net_forward.1} parent=11 // pred_region
          _
        $region16: #{trainable_net_forward.1} parent=11 // pred_fallthru
          _
        // Predicated region
        $region17: #{trainable_net_forward.1} parent=11 // pred_check
          %p190 = pneg %p83
        $region18: #{trainable_net_forward.1} parent=11 // pred_check_branch
          %192 = sbr.rel (%p190) target = $region20
        $region19: #{trainable_net_forward.1} parent=11 // pred_region
          _
        $region20: #{trainable_net_forward.1} parent=11 // pred_fallthru
          _
        // Predicated region
        $region21: #{trainable_net_forward.1} parent=11 // pred_check
          %p193 = pneg %p104
        $region22: #{trainable_net_forward.1} parent=11 // pred_check_branch
          %195 = sbr.rel (%p193) target = $region24
        $region23: #{trainable_net_forward.1} parent=11 // pred_region
          _
        $region24: #{trainable_net_forward.1} parent=11 // pred_fallthru
          _
        // Predicated region
        $region25: #{trainable_net_forward.1} parent=11 // pred_check
          %p196 = pneg %p125
        $region26: #{trainable_net_forward.1} parent=11 // pred_check_branch
          %198 = sbr.rel (%p196) target = $region28
        $region27: #{trainable_net_forward.1} parent=11 // pred_region
          _
        $region28: #{trainable_net_forward.1} parent=11 // pred_fallthru
          _
        // Predicated region
        $region29: #{trainable_net_forward.1} parent=11 // pred_check
          %p199 = pneg %p146
        $region30: #{trainable_net_forward.1} parent=11 // pred_check_branch
          %201 = sbr.rel (%p199) target = $region32
        $region31: #{trainable_net_forward.1} parent=11 // pred_region
          _
        $region32: #{trainable_net_forward.1} parent=11 // pred_fallthru
          _
      $region12: #{trainable_net_forward.1} parent=5 // pred_fallthru
        _
      %p202 = scmp.lt.s32.totalorder %s15, 2
      // Predicated region
      $region33: #{trainable_net_forward.1} parent=5 // pred_check
        %p203 = pneg %p202
      $region34: #{trainable_net_forward.1} parent=5 // pred_check_branch
        %205 = sbr.rel (%p203) target = $region36
      $region35: #{trainable_net_forward.1} parent=5 // pred_region
        // Predicated region
        $region37: #{trainable_net_forward.1} parent=35 // pred_check
          %p206 = pneg %p35
        $region38: #{trainable_net_forward.1} parent=35 // pred_check_branch
          %208 = sbr.rel (%p206) target = $region40
        $region39: #{trainable_net_forward.1} parent=35 // pred_region
          %s209 = smul.u32 16, %s15
          %p210 = scmp.lt.s32.totalorder %s209, 31
          %s211 = scalar_select %p210, %s209, 31
          %s212 = smul.addr %s211, 3
          %s213 = smul.addr %s212, 4
          %s214 = scalar_lea.vmem %s0, %s213
          %s215 = smul.u32 16, %s15
        $region40: #{trainable_net_forward.1} parent=35 // pred_fallthru
          _
      $region36: #{trainable_net_forward.1} parent=5 // pred_fallthru
        _
      %p216 = scmp.le.s32.totalorder 1, %s15
      %p217 = scmp.lt.s32.totalorder %s15, 3
      %p218 = pnand %p216, %p217
      %p219 = pneg %p218
      // Predicated region
      $region41: #{trainable_net_forward.1} parent=5 // pred_check
        _
      $region42: #{trainable_net_forward.1} parent=5 // pred_check_branch
        %221 = sbr.rel (%p218) target = $region44
      $region43: #{trainable_net_forward.1} parent=5 // pred_region
        %s222 = ssub.s32 %s15, 1
        %s223 = smul.u32 16, %s20
        %p224 = scmp.lt.s32.totalorder %s223, 31
        %s225 = scalar_select %p224, %s223, 31
        %s226 = smul.addr %s225, 3
        %s227 = smul.addr %s226, 4
        %s228 = scalar_lea.vmem %s0, %s227
        %p229 = pneg %p41
        %p230 = pneg %p38
        %p231 = pneg %p62
        %p232 = pneg %p59
        %p233 = pneg %p83
        %p234 = pneg %p80
        %p235 = pneg %p104
        %p236 = pneg %p101
        %p237 = pneg %p125
        %p238 = pneg %p122
        %p239 = pneg %p146
        %p240 = pneg %p143
        %p241 = pneg %p172
        %p242 = pneg %p169
        %s243 = sand.u32 %s159, 1
        %s244 = scalar_lea.sflag [#allocation3], %s243
        %s245 = sand.u32 %s159, 1
        %s246 = smul.addr %s245, 16
        %s247 = scalar_lea.vmem [#allocation2], %s246
        %s248 = smul.u32 16, %s20
        %p249 = scmp.lt.s32.totalorder %s248, 31
        %s250 = scalar_select %p249, %s248, 31
        %s251 = smul.addr %s250, 3
        %s252 = smul.addr %s251, 4
        %s253 = scalar_lea.vmem %s0, %s252
        %s254 = smul.u32 16, %s20
        %s255 = smul.u32 2, %s20
        %v257 = vld [vmem:[%s253] sm:$0xf]
        %v258 = vld [vmem:[%s253 + $0x4] sm:$0xf]
        %v259 = vld [vmem:[%s253 + $0xc] sm:$0xf]
        %v260 = vld [vmem:[%s253 + $0x10] sm:$0xf]
        %v261 = vld [vmem:[%s253 + $0x18] sm:$0xf]
        %v262 = vld [vmem:[%s253 + $0x1c] sm:$0xf]
        %v263 = vld [vmem:[%s253 + $0x24] sm:$0xf]
        %v264 = vld [vmem:[%s253 + $0x28] sm:$0xf]
        %v265 = vld [vmem:[%s253 + $0x30] sm:$0xf]
        %v266 = vld [vmem:[%s253 + $0x34] sm:$0xf]
        %v267 = vld [vmem:[%s253 + $0x3c] sm:$0xf]
        %v268 = vld [vmem:[%s253 + $0x40] sm:$0xf]
        %v269 = vld [vmem:[%s253 + $0x48] sm:$0xf]
        %v270 = vld [vmem:[%s253 + $0x4c] sm:$0xf]
        %v271 = vld [vmem:[%s253 + $0x54] sm:$0xf]
        %v272 = vld [vmem:[%s253 + $0x58] sm:$0xf]
        %v273 = vld [vmem:[%s253 + $0x60] sm:$0xf]
        %v274 = vld [vmem:[%s253 + $0x64] sm:$0xf]
        %v275 = vld [vmem:[%s253 + $0x6c] sm:$0xf]
        %v276 = vld [vmem:[%s253 + $0x70] sm:$0xf]
        %v277 = vld [vmem:[%s253 + $0x78] sm:$0xf]
        %v278 = vld [vmem:[%s253 + $0x7c] sm:$0xf]
        %v279 = vld [vmem:[%s253 + $0x84] sm:$0xf]
        %v280 = vld [vmem:[%s253 + $0x88] sm:$0xf]
        %v281 = vld [vmem:[%s253 + $0x90] sm:$0xf]
        %v282 = vld [vmem:[%s253 + $0x94] sm:$0xf]
        %v283 = vld [vmem:[%s253 + $0x9c] sm:$0xf]
        %v284 = vld [vmem:[%s253 + $0xa0] sm:$0xf]
        %v285 = vld [vmem:[%s253 + $0xa8] sm:$0xf]
        %v286 = vld [vmem:[%s253 + $0xac] sm:$0xf]
        %v287 = vld [vmem:[%s253 + $0xb4] sm:$0xf]
        %v288 = vld [vmem:[%s253 + $0xb8] sm:$0xf]
        %v289 = vld [vmem:[%s1] sm:$0xf]
        %v290 = vld [vmem:[%s1 + $0x4] sm:$0xf]
        %v291 = vld [vmem:[%s1 + $0x8] sm:$0xf]
        %v292 = vld [vmem:[%s1 + $0xc] sm:$0xf]
        %v293 = vld [vmem:[%s1 + $0x10] sm:$0xf]
        %v294 = vld [vmem:[%s1 + $0x14] sm:$0xf]
        %v295 = vld [vmem:[%s1 + $0x18] sm:$0xf]
        %v296 = vld [vmem:[%s1 + $0x1c] sm:$0xf]
        %v297 = vld [vmem:[%s253 + $0x8] sm:$0x1]
        %v298 = vld [vmem:[%s253 + $0x14] sm:$0x1]
        %v299 = vld [vmem:[%s253 + $0x20] sm:$0x1]
        %v300 = vld [vmem:[%s253 + $0x2c] sm:$0x1]
        %v301 = vld [vmem:[%s253 + $0x38] sm:$0x1]
        %v302 = vld [vmem:[%s253 + $0x44] sm:$0x1]
        %v303 = vld [vmem:[%s253 + $0x50] sm:$0x1]
        %v304 = vld [vmem:[%s253 + $0x5c] sm:$0x1]
        %v305 = vld [vmem:[%s253 + $0x68] sm:$0x1]
        %v306 = vld [vmem:[%s253 + $0x74] sm:$0x1]
        %v307 = vld [vmem:[%s253 + $0x80] sm:$0x1]
        %v308 = vld [vmem:[%s253 + $0x8c] sm:$0x1]
        %v309 = vld [vmem:[%s253 + $0x98] sm:$0x1]
        %v310 = vld [vmem:[%s253 + $0xa4] sm:$0x1]
        %v311 = vld [vmem:[%s253 + $0xb0] sm:$0x1]
        %v312 = vld [vmem:[%s253 + $0xbc] sm:$0x1]
        %vm313 = vsmask.f32 3328
        %vm314 = vsmask.f32 7440
        %vm315 = vmor %vm313, %vm314
        %v317 = vshrl.u32 %v257, 16
        %v319 = vrot.slane %v317, 4
        %v320 = vshll.u32 %v257, 16
        %v322 = vrot.slane %v320, 5
        %v323 = vor.u32 %v319, %v322
        %v324 = vrot.slane %v323, 4
        %v326 = vshll.u32 %v258, 16
        %v328 = vrot.slane %v326, 5
        %v329 = vsel %vm315, %v324, %v328
        %v330 = vshrl.u32 %v258, 16
        %v332 = vrot.slane %v330, 4
        %v333 = vor.u32 %v332, %v328
        %v334 = vrot.slane %v333, 4
        %v336 = vshll.u32 %v297, 16
        %v338 = vrot.slane %v336, 5
        %v339 = vsel %vm315, %v334, %v338
        %v341 = vshrl.u32 %v259, 16
        %v343 = vrot.slane %v341, 4
        %v344 = vshll.u32 %v259, 16
        %v346 = vrot.slane %v344, 5
        %v347 = vor.u32 %v343, %v346
        %v348 = vrot.slane %v347, 4
        %v350 = vshll.u32 %v260, 16
        %v352 = vrot.slane %v350, 5
        %v353 = vsel %vm315, %v348, %v352
        %v354 = vshrl.u32 %v260, 16
        %v356 = vrot.slane %v354, 4
        %v357 = vor.u32 %v356, %v352
        %v358 = vrot.slane %v357, 4
        %v360 = vshll.u32 %v298, 16
        %v362 = vrot.slane %v360, 5
        %v363 = vsel %vm315, %v358, %v362
        %v365 = vshrl.u32 %v261, 16
        %v367 = vrot.slane %v365, 4
        %v368 = vshll.u32 %v261, 16
        %v370 = vrot.slane %v368, 5
        %v371 = vor.u32 %v367, %v370
        %v372 = vrot.slane %v371, 4
        %v374 = vshll.u32 %v262, 16
        %v376 = vrot.slane %v374, 5
        %v377 = vsel %vm315, %v372, %v376
        %v378 = vshrl.u32 %v262, 16
        %v380 = vrot.slane %v378, 4
        %v381 = vor.u32 %v380, %v376
        %v382 = vrot.slane %v381, 4
        %v384 = vshll.u32 %v299, 16
        %v386 = vrot.slane %v384, 5
        %v387 = vsel %vm315, %v382, %v386
        %v389 = vshrl.u32 %v263, 16
        %v391 = vrot.slane %v389, 4
        %v392 = vshll.u32 %v263, 16
        %v394 = vrot.slane %v392, 5
        %v395 = vor.u32 %v391, %v394
        %v396 = vrot.slane %v395, 4
        %v398 = vshll.u32 %v264, 16
        %v400 = vrot.slane %v398, 5
        %v401 = vsel %vm315, %v396, %v400
        %v402 = vshrl.u32 %v264, 16
        %v404 = vrot.slane %v402, 4
        %v405 = vor.u32 %v404, %v400
        %v406 = vrot.slane %v405, 4
        %v408 = vshll.u32 %v300, 16
        %v410 = vrot.slane %v408, 5
        %v411 = vsel %vm315, %v406, %v410
        %v413 = vshrl.u32 %v265, 16
        %v415 = vrot.slane %v413, 4
        %v416 = vshll.u32 %v265, 16
        %v418 = vrot.slane %v416, 5
        %v419 = vor.u32 %v415, %v418
        %v420 = vrot.slane %v419, 4
        %v422 = vshll.u32 %v266, 16
        %v424 = vrot.slane %v422, 5
        %v425 = vsel %vm315, %v420, %v424
        %v426 = vshrl.u32 %v266, 16
        %v428 = vrot.slane %v426, 4
        %v429 = vor.u32 %v428, %v424
        %v430 = vrot.slane %v429, 4
        %v432 = vshll.u32 %v301, 16
        %v434 = vrot.slane %v432, 5
        %v435 = vsel %vm315, %v430, %v434
        %v437 = vshrl.u32 %v267, 16
        %v439 = vrot.slane %v437, 4
        %v440 = vshll.u32 %v267, 16
        %v442 = vrot.slane %v440, 5
        %v443 = vor.u32 %v439, %v442
        %v444 = vrot.slane %v443, 4
        %v446 = vshll.u32 %v268, 16
        %v448 = vrot.slane %v446, 5
        %v449 = vsel %vm315, %v444, %v448
        %v450 = vshrl.u32 %v268, 16
        %v452 = vrot.slane %v450, 4
        %v453 = vor.u32 %v452, %v448
        %v454 = vrot.slane %v453, 4
        %v456 = vshll.u32 %v302, 16
        %v458 = vrot.slane %v456, 5
        %v459 = vsel %vm315, %v454, %v458
        %v461 = vshrl.u32 %v269, 16
        %v463 = vrot.slane %v461, 4
        %v464 = vshll.u32 %v269, 16
        %v466 = vrot.slane %v464, 5
        %v467 = vor.u32 %v463, %v466
        %v468 = vrot.slane %v467, 4
        %v470 = vshll.u32 %v270, 16
        %v472 = vrot.slane %v470, 5
        %v473 = vsel %vm315, %v468, %v472
        %v474 = vshrl.u32 %v270, 16
        %v476 = vrot.slane %v474, 4
        %v477 = vor.u32 %v476, %v472
        %v478 = vrot.slane %v477, 4
        %v480 = vshll.u32 %v303, 16
        %v482 = vrot.slane %v480, 5
        %v483 = vsel %vm315, %v478, %v482
        %v485 = vshrl.u32 %v271, 16
        %v487 = vrot.slane %v485, 4
        %v488 = vshll.u32 %v271, 16
        %v490 = vrot.slane %v488, 5
        %v491 = vor.u32 %v487, %v490
        %v492 = vrot.slane %v491, 4
        %v494 = vshll.u32 %v272, 16
        %v496 = vrot.slane %v494, 5
        %v497 = vsel %vm315, %v492, %v496
        %v498 = vshrl.u32 %v272, 16
        %v500 = vrot.slane %v498, 4
        %v501 = vor.u32 %v500, %v496
        %v502 = vrot.slane %v501, 4
        %v504 = vshll.u32 %v304, 16
        %v506 = vrot.slane %v504, 5
        %v507 = vsel %vm315, %v502, %v506
        %v509 = vshrl.u32 %v273, 16
        %v511 = vrot.slane %v509, 4
        %v512 = vshll.u32 %v273, 16
        %v514 = vrot.slane %v512, 5
        %v515 = vor.u32 %v511, %v514
        %v516 = vrot.slane %v515, 4
        %v518 = vshll.u32 %v274, 16
        %v520 = vrot.slane %v518, 5
        %v521 = vsel %vm315, %v516, %v520
        %v522 = vshrl.u32 %v274, 16
        %v524 = vrot.slane %v522, 4
        %v525 = vor.u32 %v524, %v520
        %v526 = vrot.slane %v525, 4
        %v528 = vshll.u32 %v305, 16
        %v530 = vrot.slane %v528, 5
        %v531 = vsel %vm315, %v526, %v530
        %v533 = vshrl.u32 %v275, 16
        %v535 = vrot.slane %v533, 4
        %v536 = vshll.u32 %v275, 16
        %v538 = vrot.slane %v536, 5
        %v539 = vor.u32 %v535, %v538
        %v540 = vrot.slane %v539, 4
        %v542 = vshll.u32 %v276, 16
        %v544 = vrot.slane %v542, 5
        %v545 = vsel %vm315, %v540, %v544
        %v546 = vshrl.u32 %v276, 16
        %v548 = vrot.slane %v546, 4
        %v549 = vor.u32 %v548, %v544
        %v550 = vrot.slane %v549, 4
        %v552 = vshll.u32 %v306, 16
        %v554 = vrot.slane %v552, 5
        %v555 = vsel %vm315, %v550, %v554
        %v557 = vshrl.u32 %v277, 16
        %v559 = vrot.slane %v557, 4
        %v560 = vshll.u32 %v277, 16
        %v562 = vrot.slane %v560, 5
        %v563 = vor.u32 %v559, %v562
        %v564 = vrot.slane %v563, 4
        %v566 = vshll.u32 %v278, 16
        %v568 = vrot.slane %v566, 5
        %v569 = vsel %vm315, %v564, %v568
        %v570 = vshrl.u32 %v278, 16
        %v572 = vrot.slane %v570, 4
        %v573 = vor.u32 %v572, %v568
        %v574 = vrot.slane %v573, 4
        %v576 = vshll.u32 %v307, 16
        %v578 = vrot.slane %v576, 5
        %v579 = vsel %vm315, %v574, %v578
        %v581 = vshrl.u32 %v279, 16
        %v583 = vrot.slane %v581, 4
        %v584 = vshll.u32 %v279, 16
        %v586 = vrot.slane %v584, 5
        %v587 = vor.u32 %v583, %v586
        %v588 = vrot.slane %v587, 4
        %v590 = vshll.u32 %v280, 16
        %v592 = vrot.slane %v590, 5
        %v593 = vsel %vm315, %v588, %v592
        %v594 = vshrl.u32 %v280, 16
        %v596 = vrot.slane %v594, 4
        %v597 = vor.u32 %v596, %v592
        %v598 = vrot.slane %v597, 4
        %v600 = vshll.u32 %v308, 16
        %v602 = vrot.slane %v600, 5
        %v603 = vsel %vm315, %v598, %v602
        %v605 = vshrl.u32 %v281, 16
        %v607 = vrot.slane %v605, 4
        %v608 = vshll.u32 %v281, 16
        %v610 = vrot.slane %v608, 5
        %v611 = vor.u32 %v607, %v610
        %v612 = vrot.slane %v611, 4
        %v614 = vshll.u32 %v282, 16
        %v616 = vrot.slane %v614, 5
        %v617 = vsel %vm315, %v612, %v616
        %v618 = vshrl.u32 %v282, 16
        %v620 = vrot.slane %v618, 4
        %v621 = vor.u32 %v620, %v616
        %v622 = vrot.slane %v621, 4
        %v624 = vshll.u32 %v309, 16
        %v626 = vrot.slane %v624, 5
        %v627 = vsel %vm315, %v622, %v626
        %v629 = vshrl.u32 %v283, 16
        %v631 = vrot.slane %v629, 4
        %v632 = vshll.u32 %v283, 16
        %v634 = vrot.slane %v632, 5
        %v635 = vor.u32 %v631, %v634
        %v636 = vrot.slane %v635, 4
        %v638 = vshll.u32 %v284, 16
        %v640 = vrot.slane %v638, 5
        %v641 = vsel %vm315, %v636, %v640
        %v642 = vshrl.u32 %v284, 16
        %v644 = vrot.slane %v642, 4
        %v645 = vor.u32 %v644, %v640
        %v646 = vrot.slane %v645, 4
        %v648 = vshll.u32 %v310, 16
        %v650 = vrot.slane %v648, 5
        %v651 = vsel %vm315, %v646, %v650
        %v653 = vshrl.u32 %v285, 16
        %v655 = vrot.slane %v653, 4
        %v656 = vshll.u32 %v285, 16
        %v658 = vrot.slane %v656, 5
        %v659 = vor.u32 %v655, %v658
        %v660 = vrot.slane %v659, 4
        %v662 = vshll.u32 %v286, 16
        %v664 = vrot.slane %v662, 5
        %v665 = vsel %vm315, %v660, %v664
        %v666 = vshrl.u32 %v286, 16
        %v668 = vrot.slane %v666, 4
        %v669 = vor.u32 %v668, %v664
        %v670 = vrot.slane %v669, 4
        %v672 = vshll.u32 %v311, 16
        %v674 = vrot.slane %v672, 5
        %v675 = vsel %vm315, %v670, %v674
        %v677 = vshrl.u32 %v287, 16
        %v679 = vrot.slane %v677, 4
        %v680 = vshll.u32 %v287, 16
        %v682 = vrot.slane %v680, 5
        %v683 = vor.u32 %v679, %v682
        %v684 = vrot.slane %v683, 4
        %v686 = vshll.u32 %v288, 16
        %v688 = vrot.slane %v686, 5
        %v689 = vsel %vm315, %v684, %v688
        %v690 = vshrl.u32 %v288, 16
        %v692 = vrot.slane %v690, 4
        %v693 = vor.u32 %v692, %v688
        %v694 = vrot.slane %v693, 4
        %v696 = vshll.u32 %v312, 16
        %v698 = vrot.slane %v696, 5
        %v699 = vsel %vm315, %v694, %v698
        %s700 = scalar_lea.vmem %s1, 32
        %v701 = vld [vmem:[%s700] sm:$0xf]
        %v702 = vld [vmem:[%s700 + $0x4] sm:$0xf]
        %v703 = vld [vmem:[%s700 + $0x8] sm:$0xf]
        %v704 = vld [vmem:[%s700 + $0xc] sm:$0xf]
        %v705 = vld [vmem:[%s700 + $0x10] sm:$0xf]
        %v706 = vld [vmem:[%s700 + $0x14] sm:$0xf]
        %v707 = vld [vmem:[%s700 + $0x18] sm:$0xf]
        %v708 = vld [vmem:[%s700 + $0x1c] sm:$0xf]
        %v709 = vunpack.c.l.b16 %v329
        %v710 = vunpack.c.l.b16 %v339
        %v711 = vunpack.c.l.b16 %v353
        %v712 = vunpack.c.l.b16 %v363
        %v713 = vunpack.c.l.b16 %v377
        %v714 = vunpack.c.l.b16 %v387
        %v715 = vunpack.c.l.b16 %v401
        %v716 = vunpack.c.l.b16 %v411
        %v717 = vunpack.c.l.b16 %v425
        %v718 = vunpack.c.l.b16 %v435
        %v719 = vunpack.c.l.b16 %v449
        %v720 = vunpack.c.l.b16 %v459
        %v721 = vunpack.c.l.b16 %v473
        %v722 = vunpack.c.l.b16 %v483
        %v723 = vunpack.c.l.b16 %v497
        %v724 = vunpack.c.l.b16 %v507
        %v725 = vunpack.c.l.b16 %v521
        %v726 = vunpack.c.l.b16 %v531
        %v727 = vunpack.c.l.b16 %v545
        %v728 = vunpack.c.l.b16 %v555
        %v729 = vunpack.c.l.b16 %v569
        %v730 = vunpack.c.l.b16 %v579
        %v731 = vunpack.c.l.b16 %v593
        %v732 = vunpack.c.l.b16 %v603
        %v733 = vunpack.c.l.b16 %v617
        %v734 = vunpack.c.l.b16 %v627
        %v735 = vunpack.c.l.b16 %v641
        %v736 = vunpack.c.l.b16 %v651
        %v737 = vunpack.c.l.b16 %v665
        %v738 = vunpack.c.l.b16 %v675
        %v739 = vunpack.c.l.b16 %v689
        %v740 = vunpack.c.l.b16 %v699
        %v741 = vpack.c.b16 %v710, %v709
        %v742 = vpack.c.b16 %v712, %v711
        %v743 = vpack.c.b16 %v714, %v713
        %v744 = vpack.c.b16 %v716, %v715
        %v745 = vpack.c.b16 %v718, %v717
        %v746 = vpack.c.b16 %v720, %v719
        %v747 = vpack.c.b16 %v722, %v721
        %v748 = vpack.c.b16 %v724, %v723
        %v749 = vpack.c.b16 %v726, %v725
        %v750 = vpack.c.b16 %v728, %v727
        %v751 = vpack.c.b16 %v730, %v729
        %v752 = vpack.c.b16 %v732, %v731
        %v753 = vpack.c.b16 %v734, %v733
        %v754 = vpack.c.b16 %v736, %v735
        %v755 = vpack.c.b16 %v738, %v737
        %v756 = vpack.c.b16 %v740, %v739
        %v765 = vunpack.c.l.b16 %v701
        %v766 = vunpack.c.l.b16 %v702
        %v767 = vunpack.c.l.b16 %v703
        %v768 = vunpack.c.l.b16 %v704
        %v769 = vunpack.c.l.b16 %v705
        %v770 = vunpack.c.l.b16 %v706
        %v771 = vunpack.c.l.b16 %v707
        %v772 = vunpack.c.l.b16 %v708
        %v773 = vpack.c.b16 %v766, %v765
        %v774 = vpack.c.b16 %v768, %v767
        %v775 = vpack.c.b16 %v770, %v769
        %v776 = vpack.c.b16 %v772, %v771
        %vm781 = vcmask 523264
        %v783 = vsel %vm781, %v741, 0
        %v786 = vsel %vm781, %v742, 0
        %v789 = vsel %vm781, %v743, 0
        %v792 = vsel %vm781, %v744, 0
        %v795 = vsel %vm781, %v745, 0
        %v798 = vsel %vm781, %v746, 0
        %v801 = vsel %vm781, %v747, 0
        %v804 = vsel %vm781, %v748, 0
        %v807 = vsel %vm781, %v749, 0
        %v810 = vsel %vm781, %v750, 0
        %v813 = vsel %vm781, %v751, 0
        %v816 = vsel %vm781, %v752, 0
        %v819 = vsel %vm781, %v753, 0
        %v822 = vsel %vm781, %v754, 0
        %v825 = vsel %vm781, %v755, 0
        %v828 = vsel %vm781, %v756, 0
        %830 = vmatprep.subr.bf16.mxu0 0
        %831 = vmatpush1.bf16.msra.mxu0 0
        %832 = vmatprep.subr.bf16.mxu0 0
        %833 = vmatpush1.bf16.msra.mxu0 0
        %834 = vmatprep.subr.bf16.mxu0 0
        %835 = vmatpush1.bf16.msra.mxu0 0
        %836 = vmatprep.subr.bf16.mxu0 0
        %837 = vmatpush1.bf16.msra.mxu0 0
        %838 = vmatprep.subr.bf16.mxu0 0
        %839 = vmatpush1.bf16.msra.mxu0 %v776
        %840 = vmatprep.subr.bf16.mxu0 0
        %841 = vmatpush1.bf16.msra.mxu0 %v775
        %842 = vmatprep.subr.bf16.mxu0 0
        %843 = vmatpush1.bf16.msra.mxu0 %v774
        %844 = vmatprep.subr.bf16.mxu0 0
        %845 = vmatpush1.bf16.msra.mxu0 %v773
        %846 = vmatprep.subr.bf16.mxu0 0
        %847 = vmatpush2.bf16.msra.mxu0 0
        %848 = vmatprep.subr.bf16.mxu0 0
        %849 = vmatpush2.bf16.msra.mxu0 0
        %850 = vmatprep.subr.bf16.mxu0 0
        %851 = vmatpush2.bf16.msra.mxu0 0
        %852 = vmatprep.subr.bf16.mxu0 0
        %853 = vmatpush2.bf16.msra.mxu0 0
        %854 = vmatprep.subr.bf16.mxu0 0
        %855 = vmatpush2.bf16.msra.mxu0 0
        %856 = vmatprep.subr.bf16.mxu0 0
        %857 = vmatpush2.bf16.msra.mxu0 0
        %858 = vmatprep.subr.bf16.mxu0 0
        %859 = vmatpush2.bf16.msra.mxu0 0
        %860 = vmatprep.subr.bf16.mxu0 0
        %861 = vmatpush2.bf16.msra.mxu0 0
        %862 = vmatprep.mubr.bf16.mxu0 0
        %863 = vmatmul.mubr.bf16.gmra.mxu0 %v783
        %v864 = vpop.f32.mrf.mxu0
        %v865 = vadd.f32 0.0, %v864
        %v866 = vpop.f32.mrf.mxu0
        %v867 = vpop.f32.mrf.mxu0
        %v868 = vadd.f32 0.0, %v867
        %v869 = vpop.f32.mrf.mxu0
        %870 = vmatprep.mubr.bf16.mxu0 0
        %871 = vmatmul.mubr.bf16.gmra.mxu0 %v786
        %v872 = vpop.f32.mrf.mxu0
        %v873 = vadd.f32 0.0, %v872
        %v874 = vpop.f32.mrf.mxu0
        %v875 = vpop.f32.mrf.mxu0
        %v876 = vadd.f32 0.0, %v875
        %v877 = vpop.f32.mrf.mxu0
        %878 = vmatprep.mubr.bf16.mxu0 0
        %879 = vmatmul.mubr.bf16.gmra.mxu0 %v789
        %v880 = vpop.f32.mrf.mxu0
        %v881 = vadd.f32 0.0, %v880
        %v882 = vpop.f32.mrf.mxu0
        %v883 = vpop.f32.mrf.mxu0
        %v884 = vadd.f32 0.0, %v883
        %v885 = vpop.f32.mrf.mxu0
        %886 = vmatprep.mubr.bf16.mxu0 0
        %887 = vmatmul.mubr.bf16.gmra.mxu0 %v792
        %v888 = vpop.f32.mrf.mxu0
        %v889 = vadd.f32 0.0, %v888
        %v890 = vpop.f32.mrf.mxu0
        %v891 = vpop.f32.mrf.mxu0
        %v892 = vadd.f32 0.0, %v891
        %v893 = vpop.f32.mrf.mxu0
        %894 = vmatprep.mubr.bf16.mxu0 0
        %895 = vmatmul.mubr.bf16.gmra.mxu0 %v795
        %v896 = vpop.f32.mrf.mxu0
        %v897 = vadd.f32 0.0, %v896
        %v898 = vpop.f32.mrf.mxu0
        %v899 = vpop.f32.mrf.mxu0
        %v900 = vadd.f32 0.0, %v899
        %v901 = vpop.f32.mrf.mxu0
        %902 = vmatprep.mubr.bf16.mxu0 0
        %903 = vmatmul.mubr.bf16.gmra.mxu0 %v798
        %v904 = vpop.f32.mrf.mxu0
        %v905 = vadd.f32 0.0, %v904
        %v906 = vpop.f32.mrf.mxu0
        %v907 = vpop.f32.mrf.mxu0
        %v908 = vadd.f32 0.0, %v907
        %v909 = vpop.f32.mrf.mxu0
        %910 = vmatprep.mubr.bf16.mxu0 0
        %911 = vmatmul.mubr.bf16.gmra.mxu0 %v801
        %v912 = vpop.f32.mrf.mxu0
        %v913 = vadd.f32 0.0, %v912
        %v914 = vpop.f32.mrf.mxu0
        %v915 = vpop.f32.mrf.mxu0
        %v916 = vadd.f32 0.0, %v915
        %v917 = vpop.f32.mrf.mxu0
        %918 = vmatprep.mubr.bf16.mxu0 0
        %919 = vmatmul.mubr.bf16.gmra.mxu0 %v804
        %v920 = vpop.f32.mrf.mxu0
        %v921 = vadd.f32 0.0, %v920
        %v922 = vpop.f32.mrf.mxu0
        %v923 = vpop.f32.mrf.mxu0
        %v924 = vadd.f32 0.0, %v923
        %v925 = vpop.f32.mrf.mxu0
        %926 = vmatprep.mubr.bf16.mxu0 0
        %927 = vmatmul.mubr.bf16.gmra.mxu0 %v807
        %v928 = vpop.f32.mrf.mxu0
        %v929 = vadd.f32 0.0, %v928
        %v930 = vpop.f32.mrf.mxu0
        %v931 = vpop.f32.mrf.mxu0
        %v932 = vadd.f32 0.0, %v931
        %v933 = vpop.f32.mrf.mxu0
        %934 = vmatprep.mubr.bf16.mxu0 0
        %935 = vmatmul.mubr.bf16.gmra.mxu0 %v810
        %v936 = vpop.f32.mrf.mxu0
        %v937 = vadd.f32 0.0, %v936
        %v938 = vpop.f32.mrf.mxu0
        %v939 = vpop.f32.mrf.mxu0
        %v940 = vadd.f32 0.0, %v939
        %v941 = vpop.f32.mrf.mxu0
        %942 = vmatprep.mubr.bf16.mxu0 0
        %943 = vmatmul.mubr.bf16.gmra.mxu0 %v813
        %v944 = vpop.f32.mrf.mxu0
        %v945 = vadd.f32 0.0, %v944
        %v946 = vpop.f32.mrf.mxu0
        %v947 = vpop.f32.mrf.mxu0
        %v948 = vadd.f32 0.0, %v947
        %v949 = vpop.f32.mrf.mxu0
        %950 = vmatprep.mubr.bf16.mxu0 0
        %951 = vmatmul.mubr.bf16.gmra.mxu0 %v816
        %v952 = vpop.f32.mrf.mxu0
        %v953 = vadd.f32 0.0, %v952
        %v954 = vpop.f32.mrf.mxu0
        %v955 = vpop.f32.mrf.mxu0
        %v956 = vadd.f32 0.0, %v955
        %v957 = vpop.f32.mrf.mxu0
        %958 = vmatprep.mubr.bf16.mxu0 0
        %959 = vmatmul.mubr.bf16.gmra.mxu0 %v819
        %v960 = vpop.f32.mrf.mxu0
        %v961 = vadd.f32 0.0, %v960
        %v962 = vpop.f32.mrf.mxu0
        %v963 = vpop.f32.mrf.mxu0
        %v964 = vadd.f32 0.0, %v963
        %v965 = vpop.f32.mrf.mxu0
        %966 = vmatprep.mubr.bf16.mxu0 0
        %967 = vmatmul.mubr.bf16.gmra.mxu0 %v822
        %v968 = vpop.f32.mrf.mxu0
        %v969 = vadd.f32 0.0, %v968
        %v970 = vpop.f32.mrf.mxu0
        %v971 = vpop.f32.mrf.mxu0
        %v972 = vadd.f32 0.0, %v971
        %v973 = vpop.f32.mrf.mxu0
        %974 = vmatprep.mubr.bf16.mxu0 0
        %975 = vmatmul.mubr.bf16.gmra.mxu0 %v825
        %v976 = vpop.f32.mrf.mxu0
        %v977 = vadd.f32 0.0, %v976
        %v978 = vpop.f32.mrf.mxu0
        %v979 = vpop.f32.mrf.mxu0
        %v980 = vadd.f32 0.0, %v979
        %v981 = vpop.f32.mrf.mxu0
        %982 = vmatprep.mubr.bf16.mxu0 0
        %983 = vmatmul.mubr.bf16.gmra.mxu0 %v828
        %v984 = vpop.f32.mrf.mxu0
        %v985 = vadd.f32 0.0, %v984
        %v986 = vpop.f32.mrf.mxu0
        %v987 = vpop.f32.mrf.mxu0
        %v988 = vadd.f32 0.0, %v987
        %v989 = vpop.f32.mrf.mxu0
        %990 = vdwg.mxu0
        %v1023 = vunpack.c.l.b16 %v257
        %v1024 = vunpack.c.l.b16 %v258
        %v1025 = vunpack.c.l.b16 %v259
        %v1026 = vunpack.c.l.b16 %v260
        %v1027 = vunpack.c.l.b16 %v261
        %v1028 = vunpack.c.l.b16 %v262
        %v1029 = vunpack.c.l.b16 %v263
        %v1030 = vunpack.c.l.b16 %v264
        %v1031 = vunpack.c.l.b16 %v265
        %v1032 = vunpack.c.l.b16 %v266
        %v1033 = vunpack.c.l.b16 %v267
        %v1034 = vunpack.c.l.b16 %v268
        %v1035 = vunpack.c.l.b16 %v269
        %v1036 = vunpack.c.l.b16 %v270
        %v1037 = vunpack.c.l.b16 %v271
        %v1038 = vunpack.c.l.b16 %v272
        %v1039 = vunpack.c.l.b16 %v273
        %v1040 = vunpack.c.l.b16 %v274
        %v1041 = vunpack.c.l.b16 %v275
        %v1042 = vunpack.c.l.b16 %v276
        %v1043 = vunpack.c.l.b16 %v277
        %v1044 = vunpack.c.l.b16 %v278
        %v1045 = vunpack.c.l.b16 %v279
        %v1046 = vunpack.c.l.b16 %v280
        %v1047 = vunpack.c.l.b16 %v281
        %v1048 = vunpack.c.l.b16 %v282
        %v1049 = vunpack.c.l.b16 %v283
        %v1050 = vunpack.c.l.b16 %v284
        %v1051 = vunpack.c.l.b16 %v285
        %v1052 = vunpack.c.l.b16 %v286
        %v1053 = vunpack.c.l.b16 %v287
        %v1054 = vunpack.c.l.b16 %v288
        %v1055 = vpack.c.b16 %v1024, %v1023
        %v1056 = vpack.c.b16 %v1026, %v1025
        %v1057 = vpack.c.b16 %v1028, %v1027
        %v1058 = vpack.c.b16 %v1030, %v1029
        %v1059 = vpack.c.b16 %v1032, %v1031
        %v1060 = vpack.c.b16 %v1034, %v1033
        %v1061 = vpack.c.b16 %v1036, %v1035
        %v1062 = vpack.c.b16 %v1038, %v1037
        %v1063 = vpack.c.b16 %v1040, %v1039
        %v1064 = vpack.c.b16 %v1042, %v1041
        %v1065 = vpack.c.b16 %v1044, %v1043
        %v1066 = vpack.c.b16 %v1046, %v1045
        %v1067 = vpack.c.b16 %v1048, %v1047
        %v1068 = vpack.c.b16 %v1050, %v1049
        %v1069 = vpack.c.b16 %v1052, %v1051
        %v1070 = vpack.c.b16 %v1054, %v1053
        %v1079 = vunpack.c.l.b16 %v289
        %v1080 = vunpack.c.l.b16 %v290
        %v1081 = vunpack.c.l.b16 %v291
        %v1082 = vunpack.c.l.b16 %v292
        %v1083 = vunpack.c.l.b16 %v293
        %v1084 = vunpack.c.l.b16 %v294
        %v1085 = vunpack.c.l.b16 %v295
        %v1086 = vunpack.c.l.b16 %v296
        %v1087 = vpack.c.b16 %v1080, %v1079
        %v1088 = vpack.c.b16 %v1082, %v1081
        %v1089 = vpack.c.b16 %v1084, %v1083
        %v1090 = vpack.c.b16 %v1086, %v1085
        %v1096 = vsel %vm781, %v1055, 0
        %v1099 = vsel %vm781, %v1056, 0
        %v1102 = vsel %vm781, %v1057, 0
        %v1105 = vsel %vm781, %v1058, 0
        %v1108 = vsel %vm781, %v1059, 0
        %v1111 = vsel %vm781, %v1060, 0
        %v1114 = vsel %vm781, %v1061, 0
        %v1117 = vsel %vm781, %v1062, 0
        %v1120 = vsel %vm781, %v1063, 0
        %v1123 = vsel %vm781, %v1064, 0
        %v1126 = vsel %vm781, %v1065, 0
        %v1129 = vsel %vm781, %v1066, 0
        %v1132 = vsel %vm781, %v1067, 0
        %v1135 = vsel %vm781, %v1068, 0
        %v1138 = vsel %vm781, %v1069, 0
        %v1141 = vsel %vm781, %v1070, 0
        %1143 = vmatprep.subr.bf16.mxu0 0
        %1144 = vmatpush1.bf16.msra.mxu0 0
        %1145 = vmatprep.subr.bf16.mxu0 0
        %1146 = vmatpush1.bf16.msra.mxu0 0
        %1147 = vmatprep.subr.bf16.mxu0 0
        %1148 = vmatpush1.bf16.msra.mxu0 0
        %1149 = vmatprep.subr.bf16.mxu0 0
        %1150 = vmatpush1.bf16.msra.mxu0 0
        %1151 = vmatprep.subr.bf16.mxu0 0
        %1152 = vmatpush1.bf16.msra.mxu0 %v1090
        %1153 = vmatprep.subr.bf16.mxu0 0
        %1154 = vmatpush1.bf16.msra.mxu0 %v1089
        %1155 = vmatprep.subr.bf16.mxu0 0
        %1156 = vmatpush1.bf16.msra.mxu0 %v1088
        %1157 = vmatprep.subr.bf16.mxu0 0
        %1158 = vmatpush1.bf16.msra.mxu0 %v1087
        %1159 = vmatprep.subr.bf16.mxu0 0
        %1160 = vmatpush2.bf16.msra.mxu0 0
        %1161 = vmatprep.subr.bf16.mxu0 0
        %1162 = vmatpush2.bf16.msra.mxu0 0
        %1163 = vmatprep.subr.bf16.mxu0 0
        %1164 = vmatpush2.bf16.msra.mxu0 0
        %1165 = vmatprep.subr.bf16.mxu0 0
        %1166 = vmatpush2.bf16.msra.mxu0 0
        %1167 = vmatprep.subr.bf16.mxu0 0
        %1168 = vmatpush2.bf16.msra.mxu0 0
        %1169 = vmatprep.subr.bf16.mxu0 0
        %1170 = vmatpush2.bf16.msra.mxu0 0
        %1171 = vmatprep.subr.bf16.mxu0 0
        %1172 = vmatpush2.bf16.msra.mxu0 0
        %1173 = vmatprep.subr.bf16.mxu0 0
        %1174 = vmatpush2.bf16.msra.mxu0 0
        %1175 = vmatprep.mubr.bf16.mxu0 0
        %1176 = vmatmul.mubr.bf16.gmra.mxu0 %v1096
        %v1177 = vpop.f32.mrf.mxu0
        %v1178 = vadd.f32 %v865, %v1177
        %v1179 = vpop.f32.mrf.mxu0
        %v1180 = vpop.f32.mrf.mxu0
        %v1181 = vadd.f32 %v868, %v1180
        %v1182 = vpop.f32.mrf.mxu0
        %1183 = vmatprep.mubr.bf16.mxu0 0
        %1184 = vmatmul.mubr.bf16.gmra.mxu0 %v1099
        %v1185 = vpop.f32.mrf.mxu0
        %v1186 = vadd.f32 %v873, %v1185
        %v1187 = vpop.f32.mrf.mxu0
        %v1188 = vpop.f32.mrf.mxu0
        %v1189 = vadd.f32 %v876, %v1188
        %v1190 = vpop.f32.mrf.mxu0
        %1191 = vmatprep.mubr.bf16.mxu0 0
        %1192 = vmatmul.mubr.bf16.gmra.mxu0 %v1102
        %v1193 = vpop.f32.mrf.mxu0
        %v1194 = vadd.f32 %v881, %v1193
        %v1195 = vpop.f32.mrf.mxu0
        %v1196 = vpop.f32.mrf.mxu0
        %v1197 = vadd.f32 %v884, %v1196
        %v1198 = vpop.f32.mrf.mxu0
        %1199 = vmatprep.mubr.bf16.mxu0 0
        %1200 = vmatmul.mubr.bf16.gmra.mxu0 %v1105
        %v1201 = vpop.f32.mrf.mxu0
        %v1202 = vadd.f32 %v889, %v1201
        %v1203 = vpop.f32.mrf.mxu0
        %v1204 = vpop.f32.mrf.mxu0
        %v1205 = vadd.f32 %v892, %v1204
        %v1206 = vpop.f32.mrf.mxu0
        %1207 = vmatprep.mubr.bf16.mxu0 0
        %1208 = vmatmul.mubr.bf16.gmra.mxu0 %v1108
        %v1209 = vpop.f32.mrf.mxu0
        %v1210 = vadd.f32 %v897, %v1209
        %v1211 = vpop.f32.mrf.mxu0
        %v1212 = vpop.f32.mrf.mxu0
        %v1213 = vadd.f32 %v900, %v1212
        %v1214 = vpop.f32.mrf.mxu0
        %1215 = vmatprep.mubr.bf16.mxu0 0
        %1216 = vmatmul.mubr.bf16.gmra.mxu0 %v1111
        %v1217 = vpop.f32.mrf.mxu0
        %v1218 = vadd.f32 %v905, %v1217
        %v1219 = vpop.f32.mrf.mxu0
        %v1220 = vpop.f32.mrf.mxu0
        %v1221 = vadd.f32 %v908, %v1220
        %v1222 = vpop.f32.mrf.mxu0
        %1223 = vmatprep.mubr.bf16.mxu0 0
        %1224 = vmatmul.mubr.bf16.gmra.mxu0 %v1114
        %v1225 = vpop.f32.mrf.mxu0
        %v1226 = vadd.f32 %v913, %v1225
        %v1227 = vpop.f32.mrf.mxu0
        %v1228 = vpop.f32.mrf.mxu0
        %v1229 = vadd.f32 %v916, %v1228
        %v1230 = vpop.f32.mrf.mxu0
        %1231 = vmatprep.mubr.bf16.mxu0 0
        %1232 = vmatmul.mubr.bf16.gmra.mxu0 %v1117
        %v1233 = vpop.f32.mrf.mxu0
        %v1234 = vadd.f32 %v921, %v1233
        %v1235 = vpop.f32.mrf.mxu0
        %v1236 = vpop.f32.mrf.mxu0
        %v1237 = vadd.f32 %v924, %v1236
        %v1238 = vpop.f32.mrf.mxu0
        %1239 = vmatprep.mubr.bf16.mxu0 0
        %1240 = vmatmul.mubr.bf16.gmra.mxu0 %v1120
        %v1241 = vpop.f32.mrf.mxu0
        %v1242 = vadd.f32 %v929, %v1241
        %v1243 = vpop.f32.mrf.mxu0
        %v1244 = vpop.f32.mrf.mxu0
        %v1245 = vadd.f32 %v932, %v1244
        %v1246 = vpop.f32.mrf.mxu0
        %1247 = vmatprep.mubr.bf16.mxu0 0
        %1248 = vmatmul.mubr.bf16.gmra.mxu0 %v1123
        %v1249 = vpop.f32.mrf.mxu0
        %v1250 = vadd.f32 %v937, %v1249
        %v1251 = vpop.f32.mrf.mxu0
        %v1252 = vpop.f32.mrf.mxu0
        %v1253 = vadd.f32 %v940, %v1252
        %v1254 = vpop.f32.mrf.mxu0
        %1255 = vmatprep.mubr.bf16.mxu0 0
        %1256 = vmatmul.mubr.bf16.gmra.mxu0 %v1126
        %v1257 = vpop.f32.mrf.mxu0
        %v1258 = vadd.f32 %v945, %v1257
        %v1259 = vpop.f32.mrf.mxu0
        %v1260 = vpop.f32.mrf.mxu0
        %v1261 = vadd.f32 %v948, %v1260
        %v1262 = vpop.f32.mrf.mxu0
        %1263 = vmatprep.mubr.bf16.mxu0 0
        %1264 = vmatmul.mubr.bf16.gmra.mxu0 %v1129
        %v1265 = vpop.f32.mrf.mxu0
        %v1266 = vadd.f32 %v953, %v1265
        %v1267 = vpop.f32.mrf.mxu0
        %v1268 = vpop.f32.mrf.mxu0
        %v1269 = vadd.f32 %v956, %v1268
        %v1270 = vpop.f32.mrf.mxu0
        %1271 = vmatprep.mubr.bf16.mxu0 0
        %1272 = vmatmul.mubr.bf16.gmra.mxu0 %v1132
        %v1273 = vpop.f32.mrf.mxu0
        %v1274 = vadd.f32 %v961, %v1273
        %v1275 = vpop.f32.mrf.mxu0
        %v1276 = vpop.f32.mrf.mxu0
        %v1277 = vadd.f32 %v964, %v1276
        %v1278 = vpop.f32.mrf.mxu0
        %1279 = vmatprep.mubr.bf16.mxu0 0
        %1280 = vmatmul.mubr.bf16.gmra.mxu0 %v1135
        %v1281 = vpop.f32.mrf.mxu0
        %v1282 = vadd.f32 %v969, %v1281
        %v1283 = vpop.f32.mrf.mxu0
        %v1284 = vpop.f32.mrf.mxu0
        %v1285 = vadd.f32 %v972, %v1284
        %v1286 = vpop.f32.mrf.mxu0
        %1287 = vmatprep.mubr.bf16.mxu0 0
        %1288 = vmatmul.mubr.bf16.gmra.mxu0 %v1138
        %v1289 = vpop.f32.mrf.mxu0
        %v1290 = vadd.f32 %v977, %v1289
        %v1291 = vpop.f32.mrf.mxu0
        %v1292 = vpop.f32.mrf.mxu0
        %v1293 = vadd.f32 %v980, %v1292
        %v1294 = vpop.f32.mrf.mxu0
        %1295 = vmatprep.mubr.bf16.mxu0 0
        %1296 = vmatmul.mubr.bf16.gmra.mxu0 %v1141
        %v1297 = vpop.f32.mrf.mxu0
        %v1298 = vadd.f32 %v985, %v1297
        %v1299 = vpop.f32.mrf.mxu0
        %v1300 = vpop.f32.mrf.mxu0
        %v1301 = vadd.f32 %v988, %v1300
        %v1302 = vpop.f32.mrf.mxu0
        %1303 = vdwg.mxu0
        %v1304 = vld [vmem:[%s253] sm:$0xe]
        %v1305 = vld [vmem:[%s253 + $0xc] sm:$0xe]
        %v1306 = vld [vmem:[%s253 + $0x18] sm:$0xe]
        %v1307 = vld [vmem:[%s253 + $0x24] sm:$0xe]
        %v1308 = vld [vmem:[%s253 + $0x30] sm:$0xe]
        %v1309 = vld [vmem:[%s253 + $0x3c] sm:$0xe]
        %v1310 = vld [vmem:[%s253 + $0x48] sm:$0xe]
        %v1311 = vld [vmem:[%s253 + $0x54] sm:$0xe]
        %v1312 = vld [vmem:[%s253 + $0x60] sm:$0xe]
        %v1313 = vld [vmem:[%s253 + $0x6c] sm:$0xe]
        %v1314 = vld [vmem:[%s253 + $0x78] sm:$0xe]
        %v1315 = vld [vmem:[%s253 + $0x84] sm:$0xe]
        %v1316 = vld [vmem:[%s253 + $0x90] sm:$0xe]
        %v1317 = vld [vmem:[%s253 + $0x9c] sm:$0xe]
        %v1318 = vld [vmem:[%s253 + $0xa8] sm:$0xe]
        %v1319 = vld [vmem:[%s253 + $0xb4] sm:$0xe]
        %vm1352 = vcmask 1042432
        %vm1353 = vcmask 1046532
        %vm1354 = vmor %vm1352, %vm1353
        %v1355 = vrot.slane %v1304, 5
        %v1356 = vrot.slane %v1355, 4
        %v1357 = vrot.slane %v258, 5
        %v1358 = vsel %vm1354, %v1356, %v1357
        %v1359 = vrot.slane %v1357, 4
        %v1360 = vrot.slane %v297, 5
        %v1361 = vsel %vm1354, %v1359, %v1360
        %v1362 = vrot.slane %v1305, 5
        %v1363 = vrot.slane %v1362, 4
        %v1364 = vrot.slane %v260, 5
        %v1365 = vsel %vm1354, %v1363, %v1364
        %v1366 = vrot.slane %v1364, 4
        %v1367 = vrot.slane %v298, 5
        %v1368 = vsel %vm1354, %v1366, %v1367
        %v1369 = vrot.slane %v1306, 5
        %v1370 = vrot.slane %v1369, 4
        %v1371 = vrot.slane %v262, 5
        %v1372 = vsel %vm1354, %v1370, %v1371
        %v1373 = vrot.slane %v1371, 4
        %v1374 = vrot.slane %v299, 5
        %v1375 = vsel %vm1354, %v1373, %v1374
        %v1376 = vrot.slane %v1307, 5
        %v1377 = vrot.slane %v1376, 4
        %v1378 = vrot.slane %v264, 5
        %v1379 = vsel %vm1354, %v1377, %v1378
        %v1380 = vrot.slane %v1378, 4
        %v1381 = vrot.slane %v300, 5
        %v1382 = vsel %vm1354, %v1380, %v1381
        %v1383 = vrot.slane %v1308, 5
        %v1384 = vrot.slane %v1383, 4
        %v1385 = vrot.slane %v266, 5
        %v1386 = vsel %vm1354, %v1384, %v1385
        %v1387 = vrot.slane %v1385, 4
        %v1388 = vrot.slane %v301, 5
        %v1389 = vsel %vm1354, %v1387, %v1388
        %v1390 = vrot.slane %v1309, 5
        %v1391 = vrot.slane %v1390, 4
        %v1392 = vrot.slane %v268, 5
        %v1393 = vsel %vm1354, %v1391, %v1392
        %v1394 = vrot.slane %v1392, 4
        %v1395 = vrot.slane %v302, 5
        %v1396 = vsel %vm1354, %v1394, %v1395
        %v1397 = vrot.slane %v1310, 5
        %v1398 = vrot.slane %v1397, 4
        %v1399 = vrot.slane %v270, 5
        %v1400 = vsel %vm1354, %v1398, %v1399
        %v1401 = vrot.slane %v1399, 4
        %v1402 = vrot.slane %v303, 5
        %v1403 = vsel %vm1354, %v1401, %v1402
        %v1404 = vrot.slane %v1311, 5
        %v1405 = vrot.slane %v1404, 4
        %v1406 = vrot.slane %v272, 5
        %v1407 = vsel %vm1354, %v1405, %v1406
        %v1408 = vrot.slane %v1406, 4
        %v1409 = vrot.slane %v304, 5
        %v1410 = vsel %vm1354, %v1408, %v1409
        %v1411 = vrot.slane %v1312, 5
        %v1412 = vrot.slane %v1411, 4
        %v1413 = vrot.slane %v274, 5
        %v1414 = vsel %vm1354, %v1412, %v1413
        %v1415 = vrot.slane %v1413, 4
        %v1416 = vrot.slane %v305, 5
        %v1417 = vsel %vm1354, %v1415, %v1416
        %v1418 = vrot.slane %v1313, 5
        %v1419 = vrot.slane %v1418, 4
        %v1420 = vrot.slane %v276, 5
        %v1421 = vsel %vm1354, %v1419, %v1420
        %v1422 = vrot.slane %v1420, 4
        %v1423 = vrot.slane %v306, 5
        %v1424 = vsel %vm1354, %v1422, %v1423
        %v1425 = vrot.slane %v1314, 5
        %v1426 = vrot.slane %v1425, 4
        %v1427 = vrot.slane %v278, 5
        %v1428 = vsel %vm1354, %v1426, %v1427
        %v1429 = vrot.slane %v1427, 4
        %v1430 = vrot.slane %v307, 5
        %v1431 = vsel %vm1354, %v1429, %v1430
        %v1432 = vrot.slane %v1315, 5
        %v1433 = vrot.slane %v1432, 4
        %v1434 = vrot.slane %v280, 5
        %v1435 = vsel %vm1354, %v1433, %v1434
        %v1436 = vrot.slane %v1434, 4
        %v1437 = vrot.slane %v308, 5
        %v1438 = vsel %vm1354, %v1436, %v1437
        %v1439 = vrot.slane %v1316, 5
        %v1440 = vrot.slane %v1439, 4
        %v1441 = vrot.slane %v282, 5
        %v1442 = vsel %vm1354, %v1440, %v1441
        %v1443 = vrot.slane %v1441, 4
        %v1444 = vrot.slane %v309, 5
        %v1445 = vsel %vm1354, %v1443, %v1444
        %v1446 = vrot.slane %v1317, 5
        %v1447 = vrot.slane %v1446, 4
        %v1448 = vrot.slane %v284, 5
        %v1449 = vsel %vm1354, %v1447, %v1448
        %v1450 = vrot.slane %v1448, 4
        %v1451 = vrot.slane %v310, 5
        %v1452 = vsel %vm1354, %v1450, %v1451
        %v1453 = vrot.slane %v1318, 5
        %v1454 = vrot.slane %v1453, 4
        %v1455 = vrot.slane %v286, 5
        %v1456 = vsel %vm1354, %v1454, %v1455
        %v1457 = vrot.slane %v1455, 4
        %v1458 = vrot.slane %v311, 5
        %v1459 = vsel %vm1354, %v1457, %v1458
        %v1460 = vrot.slane %v1319, 5
        %v1461 = vrot.slane %v1460, 4
        %v1462 = vrot.slane %v288, 5
        %v1463 = vsel %vm1354, %v1461, %v1462
        %v1464 = vrot.slane %v1462, 4
        %v1465 = vrot.slane %v312, 5
        %v1466 = vsel %vm1354, %v1464, %v1465
        %s1467 = scalar_lea.vmem %s1, 64
        %v1468 = vld [vmem:[%s1467] sm:$0xf]
        %v1469 = vld [vmem:[%s1467 + $0x4] sm:$0xf]
        %v1470 = vld [vmem:[%s1467 + $0x8] sm:$0xf]
        %v1471 = vld [vmem:[%s1467 + $0xc] sm:$0xf]
        %v1472 = vld [vmem:[%s1467 + $0x10] sm:$0xf]
        %v1473 = vld [vmem:[%s1467 + $0x14] sm:$0xf]
        %v1474 = vld [vmem:[%s1467 + $0x18] sm:$0xf]
        %v1475 = vld [vmem:[%s1467 + $0x1c] sm:$0xf]
        %v1476 = vunpack.c.l.b16 %v1358
        %v1477 = vunpack.c.l.b16 %v1361
        %v1478 = vunpack.c.l.b16 %v1365
        %v1479 = vunpack.c.l.b16 %v1368
        %v1480 = vunpack.c.l.b16 %v1372
        %v1481 = vunpack.c.l.b16 %v1375
        %v1482 = vunpack.c.l.b16 %v1379
        %v1483 = vunpack.c.l.b16 %v1382
        %v1484 = vunpack.c.l.b16 %v1386
        %v1485 = vunpack.c.l.b16 %v1389
        %v1486 = vunpack.c.l.b16 %v1393
        %v1487 = vunpack.c.l.b16 %v1396
        %v1488 = vunpack.c.l.b16 %v1400
        %v1489 = vunpack.c.l.b16 %v1403
        %v1490 = vunpack.c.l.b16 %v1407
        %v1491 = vunpack.c.l.b16 %v1410
        %v1492 = vunpack.c.l.b16 %v1414
        %v1493 = vunpack.c.l.b16 %v1417
        %v1494 = vunpack.c.l.b16 %v1421
        %v1495 = vunpack.c.l.b16 %v1424
        %v1496 = vunpack.c.l.b16 %v1428
        %v1497 = vunpack.c.l.b16 %v1431
        %v1498 = vunpack.c.l.b16 %v1435
        %v1499 = vunpack.c.l.b16 %v1438
        %v1500 = vunpack.c.l.b16 %v1442
        %v1501 = vunpack.c.l.b16 %v1445
        %v1502 = vunpack.c.l.b16 %v1449
        %v1503 = vunpack.c.l.b16 %v1452
        %v1504 = vunpack.c.l.b16 %v1456
        %v1505 = vunpack.c.l.b16 %v1459
        %v1506 = vunpack.c.l.b16 %v1463
        %v1507 = vunpack.c.l.b16 %v1466
        %v1508 = vpack.c.b16 %v1477, %v1476
        %v1509 = vpack.c.b16 %v1479, %v1478
        %v1510 = vpack.c.b16 %v1481, %v1480
        %v1511 = vpack.c.b16 %v1483, %v1482
        %v1512 = vpack.c.b16 %v1485, %v1484
        %v1513 = vpack.c.b16 %v1487, %v1486
        %v1514 = vpack.c.b16 %v1489, %v1488
        %v1515 = vpack.c.b16 %v1491, %v1490
        %v1516 = vpack.c.b16 %v1493, %v1492
        %v1517 = vpack.c.b16 %v1495, %v1494
        %v1518 = vpack.c.b16 %v1497, %v1496
        %v1519 = vpack.c.b16 %v1499, %v1498
        %v1520 = vpack.c.b16 %v1501, %v1500
        %v1521 = vpack.c.b16 %v1503, %v1502
        %v1522 = vpack.c.b16 %v1505, %v1504
        %v1523 = vpack.c.b16 %v1507, %v1506
        %v1532 = vunpack.c.l.b16 %v1468
        %v1533 = vunpack.c.l.b16 %v1469
        %v1534 = vunpack.c.l.b16 %v1470
        %v1535 = vunpack.c.l.b16 %v1471
        %v1536 = vunpack.c.l.b16 %v1472
        %v1537 = vunpack.c.l.b16 %v1473
        %v1538 = vunpack.c.l.b16 %v1474
        %v1539 = vunpack.c.l.b16 %v1475
        %v1540 = vpack.c.b16 %v1533, %v1532
        %v1541 = vpack.c.b16 %v1535, %v1534
        %v1542 = vpack.c.b16 %v1537, %v1536
        %v1543 = vpack.c.b16 %v1539, %v1538
        %v1549 = vsel %vm781, %v1508, 0
        %v1552 = vsel %vm781, %v1509, 0
        %v1555 = vsel %vm781, %v1510, 0
        %v1558 = vsel %vm781, %v1511, 0
        %v1561 = vsel %vm781, %v1512, 0
        %v1564 = vsel %vm781, %v1513, 0
        %v1567 = vsel %vm781, %v1514, 0
        %v1570 = vsel %vm781, %v1515, 0
        %v1573 = vsel %vm781, %v1516, 0
        %v1576 = vsel %vm781, %v1517, 0
        %v1579 = vsel %vm781, %v1518, 0
        %v1582 = vsel %vm781, %v1519, 0
        %v1585 = vsel %vm781, %v1520, 0
        %v1588 = vsel %vm781, %v1521, 0
        %v1591 = vsel %vm781, %v1522, 0
        %v1594 = vsel %vm781, %v1523, 0
        %1596 = vmatprep.subr.bf16.mxu0 0
        %1597 = vmatpush1.bf16.msra.mxu0 0
        %1598 = vmatprep.subr.bf16.mxu0 0
        %1599 = vmatpush1.bf16.msra.mxu0 0
        %1600 = vmatprep.subr.bf16.mxu0 0
        %1601 = vmatpush1.bf16.msra.mxu0 0
        %1602 = vmatprep.subr.bf16.mxu0 0
        %1603 = vmatpush1.bf16.msra.mxu0 0
        %1604 = vmatprep.subr.bf16.mxu0 0
        %1605 = vmatpush1.bf16.msra.mxu0 %v1543
        %1606 = vmatprep.subr.bf16.mxu0 0
        %1607 = vmatpush1.bf16.msra.mxu0 %v1542
        %1608 = vmatprep.subr.bf16.mxu0 0
        %1609 = vmatpush1.bf16.msra.mxu0 %v1541
        %1610 = vmatprep.subr.bf16.mxu0 0
        %1611 = vmatpush1.bf16.msra.mxu0 %v1540
        %1612 = vmatprep.subr.bf16.mxu0 0
        %1613 = vmatpush2.bf16.msra.mxu0 0
        %1614 = vmatprep.subr.bf16.mxu0 0
        %1615 = vmatpush2.bf16.msra.mxu0 0
        %1616 = vmatprep.subr.bf16.mxu0 0
        %1617 = vmatpush2.bf16.msra.mxu0 0
        %1618 = vmatprep.subr.bf16.mxu0 0
        %1619 = vmatpush2.bf16.msra.mxu0 0
        %1620 = vmatprep.subr.bf16.mxu0 0
        %1621 = vmatpush2.bf16.msra.mxu0 0
        %1622 = vmatprep.subr.bf16.mxu0 0
        %1623 = vmatpush2.bf16.msra.mxu0 0
        %1624 = vmatprep.subr.bf16.mxu0 0
        %1625 = vmatpush2.bf16.msra.mxu0 0
        %1626 = vmatprep.subr.bf16.mxu0 0
        %1627 = vmatpush2.bf16.msra.mxu0 0
        %1628 = vmatprep.mubr.bf16.mxu0 0
        %1629 = vmatmul.mubr.bf16.gmra.mxu0 %v1549
        %v1630 = vpop.f32.mrf.mxu0
        %v1631 = vadd.f32 0.0, %v1630
        %v1632 = vpop.f32.mrf.mxu0
        %v1633 = vpop.f32.mrf.mxu0
        %v1634 = vadd.f32 0.0, %v1633
        %v1635 = vpop.f32.mrf.mxu0
        %1636 = vmatprep.mubr.bf16.mxu0 0
        %1637 = vmatmul.mubr.bf16.gmra.mxu0 %v1552
        %v1638 = vpop.f32.mrf.mxu0
        %v1639 = vadd.f32 0.0, %v1638
        %v1640 = vpop.f32.mrf.mxu0
        %v1641 = vpop.f32.mrf.mxu0
        %v1642 = vadd.f32 0.0, %v1641
        %v1643 = vpop.f32.mrf.mxu0
        %1644 = vmatprep.mubr.bf16.mxu0 0
        %1645 = vmatmul.mubr.bf16.gmra.mxu0 %v1555
        %v1646 = vpop.f32.mrf.mxu0
        %v1647 = vadd.f32 0.0, %v1646
        %v1648 = vpop.f32.mrf.mxu0
        %v1649 = vpop.f32.mrf.mxu0
        %v1650 = vadd.f32 0.0, %v1649
        %v1651 = vpop.f32.mrf.mxu0
        %1652 = vmatprep.mubr.bf16.mxu0 0
        %1653 = vmatmul.mubr.bf16.gmra.mxu0 %v1558
        %v1654 = vpop.f32.mrf.mxu0
        %v1655 = vadd.f32 0.0, %v1654
        %v1656 = vpop.f32.mrf.mxu0
        %v1657 = vpop.f32.mrf.mxu0
        %v1658 = vadd.f32 0.0, %v1657
        %v1659 = vpop.f32.mrf.mxu0
        %1660 = vmatprep.mubr.bf16.mxu0 0
        %1661 = vmatmul.mubr.bf16.gmra.mxu0 %v1561
        %v1662 = vpop.f32.mrf.mxu0
        %v1663 = vadd.f32 0.0, %v1662
        %v1664 = vpop.f32.mrf.mxu0
        %v1665 = vpop.f32.mrf.mxu0
        %v1666 = vadd.f32 0.0, %v1665
        %v1667 = vpop.f32.mrf.mxu0
        %1668 = vmatprep.mubr.bf16.mxu0 0
        %1669 = vmatmul.mubr.bf16.gmra.mxu0 %v1564
        %v1670 = vpop.f32.mrf.mxu0
        %v1671 = vadd.f32 0.0, %v1670
        %v1672 = vpop.f32.mrf.mxu0
        %v1673 = vpop.f32.mrf.mxu0
        %v1674 = vadd.f32 0.0, %v1673
        %v1675 = vpop.f32.mrf.mxu0
        %1676 = vmatprep.mubr.bf16.mxu0 0
        %1677 = vmatmul.mubr.bf16.gmra.mxu0 %v1567
        %v1678 = vpop.f32.mrf.mxu0
        %v1679 = vadd.f32 0.0, %v1678
        %v1680 = vpop.f32.mrf.mxu0
        %v1681 = vpop.f32.mrf.mxu0
        %v1682 = vadd.f32 0.0, %v1681
        %v1683 = vpop.f32.mrf.mxu0
        %1684 = vmatprep.mubr.bf16.mxu0 0
        %1685 = vmatmul.mubr.bf16.gmra.mxu0 %v1570
        %v1686 = vpop.f32.mrf.mxu0
        %v1687 = vadd.f32 0.0, %v1686
        %v1688 = vpop.f32.mrf.mxu0
        %v1689 = vpop.f32.mrf.mxu0
        %v1690 = vadd.f32 0.0, %v1689
        %v1691 = vpop.f32.mrf.mxu0
        %1692 = vmatprep.mubr.bf16.mxu0 0
        %1693 = vmatmul.mubr.bf16.gmra.mxu0 %v1573
        %v1694 = vpop.f32.mrf.mxu0
        %v1695 = vadd.f32 0.0, %v1694
        %v1696 = vpop.f32.mrf.mxu0
        %v1697 = vpop.f32.mrf.mxu0
        %v1698 = vadd.f32 0.0, %v1697
        %v1699 = vpop.f32.mrf.mxu0
        %1700 = vmatprep.mubr.bf16.mxu0 0
        %1701 = vmatmul.mubr.bf16.gmra.mxu0 %v1576
        %v1702 = vpop.f32.mrf.mxu0
        %v1703 = vadd.f32 0.0, %v1702
        %v1704 = vpop.f32.mrf.mxu0
        %v1705 = vpop.f32.mrf.mxu0
        %v1706 = vadd.f32 0.0, %v1705
        %v1707 = vpop.f32.mrf.mxu0
        %1708 = vmatprep.mubr.bf16.mxu0 0
        %1709 = vmatmul.mubr.bf16.gmra.mxu0 %v1579
        %v1710 = vpop.f32.mrf.mxu0
        %v1711 = vadd.f32 0.0, %v1710
        %v1712 = vpop.f32.mrf.mxu0
        %v1713 = vpop.f32.mrf.mxu0
        %v1714 = vadd.f32 0.0, %v1713
        %v1715 = vpop.f32.mrf.mxu0
        %1716 = vmatprep.mubr.bf16.mxu0 0
        %1717 = vmatmul.mubr.bf16.gmra.mxu0 %v1582
        %v1718 = vpop.f32.mrf.mxu0
        %v1719 = vadd.f32 0.0, %v1718
        %v1720 = vpop.f32.mrf.mxu0
        %v1721 = vpop.f32.mrf.mxu0
        %v1722 = vadd.f32 0.0, %v1721
        %v1723 = vpop.f32.mrf.mxu0
        %1724 = vmatprep.mubr.bf16.mxu0 0
        %1725 = vmatmul.mubr.bf16.gmra.mxu0 %v1585
        %v1726 = vpop.f32.mrf.mxu0
        %v1727 = vadd.f32 0.0, %v1726
        %v1728 = vpop.f32.mrf.mxu0
        %v1729 = vpop.f32.mrf.mxu0
        %v1730 = vadd.f32 0.0, %v1729
        %v1731 = vpop.f32.mrf.mxu0
        %1732 = vmatprep.mubr.bf16.mxu0 0
        %1733 = vmatmul.mubr.bf16.gmra.mxu0 %v1588
        %v1734 = vpop.f32.mrf.mxu0
        %v1735 = vadd.f32 0.0, %v1734
        %v1736 = vpop.f32.mrf.mxu0
        %v1737 = vpop.f32.mrf.mxu0
        %v1738 = vadd.f32 0.0, %v1737
        %v1739 = vpop.f32.mrf.mxu0
        %1740 = vmatprep.mubr.bf16.mxu0 0
        %1741 = vmatmul.mubr.bf16.gmra.mxu0 %v1591
        %v1742 = vpop.f32.mrf.mxu0
        %v1743 = vadd.f32 0.0, %v1742
        %v1744 = vpop.f32.mrf.mxu0
        %v1745 = vpop.f32.mrf.mxu0
        %v1746 = vadd.f32 0.0, %v1745
        %v1747 = vpop.f32.mrf.mxu0
        %1748 = vmatprep.mubr.bf16.mxu0 0
        %1749 = vmatmul.mubr.bf16.gmra.mxu0 %v1594
        %v1750 = vpop.f32.mrf.mxu0
        %v1751 = vadd.f32 0.0, %v1750
        %v1752 = vpop.f32.mrf.mxu0
        %v1753 = vpop.f32.mrf.mxu0
        %v1754 = vadd.f32 0.0, %v1753
        %v1755 = vpop.f32.mrf.mxu0
        %1756 = vdwg.mxu0
        %v1757 = vadd.f32 %v1178, %v1631
        %v1758 = vadd.f32 %v1181, %v1634
        %v1759 = vadd.f32 %v1186, %v1639
        %v1760 = vadd.f32 %v1189, %v1642
        %v1761 = vadd.f32 %v1194, %v1647
        %v1762 = vadd.f32 %v1197, %v1650
        %v1763 = vadd.f32 %v1202, %v1655
        %v1764 = vadd.f32 %v1205, %v1658
        %v1765 = vadd.f32 %v1210, %v1663
        %v1766 = vadd.f32 %v1213, %v1666
        %v1767 = vadd.f32 %v1218, %v1671
        %v1768 = vadd.f32 %v1221, %v1674
        %v1769 = vadd.f32 %v1226, %v1679
        %v1770 = vadd.f32 %v1229, %v1682
        %v1771 = vadd.f32 %v1234, %v1687
        %v1772 = vadd.f32 %v1237, %v1690
        %v1773 = vadd.f32 %v1242, %v1695
        %v1774 = vadd.f32 %v1245, %v1698
        %v1775 = vadd.f32 %v1250, %v1703
        %v1776 = vadd.f32 %v1253, %v1706
        %v1777 = vadd.f32 %v1258, %v1711
        %v1778 = vadd.f32 %v1261, %v1714
        %v1779 = vadd.f32 %v1266, %v1719
        %v1780 = vadd.f32 %v1269, %v1722
        %v1781 = vadd.f32 %v1274, %v1727
        %v1782 = vadd.f32 %v1277, %v1730
        %v1783 = vadd.f32 %v1282, %v1735
        %v1784 = vadd.f32 %v1285, %v1738
        %v1785 = vadd.f32 %v1290, %v1743
        %v1786 = vadd.f32 %v1293, %v1746
        %v1787 = vadd.f32 %v1298, %v1751
        %v1788 = vadd.f32 %v1301, %v1754
        %v1789 = vld [vmem:[%s2] sm:$0x1]
        %v1791 = vlaneseq
        %v1792 = vshrl.u32 %v1791, 7
        %v1793 = vsub.s32 0, %v1792
        %v1794 = vrot.slane %v1789, %v1793
        %v1796 = vadd.f32 %v1757, %v1794
        %v1797 = vadd.f32 %v1758, %v1794
        %v1798 = vadd.f32 %v1759, %v1794
        %v1799 = vadd.f32 %v1760, %v1794
        %v1800 = vadd.f32 %v1761, %v1794
        %v1801 = vadd.f32 %v1762, %v1794
        %v1802 = vadd.f32 %v1763, %v1794
        %v1803 = vadd.f32 %v1764, %v1794
        %v1804 = vadd.f32 %v1765, %v1794
        %v1805 = vadd.f32 %v1766, %v1794
        %v1806 = vadd.f32 %v1767, %v1794
        %v1807 = vadd.f32 %v1768, %v1794
        %v1808 = vadd.f32 %v1769, %v1794
        %v1809 = vadd.f32 %v1770, %v1794
        %v1810 = vadd.f32 %v1771, %v1794
        %v1811 = vadd.f32 %v1772, %v1794
        %v1812 = vadd.f32 %v1773, %v1794
        %v1813 = vadd.f32 %v1774, %v1794
        %v1814 = vadd.f32 %v1775, %v1794
        %v1815 = vadd.f32 %v1776, %v1794
        %v1816 = vadd.f32 %v1777, %v1794
        %v1817 = vadd.f32 %v1778, %v1794
        %v1818 = vadd.f32 %v1779, %v1794
        %v1819 = vadd.f32 %v1780, %v1794
        %v1820 = vadd.f32 %v1781, %v1794
        %v1821 = vadd.f32 %v1782, %v1794
        %v1822 = vadd.f32 %v1783, %v1794
        %v1823 = vadd.f32 %v1784, %v1794
        %v1824 = vadd.f32 %v1785, %v1794
        %v1825 = vadd.f32 %v1786, %v1794
        %v1826 = vadd.f32 %v1787, %v1794
        %v1827 = vadd.f32 %v1788, %v1794
        %vm1828 = vcmp.ge.f32.partialorder %v1796, 0.0
        %vm1829 = vcmp.ge.f32.partialorder %v1797, 0.0
        %vm1830 = vcmp.ge.f32.partialorder %v1798, 0.0
        %vm1831 = vcmp.ge.f32.partialorder %v1799, 0.0
        %vm1832 = vcmp.ge.f32.partialorder %v1800, 0.0
        %vm1833 = vcmp.ge.f32.partialorder %v1801, 0.0
        %vm1834 = vcmp.ge.f32.partialorder %v1802, 0.0
        %vm1835 = vcmp.ge.f32.partialorder %v1803, 0.0
        %vm1836 = vcmp.ge.f32.partialorder %v1804, 0.0
        %vm1837 = vcmp.ge.f32.partialorder %v1805, 0.0
        %vm1838 = vcmp.ge.f32.partialorder %v1806, 0.0
        %vm1839 = vcmp.ge.f32.partialorder %v1807, 0.0
        %vm1840 = vcmp.ge.f32.partialorder %v1808, 0.0
        %vm1841 = vcmp.ge.f32.partialorder %v1809, 0.0
        %vm1842 = vcmp.ge.f32.partialorder %v1810, 0.0
        %vm1843 = vcmp.ge.f32.partialorder %v1811, 0.0
        %vm1844 = vcmp.ge.f32.partialorder %v1812, 0.0
        %vm1845 = vcmp.ge.f32.partialorder %v1813, 0.0
        %vm1846 = vcmp.ge.f32.partialorder %v1814, 0.0
        %vm1847 = vcmp.ge.f32.partialorder %v1815, 0.0
        %vm1848 = vcmp.ge.f32.partialorder %v1816, 0.0
        %vm1849 = vcmp.ge.f32.partialorder %v1817, 0.0
        %vm1850 = vcmp.ge.f32.partialorder %v1818, 0.0
        %vm1851 = vcmp.ge.f32.partialorder %v1819, 0.0
        %vm1852 = vcmp.ge.f32.partialorder %v1820, 0.0
        %vm1853 = vcmp.ge.f32.partialorder %v1821, 0.0
        %vm1854 = vcmp.ge.f32.partialorder %v1822, 0.0
        %vm1855 = vcmp.ge.f32.partialorder %v1823, 0.0
        %vm1856 = vcmp.ge.f32.partialorder %v1824, 0.0
        %vm1857 = vcmp.ge.f32.partialorder %v1825, 0.0
        %vm1858 = vcmp.ge.f32.partialorder %v1826, 0.0
        %vm1859 = vcmp.ge.f32.partialorder %v1827, 0.0
        %v1860 = vld [vmem:[%s3] sm:$0x1]
        %v1862 = vlaneseq
        %v1863 = vshrl.u32 %v1862, 7
        %v1864 = vsub.s32 0, %v1863
        %v1865 = vrot.slane %v1860, %v1864
        %v1867 = vmul.f32 %v1865, %v1796
        %v1868 = vmul.f32 %v1865, %v1797
        %v1869 = vmul.f32 %v1865, %v1798
        %v1870 = vmul.f32 %v1865, %v1799
        %v1871 = vmul.f32 %v1865, %v1800
        %v1872 = vmul.f32 %v1865, %v1801
        %v1873 = vmul.f32 %v1865, %v1802
        %v1874 = vmul.f32 %v1865, %v1803
        %v1875 = vmul.f32 %v1865, %v1804
        %v1876 = vmul.f32 %v1865, %v1805
        %v1877 = vmul.f32 %v1865, %v1806
        %v1878 = vmul.f32 %v1865, %v1807
        %v1879 = vmul.f32 %v1865, %v1808
        %v1880 = vmul.f32 %v1865, %v1809
        %v1881 = vmul.f32 %v1865, %v1810
        %v1882 = vmul.f32 %v1865, %v1811
        %v1883 = vmul.f32 %v1865, %v1812
        %v1884 = vmul.f32 %v1865, %v1813
        %v1885 = vmul.f32 %v1865, %v1814
        %v1886 = vmul.f32 %v1865, %v1815
        %v1887 = vmul.f32 %v1865, %v1816
        %v1888 = vmul.f32 %v1865, %v1817
        %v1889 = vmul.f32 %v1865, %v1818
        %v1890 = vmul.f32 %v1865, %v1819
        %v1891 = vmul.f32 %v1865, %v1820
        %v1892 = vmul.f32 %v1865, %v1821
        %v1893 = vmul.f32 %v1865, %v1822
        %v1894 = vmul.f32 %v1865, %v1823
        %v1895 = vmul.f32 %v1865, %v1824
        %v1896 = vmul.f32 %v1865, %v1825
        %v1897 = vmul.f32 %v1865, %v1826
        %v1898 = vmul.f32 %v1865, %v1827
        %v1899 = vsel %vm1828, %v1796, %v1867
        %v1900 = vsel %vm1829, %v1797, %v1868
        %v1901 = vsel %vm1830, %v1798, %v1869
        %v1902 = vsel %vm1831, %v1799, %v1870
        %v1903 = vsel %vm1832, %v1800, %v1871
        %v1904 = vsel %vm1833, %v1801, %v1872
        %v1905 = vsel %vm1834, %v1802, %v1873
        %v1906 = vsel %vm1835, %v1803, %v1874
        %v1907 = vsel %vm1836, %v1804, %v1875
        %v1908 = vsel %vm1837, %v1805, %v1876
        %v1909 = vsel %vm1838, %v1806, %v1877
        %v1910 = vsel %vm1839, %v1807, %v1878
        %v1911 = vsel %vm1840, %v1808, %v1879
        %v1912 = vsel %vm1841, %v1809, %v1880
        %v1913 = vsel %vm1842, %v1810, %v1881
        %v1914 = vsel %vm1843, %v1811, %v1882
        %v1915 = vsel %vm1844, %v1812, %v1883
        %v1916 = vsel %vm1845, %v1813, %v1884
        %v1917 = vsel %vm1846, %v1814, %v1885
        %v1918 = vsel %vm1847, %v1815, %v1886
        %v1919 = vsel %vm1848, %v1816, %v1887
        %v1920 = vsel %vm1849, %v1817, %v1888
        %v1921 = vsel %vm1850, %v1818, %v1889
        %v1922 = vsel %vm1851, %v1819, %v1890
        %v1923 = vsel %vm1852, %v1820, %v1891
        %v1924 = vsel %vm1853, %v1821, %v1892
        %v1925 = vsel %vm1854, %v1822, %v1893
        %v1926 = vsel %vm1855, %v1823, %v1894
        %v1927 = vsel %vm1856, %v1824, %v1895
        %v1928 = vsel %vm1857, %v1825, %v1896
        %v1929 = vsel %vm1858, %v1826, %v1897
        %v1930 = vsel %vm1859, %v1827, %v1898
        %v1931 = vpack.c.bf16 %v1900, %v1899
        %v1932 = vpack.c.bf16 %v1902, %v1901
        %v1933 = vpack.c.bf16 %v1904, %v1903
        %v1934 = vpack.c.bf16 %v1906, %v1905
        %v1935 = vpack.c.bf16 %v1908, %v1907
        %v1936 = vpack.c.bf16 %v1910, %v1909
        %v1937 = vpack.c.bf16 %v1912, %v1911
        %v1938 = vpack.c.bf16 %v1914, %v1913
        %v1939 = vpack.c.bf16 %v1916, %v1915
        %v1940 = vpack.c.bf16 %v1918, %v1917
        %v1941 = vpack.c.bf16 %v1920, %v1919
        %v1942 = vpack.c.bf16 %v1922, %v1921
        %v1943 = vpack.c.bf16 %v1924, %v1923
        %v1944 = vpack.c.bf16 %v1926, %v1925
        %v1945 = vpack.c.bf16 %v1928, %v1927
        %v1946 = vpack.c.bf16 %v1930, %v1929
        %v1947 = vld [vmem:[%s4] sm:$0xf]
        %v1948 = vld [vmem:[%s4 + $0x4] sm:$0xf]
        %v1949 = vld [vmem:[%s4 + $0x8] sm:$0xf]
        %v1950 = vld [vmem:[%s4 + $0xc] sm:$0xf]
        %v1951 = vld [vmem:[%s4 + $0x10] sm:$0xf]
        %v1952 = vld [vmem:[%s4 + $0x14] sm:$0xf]
        %v1953 = vld [vmem:[%s4 + $0x18] sm:$0xf]
        %v1954 = vld [vmem:[%s4 + $0x1c] sm:$0xf]
        %v1955 = vld [vmem:[%s4 + $0x20] sm:$0xf]
        %v1956 = vld [vmem:[%s4 + $0x24] sm:$0xf]
        %v1957 = vld [vmem:[%s4 + $0x28] sm:$0xf]
        %v1958 = vld [vmem:[%s4 + $0x2c] sm:$0xf]
        %v1959 = vld [vmem:[%s4 + $0x30] sm:$0xf]
        %v1960 = vld [vmem:[%s4 + $0x34] sm:$0xf]
        %v1961 = vld [vmem:[%s4 + $0x38] sm:$0xf]
        %v1962 = vld [vmem:[%s4 + $0x3c] sm:$0xf]
        %s1963 = scalar_lea.vmem %s4, 64
        %v1964 = vld [vmem:[%s1963] sm:$0xf]
        %v1965 = vld [vmem:[%s1963 + $0x4] sm:$0xf]
        %v1966 = vld [vmem:[%s1963 + $0x8] sm:$0xf]
        %v1967 = vld [vmem:[%s1963 + $0xc] sm:$0xf]
        %v1968 = vld [vmem:[%s1963 + $0x10] sm:$0xf]
        %v1969 = vld [vmem:[%s1963 + $0x14] sm:$0xf]
        %v1970 = vld [vmem:[%s1963 + $0x18] sm:$0xf]
        %v1971 = vld [vmem:[%s1963 + $0x1c] sm:$0xf]
        %v1972 = vld [vmem:[%s1963 + $0x20] sm:$0xf]
        %v1973 = vld [vmem:[%s1963 + $0x24] sm:$0xf]
        %v1974 = vld [vmem:[%s1963 + $0x28] sm:$0xf]
        %v1975 = vld [vmem:[%s1963 + $0x2c] sm:$0xf]
        %v1976 = vld [vmem:[%s1963 + $0x30] sm:$0xf]
        %v1977 = vld [vmem:[%s1963 + $0x34] sm:$0xf]
        %v1978 = vld [vmem:[%s1963 + $0x38] sm:$0xf]
        %v1979 = vld [vmem:[%s1963 + $0x3c] sm:$0xf]
        %v1996 = vunpack.c.l.b16 %v1931
        %v1997 = vunpack.c.l.b16 %v1932
        %v1998 = vunpack.c.l.b16 %v1933
        %v1999 = vunpack.c.l.b16 %v1934
        %v2000 = vunpack.c.l.b16 %v1935
        %v2001 = vunpack.c.l.b16 %v1936
        %v2002 = vunpack.c.l.b16 %v1937
        %v2003 = vunpack.c.l.b16 %v1938
        %v2004 = vunpack.c.l.b16 %v1939
        %v2005 = vunpack.c.l.b16 %v1940
        %v2006 = vunpack.c.l.b16 %v1941
        %v2007 = vunpack.c.l.b16 %v1942
        %v2008 = vunpack.c.l.b16 %v1943
        %v2009 = vunpack.c.l.b16 %v1944
        %v2010 = vunpack.c.l.b16 %v1945
        %v2011 = vunpack.c.l.b16 %v1946
        %v2012 = vrot.slane %v1996, 1
        %vm2013 = vcmask 1041409
        %v2014 = vsel %vm2013, %v1997, %v2012
        %v2015 = vrot.slane %v1998, 7
        %vm2016 = vcmask 1042434
        %v2017 = vsel %vm2016, %v2015, %v2014
        %v2018 = vrot.slane %v1999, 6
        %vm2019 = vcmask 1043459
        %v2020 = vsel %vm2019, %v2018, %v2017
        %v2021 = vrot.slane %v2000, 5
        %vm2022 = vcmask 1044484
        %v2023 = vsel %vm2022, %v2021, %v2020
        %v2024 = vrot.slane %v2001, 4
        %vm2025 = vcmask 1045509
        %v2026 = vsel %vm2025, %v2024, %v2023
        %v2027 = vrot.slane %v2002, 3
        %vm2028 = vcmask 1046534
        %v2029 = vsel %vm2028, %v2027, %v2026
        %v2030 = vrot.slane %v2003, 2
        %vm2031 = vcmask 1047559
        %v2032 = vsel %vm2031, %v2030, %v2029
        %v2033 = vrot.slane %v2004, 1
        %v2034 = vsel %vm2013, %v2005, %v2033
        %v2035 = vrot.slane %v2006, 7
        %v2036 = vsel %vm2016, %v2035, %v2034
        %v2037 = vrot.slane %v2007, 6
        %v2038 = vsel %vm2019, %v2037, %v2036
        %v2039 = vrot.slane %v2008, 5
        %v2040 = vsel %vm2022, %v2039, %v2038
        %v2041 = vrot.slane %v2009, 4
        %v2042 = vsel %vm2025, %v2041, %v2040
        %v2043 = vrot.slane %v2010, 3
        %v2044 = vsel %vm2028, %v2043, %v2042
        %v2045 = vrot.slane %v2011, 2
        %v2046 = vsel %vm2031, %v2045, %v2044
        %v2047 = vpack.c.b16 %v2046, %v2032
        %v2065 = vunpack.c.l.b16 %v1964
        %v2066 = vunpack.c.l.b16 %v1965
        %v2067 = vunpack.c.l.b16 %v1966
        %v2068 = vunpack.c.l.b16 %v1967
        %v2069 = vunpack.c.l.b16 %v1968
        %v2070 = vunpack.c.l.b16 %v1969
        %v2071 = vunpack.c.l.b16 %v1970
        %v2072 = vunpack.c.l.b16 %v1971
        %v2073 = vunpack.c.l.b16 %v1972
        %v2074 = vunpack.c.l.b16 %v1973
        %v2075 = vunpack.c.l.b16 %v1974
        %v2076 = vunpack.c.l.b16 %v1975
        %v2077 = vunpack.c.l.b16 %v1976
        %v2078 = vunpack.c.l.b16 %v1977
        %v2079 = vunpack.c.l.b16 %v1978
        %v2080 = vunpack.c.l.b16 %v1979
        %v2081 = vpack.c.b16 %v2066, %v2065
        %v2082 = vpack.c.b16 %v2068, %v2067
        %v2083 = vpack.c.b16 %v2070, %v2069
        %v2084 = vpack.c.b16 %v2072, %v2071
        %v2085 = vpack.c.b16 %v2074, %v2073
        %v2086 = vpack.c.b16 %v2076, %v2075
        %v2087 = vpack.c.b16 %v2078, %v2077
        %v2088 = vpack.c.b16 %v2080, %v2079
        %2097 = vmatprep.subr.bf16.mxu0 0
        %2098 = vmatpush1.bf16.msra.mxu0 %v2088
        %2099 = vmatprep.subr.bf16.mxu0 0
        %2100 = vmatpush1.bf16.msra.mxu0 %v2087
        %2101 = vmatprep.subr.bf16.mxu0 0
        %2102 = vmatpush1.bf16.msra.mxu0 %v2086
        %2103 = vmatprep.subr.bf16.mxu0 0
        %2104 = vmatpush1.bf16.msra.mxu0 %v2085
        %2105 = vmatprep.subr.bf16.mxu0 0
        %2106 = vmatpush1.bf16.msra.mxu0 %v2084
        %2107 = vmatprep.subr.bf16.mxu0 0
        %2108 = vmatpush1.bf16.msra.mxu0 %v2083
        %2109 = vmatprep.subr.bf16.mxu0 0
        %2110 = vmatpush1.bf16.msra.mxu0 %v2082
        %2111 = vmatprep.subr.bf16.mxu0 0
        %2112 = vmatpush1.bf16.msra.mxu0 %v2081
        %2113 = vmatprep.subr.bf16.mxu0 0
        %2114 = vmatpush2.bf16.msra.mxu0 0
        %2115 = vmatprep.subr.bf16.mxu0 0
        %2116 = vmatpush2.bf16.msra.mxu0 0
        %2117 = vmatprep.subr.bf16.mxu0 0
        %2118 = vmatpush2.bf16.msra.mxu0 0
        %2119 = vmatprep.subr.bf16.mxu0 0
        %2120 = vmatpush2.bf16.msra.mxu0 0
        %2121 = vmatprep.subr.bf16.mxu0 0
        %2122 = vmatpush2.bf16.msra.mxu0 0
        %2123 = vmatprep.subr.bf16.mxu0 0
        %2124 = vmatpush2.bf16.msra.mxu0 0
        %2125 = vmatprep.subr.bf16.mxu0 0
        %2126 = vmatpush2.bf16.msra.mxu0 0
        %2127 = vmatprep.subr.bf16.mxu0 0
        %2128 = vmatpush2.bf16.msra.mxu0 0
        %2129 = vmatprep.mubr.bf16.mxu0 0
        %2130 = vmatmul.mubr.bf16.gmra.mxu0 %v2047
        %v2131 = vpop.f32.mrf.mxu0
        %v2132 = vadd.f32 0.0, %v2131
        %v2133 = vpop.f32.mrf.mxu0
        %v2134 = vpop.f32.mrf.mxu0
        %v2135 = vadd.f32 0.0, %v2134
        %v2136 = vpop.f32.mrf.mxu0
        %2137 = vdwg.mxu0
        %v2138 = vrot.slane %v1997, 7
        %v2139 = vsel %vm2013, %v2138, %v1996
        %v2140 = vrot.slane %v1998, 6
        %v2141 = vsel %vm2016, %v2140, %v2139
        %v2142 = vrot.slane %v1999, 5
        %v2143 = vsel %vm2019, %v2142, %v2141
        %v2144 = vrot.slane %v2000, 4
        %v2145 = vsel %vm2022, %v2144, %v2143
        %v2146 = vrot.slane %v2001, 3
        %v2147 = vsel %vm2025, %v2146, %v2145
        %v2148 = vrot.slane %v2002, 2
        %v2149 = vsel %vm2028, %v2148, %v2147
        %v2150 = vrot.slane %v2003, 1
        %v2151 = vsel %vm2031, %v2150, %v2149
        %v2152 = vrot.slane %v2005, 7
        %v2153 = vsel %vm2013, %v2152, %v2004
        %v2154 = vrot.slane %v2006, 6
        %v2155 = vsel %vm2016, %v2154, %v2153
        %v2156 = vrot.slane %v2007, 5
        %v2157 = vsel %vm2019, %v2156, %v2155
        %v2158 = vrot.slane %v2008, 4
        %v2159 = vsel %vm2022, %v2158, %v2157
        %v2160 = vrot.slane %v2009, 3
        %v2161 = vsel %vm2025, %v2160, %v2159
        %v2162 = vrot.slane %v2010, 2
        %v2163 = vsel %vm2028, %v2162, %v2161
        %v2164 = vrot.slane %v2011, 1
        %v2165 = vsel %vm2031, %v2164, %v2163
        %v2166 = vpack.c.b16 %v2165, %v2151
        %v2184 = vunpack.c.l.b16 %v1947
        %v2185 = vunpack.c.l.b16 %v1948
        %v2186 = vunpack.c.l.b16 %v1949
        %v2187 = vunpack.c.l.b16 %v1950
        %v2188 = vunpack.c.l.b16 %v1951
        %v2189 = vunpack.c.l.b16 %v1952
        %v2190 = vunpack.c.l.b16 %v1953
        %v2191 = vunpack.c.l.b16 %v1954
        %v2192 = vunpack.c.l.b16 %v1955
        %v2193 = vunpack.c.l.b16 %v1956
        %v2194 = vunpack.c.l.b16 %v1957
        %v2195 = vunpack.c.l.b16 %v1958
        %v2196 = vunpack.c.l.b16 %v1959
        %v2197 = vunpack.c.l.b16 %v1960
        %v2198 = vunpack.c.l.b16 %v1961
        %v2199 = vunpack.c.l.b16 %v1962
        %v2200 = vpack.c.b16 %v2185, %v2184
        %v2201 = vpack.c.b16 %v2187, %v2186
        %v2202 = vpack.c.b16 %v2189, %v2188
        %v2203 = vpack.c.b16 %v2191, %v2190
        %v2204 = vpack.c.b16 %v2193, %v2192
        %v2205 = vpack.c.b16 %v2195, %v2194
        %v2206 = vpack.c.b16 %v2197, %v2196
        %v2207 = vpack.c.b16 %v2199, %v2198
        %2216 = vmatprep.subr.bf16.mxu0 0
        %2217 = vmatpush1.bf16.msra.mxu0 %v2207
        %2218 = vmatprep.subr.bf16.mxu0 0
        %2219 = vmatpush1.bf16.msra.mxu0 %v2206
        %2220 = vmatprep.subr.bf16.mxu0 0
        %2221 = vmatpush1.bf16.msra.mxu0 %v2205
        %2222 = vmatprep.subr.bf16.mxu0 0
        %2223 = vmatpush1.bf16.msra.mxu0 %v2204
        %2224 = vmatprep.subr.bf16.mxu0 0
        %2225 = vmatpush1.bf16.msra.mxu0 %v2203
        %2226 = vmatprep.subr.bf16.mxu0 0
        %2227 = vmatpush1.bf16.msra.mxu0 %v2202
        %2228 = vmatprep.subr.bf16.mxu0 0
        %2229 = vmatpush1.bf16.msra.mxu0 %v2201
        %2230 = vmatprep.subr.bf16.mxu0 0
        %2231 = vmatpush1.bf16.msra.mxu0 %v2200
        %2232 = vmatprep.subr.bf16.mxu0 0
        %2233 = vmatpush2.bf16.msra.mxu0 0
        %2234 = vmatprep.subr.bf16.mxu0 0
        %2235 = vmatpush2.bf16.msra.mxu0 0
        %2236 = vmatprep.subr.bf16.mxu0 0
        %2237 = vmatpush2.bf16.msra.mxu0 0
        %2238 = vmatprep.subr.bf16.mxu0 0
        %2239 = vmatpush2.bf16.msra.mxu0 0
        %2240 = vmatprep.subr.bf16.mxu0 0
        %2241 = vmatpush2.bf16.msra.mxu0 0
        %2242 = vmatprep.subr.bf16.mxu0 0
        %2243 = vmatpush2.bf16.msra.mxu0 0
        %2244 = vmatprep.subr.bf16.mxu0 0
        %2245 = vmatpush2.bf16.msra.mxu0 0
        %2246 = vmatprep.subr.bf16.mxu0 0
        %2247 = vmatpush2.bf16.msra.mxu0 0
        %2248 = vmatprep.mubr.bf16.mxu0 0
        %2249 = vmatmul.mubr.bf16.gmra.mxu0 %v2166
        %v2250 = vpop.f32.mrf.mxu0
        %v2251 = vadd.f32 %v2132, %v2250
        %v2252 = vpop.f32.mrf.mxu0
        %v2253 = vpop.f32.mrf.mxu0
        %v2254 = vadd.f32 %v2135, %v2253
        %v2255 = vpop.f32.mrf.mxu0
        %2256 = vdwg.mxu0
        %s2257 = scalar_lea.vmem %s4, 128
        %v2258 = vld [vmem:[%s2257] sm:$0xf]
        %v2259 = vld [vmem:[%s2257 + $0x4] sm:$0xf]
        %v2260 = vld [vmem:[%s2257 + $0x8] sm:$0xf]
        %v2261 = vld [vmem:[%s2257 + $0xc] sm:$0xf]
        %v2262 = vld [vmem:[%s2257 + $0x10] sm:$0xf]
        %v2263 = vld [vmem:[%s2257 + $0x14] sm:$0xf]
        %v2264 = vld [vmem:[%s2257 + $0x18] sm:$0xf]
        %v2265 = vld [vmem:[%s2257 + $0x1c] sm:$0xf]
        %v2266 = vld [vmem:[%s2257 + $0x20] sm:$0xf]
        %v2267 = vld [vmem:[%s2257 + $0x24] sm:$0xf]
        %v2268 = vld [vmem:[%s2257 + $0x28] sm:$0xf]
        %v2269 = vld [vmem:[%s2257 + $0x2c] sm:$0xf]
        %v2270 = vld [vmem:[%s2257 + $0x30] sm:$0xf]
        %v2271 = vld [vmem:[%s2257 + $0x34] sm:$0xf]
        %v2272 = vld [vmem:[%s2257 + $0x38] sm:$0xf]
        %v2273 = vld [vmem:[%s2257 + $0x3c] sm:$0xf]
        %v2274 = vrot.slane %v1996, 2
        %v2275 = vrot.slane %v1997, 1
        %v2276 = vsel %vm2013, %v2275, %v2274
        %v2277 = vsel %vm2016, %v1998, %v2276
        %v2278 = vrot.slane %v1999, 7
        %v2279 = vsel %vm2019, %v2278, %v2277
        %v2280 = vrot.slane %v2000, 6
        %v2281 = vsel %vm2022, %v2280, %v2279
        %v2282 = vrot.slane %v2001, 5
        %v2283 = vsel %vm2025, %v2282, %v2281
        %v2284 = vrot.slane %v2002, 4
        %v2285 = vsel %vm2028, %v2284, %v2283
        %v2286 = vrot.slane %v2003, 3
        %v2287 = vsel %vm2031, %v2286, %v2285
        %v2288 = vrot.slane %v2004, 2
        %v2289 = vrot.slane %v2005, 1
        %v2290 = vsel %vm2013, %v2289, %v2288
        %v2291 = vsel %vm2016, %v2006, %v2290
        %v2292 = vrot.slane %v2007, 7
        %v2293 = vsel %vm2019, %v2292, %v2291
        %v2294 = vrot.slane %v2008, 6
        %v2295 = vsel %vm2022, %v2294, %v2293
        %v2296 = vrot.slane %v2009, 5
        %v2297 = vsel %vm2025, %v2296, %v2295
        %v2298 = vrot.slane %v2010, 4
        %v2299 = vsel %vm2028, %v2298, %v2297
        %v2300 = vrot.slane %v2011, 3
        %v2301 = vsel %vm2031, %v2300, %v2299
        %v2302 = vpack.c.b16 %v2301, %v2287
        %v2320 = vunpack.c.l.b16 %v2258
        %v2321 = vunpack.c.l.b16 %v2259
        %v2322 = vunpack.c.l.b16 %v2260
        %v2323 = vunpack.c.l.b16 %v2261
        %v2324 = vunpack.c.l.b16 %v2262
        %v2325 = vunpack.c.l.b16 %v2263
        %v2326 = vunpack.c.l.b16 %v2264
        %v2327 = vunpack.c.l.b16 %v2265
        %v2328 = vunpack.c.l.b16 %v2266
        %v2329 = vunpack.c.l.b16 %v2267
        %v2330 = vunpack.c.l.b16 %v2268
        %v2331 = vunpack.c.l.b16 %v2269
        %v2332 = vunpack.c.l.b16 %v2270
        %v2333 = vunpack.c.l.b16 %v2271
        %v2334 = vunpack.c.l.b16 %v2272
        %v2335 = vunpack.c.l.b16 %v2273
        %v2336 = vpack.c.b16 %v2321, %v2320
        %v2337 = vpack.c.b16 %v2323, %v2322
        %v2338 = vpack.c.b16 %v2325, %v2324
        %v2339 = vpack.c.b16 %v2327, %v2326
        %v2340 = vpack.c.b16 %v2329, %v2328
        %v2341 = vpack.c.b16 %v2331, %v2330
        %v2342 = vpack.c.b16 %v2333, %v2332
        %v2343 = vpack.c.b16 %v2335, %v2334
        %2352 = vmatprep.subr.bf16.mxu0 0
        %2353 = vmatpush1.bf16.msra.mxu0 %v2343
        %2354 = vmatprep.subr.bf16.mxu0 0
        %2355 = vmatpush1.bf16.msra.mxu0 %v2342
        %2356 = vmatprep.subr.bf16.mxu0 0
        %2357 = vmatpush1.bf16.msra.mxu0 %v2341
        %2358 = vmatprep.subr.bf16.mxu0 0
        %2359 = vmatpush1.bf16.msra.mxu0 %v2340
        %2360 = vmatprep.subr.bf16.mxu0 0
        %2361 = vmatpush1.bf16.msra.mxu0 %v2339
        %2362 = vmatprep.subr.bf16.mxu0 0
        %2363 = vmatpush1.bf16.msra.mxu0 %v2338
        %2364 = vmatprep.subr.bf16.mxu0 0
        %2365 = vmatpush1.bf16.msra.mxu0 %v2337
        %2366 = vmatprep.subr.bf16.mxu0 0
        %2367 = vmatpush1.bf16.msra.mxu0 %v2336
        %2368 = vmatprep.subr.bf16.mxu0 0
        %2369 = vmatpush2.bf16.msra.mxu0 0
        %2370 = vmatprep.subr.bf16.mxu0 0
        %2371 = vmatpush2.bf16.msra.mxu0 0
        %2372 = vmatprep.subr.bf16.mxu0 0
        %2373 = vmatpush2.bf16.msra.mxu0 0
        %2374 = vmatprep.subr.bf16.mxu0 0
        %2375 = vmatpush2.bf16.msra.mxu0 0
        %2376 = vmatprep.subr.bf16.mxu0 0
        %2377 = vmatpush2.bf16.msra.mxu0 0
        %2378 = vmatprep.subr.bf16.mxu0 0
        %2379 = vmatpush2.bf16.msra.mxu0 0
        %2380 = vmatprep.subr.bf16.mxu0 0
        %2381 = vmatpush2.bf16.msra.mxu0 0
        %2382 = vmatprep.subr.bf16.mxu0 0
        %2383 = vmatpush2.bf16.msra.mxu0 0
        %2384 = vmatprep.mubr.bf16.mxu0 0
        %2385 = vmatmul.mubr.bf16.gmra.mxu0 %v2302
        %v2386 = vpop.f32.mrf.mxu0
        %v2387 = vadd.f32 0.0, %v2386
        %v2388 = vpop.f32.mrf.mxu0
        %v2389 = vpop.f32.mrf.mxu0
        %v2390 = vadd.f32 0.0, %v2389
        %v2391 = vpop.f32.mrf.mxu0
        %2392 = vdwg.mxu0
        %v2393 = vadd.f32 %v2251, %v2387
        %v2394 = vadd.f32 %v2254, %v2390
        %s2395 = scalar_lea.vmem %s4, 192
        %v2396 = vld [vmem:[%s2395] sm:$0xf]
        %v2397 = vld [vmem:[%s2395 + $0x4] sm:$0xf]
        %v2398 = vld [vmem:[%s2395 + $0x8] sm:$0xf]
        %v2399 = vld [vmem:[%s2395 + $0xc] sm:$0xf]
        %v2400 = vld [vmem:[%s2395 + $0x10] sm:$0xf]
        %v2401 = vld [vmem:[%s2395 + $0x14] sm:$0xf]
        %v2402 = vld [vmem:[%s2395 + $0x18] sm:$0xf]
        %v2403 = vld [vmem:[%s2395 + $0x1c] sm:$0xf]
        %v2404 = vld [vmem:[%s2395 + $0x20] sm:$0xf]
        %v2405 = vld [vmem:[%s2395 + $0x24] sm:$0xf]
        %v2406 = vld [vmem:[%s2395 + $0x28] sm:$0xf]
        %v2407 = vld [vmem:[%s2395 + $0x2c] sm:$0xf]
        %v2408 = vld [vmem:[%s2395 + $0x30] sm:$0xf]
        %v2409 = vld [vmem:[%s2395 + $0x34] sm:$0xf]
        %v2410 = vld [vmem:[%s2395 + $0x38] sm:$0xf]
        %v2411 = vld [vmem:[%s2395 + $0x3c] sm:$0xf]
        %v2412 = vrot.slane %v1996, 3
        %v2413 = vrot.slane %v1997, 2
        %v2414 = vsel %vm2013, %v2413, %v2412
        %v2415 = vrot.slane %v1998, 1
        %v2416 = vsel %vm2016, %v2415, %v2414
        %v2417 = vsel %vm2019, %v1999, %v2416
        %v2418 = vrot.slane %v2000, 7
        %v2419 = vsel %vm2022, %v2418, %v2417
        %v2420 = vrot.slane %v2001, 6
        %v2421 = vsel %vm2025, %v2420, %v2419
        %v2422 = vrot.slane %v2002, 5
        %v2423 = vsel %vm2028, %v2422, %v2421
        %v2424 = vrot.slane %v2003, 4
        %v2425 = vsel %vm2031, %v2424, %v2423
        %v2426 = vrot.slane %v2004, 3
        %v2427 = vrot.slane %v2005, 2
        %v2428 = vsel %vm2013, %v2427, %v2426
        %v2429 = vrot.slane %v2006, 1
        %v2430 = vsel %vm2016, %v2429, %v2428
        %v2431 = vsel %vm2019, %v2007, %v2430
        %v2432 = vrot.slane %v2008, 7
        %v2433 = vsel %vm2022, %v2432, %v2431
        %v2434 = vrot.slane %v2009, 6
        %v2435 = vsel %vm2025, %v2434, %v2433
        %v2436 = vrot.slane %v2010, 5
        %v2437 = vsel %vm2028, %v2436, %v2435
        %v2438 = vrot.slane %v2011, 4
        %v2439 = vsel %vm2031, %v2438, %v2437
        %v2440 = vpack.c.b16 %v2439, %v2425
        %v2458 = vunpack.c.l.b16 %v2396
        %v2459 = vunpack.c.l.b16 %v2397
        %v2460 = vunpack.c.l.b16 %v2398
        %v2461 = vunpack.c.l.b16 %v2399
        %v2462 = vunpack.c.l.b16 %v2400
        %v2463 = vunpack.c.l.b16 %v2401
        %v2464 = vunpack.c.l.b16 %v2402
        %v2465 = vunpack.c.l.b16 %v2403
        %v2466 = vunpack.c.l.b16 %v2404
        %v2467 = vunpack.c.l.b16 %v2405
        %v2468 = vunpack.c.l.b16 %v2406
        %v2469 = vunpack.c.l.b16 %v2407
        %v2470 = vunpack.c.l.b16 %v2408
        %v2471 = vunpack.c.l.b16 %v2409
        %v2472 = vunpack.c.l.b16 %v2410
        %v2473 = vunpack.c.l.b16 %v2411
        %v2474 = vpack.c.b16 %v2459, %v2458
        %v2475 = vpack.c.b16 %v2461, %v2460
        %v2476 = vpack.c.b16 %v2463, %v2462
        %v2477 = vpack.c.b16 %v2465, %v2464
        %v2478 = vpack.c.b16 %v2467, %v2466
        %v2479 = vpack.c.b16 %v2469, %v2468
        %v2480 = vpack.c.b16 %v2471, %v2470
        %v2481 = vpack.c.b16 %v2473, %v2472
        %2490 = vmatprep.subr.bf16.mxu0 0
        %2491 = vmatpush1.bf16.msra.mxu0 %v2481
        %2492 = vmatprep.subr.bf16.mxu0 0
        %2493 = vmatpush1.bf16.msra.mxu0 %v2480
        %2494 = vmatprep.subr.bf16.mxu0 0
        %2495 = vmatpush1.bf16.msra.mxu0 %v2479
        %2496 = vmatprep.subr.bf16.mxu0 0
        %2497 = vmatpush1.bf16.msra.mxu0 %v2478
        %2498 = vmatprep.subr.bf16.mxu0 0
        %2499 = vmatpush1.bf16.msra.mxu0 %v2477
        %2500 = vmatprep.subr.bf16.mxu0 0
        %2501 = vmatpush1.bf16.msra.mxu0 %v2476
        %2502 = vmatprep.subr.bf16.mxu0 0
        %2503 = vmatpush1.bf16.msra.mxu0 %v2475
        %2504 = vmatprep.subr.bf16.mxu0 0
        %2505 = vmatpush1.bf16.msra.mxu0 %v2474
        %2506 = vmatprep.subr.bf16.mxu0 0
        %2507 = vmatpush2.bf16.msra.mxu0 0
        %2508 = vmatprep.subr.bf16.mxu0 0
        %2509 = vmatpush2.bf16.msra.mxu0 0
        %2510 = vmatprep.subr.bf16.mxu0 0
        %2511 = vmatpush2.bf16.msra.mxu0 0
        %2512 = vmatprep.subr.bf16.mxu0 0
        %2513 = vmatpush2.bf16.msra.mxu0 0
        %2514 = vmatprep.subr.bf16.mxu0 0
        %2515 = vmatpush2.bf16.msra.mxu0 0
        %2516 = vmatprep.subr.bf16.mxu0 0
        %2517 = vmatpush2.bf16.msra.mxu0 0
        %2518 = vmatprep.subr.bf16.mxu0 0
        %2519 = vmatpush2.bf16.msra.mxu0 0
        %2520 = vmatprep.subr.bf16.mxu0 0
        %2521 = vmatpush2.bf16.msra.mxu0 0
        %2522 = vmatprep.mubr.bf16.mxu0 0
        %2523 = vmatmul.mubr.bf16.gmra.mxu0 %v2440
        %v2524 = vpop.f32.mrf.mxu0
        %v2525 = vadd.f32 0.0, %v2524
        %v2526 = vpop.f32.mrf.mxu0
        %v2527 = vpop.f32.mrf.mxu0
        %v2528 = vadd.f32 0.0, %v2527
        %v2529 = vpop.f32.mrf.mxu0
        %2530 = vdwg.mxu0
        %v2531 = vadd.f32 %v2393, %v2525
        %v2532 = vadd.f32 %v2394, %v2528
        %s2533 = scalar_lea.vmem %s4, 256
        %v2534 = vld [vmem:[%s2533] sm:$0xf]
        %v2535 = vld [vmem:[%s2533 + $0x4] sm:$0xf]
        %v2536 = vld [vmem:[%s2533 + $0x8] sm:$0xf]
        %v2537 = vld [vmem:[%s2533 + $0xc] sm:$0xf]
        %v2538 = vld [vmem:[%s2533 + $0x10] sm:$0xf]
        %v2539 = vld [vmem:[%s2533 + $0x14] sm:$0xf]
        %v2540 = vld [vmem:[%s2533 + $0x18] sm:$0xf]
        %v2541 = vld [vmem:[%s2533 + $0x1c] sm:$0xf]
        %v2542 = vld [vmem:[%s2533 + $0x20] sm:$0xf]
        %v2543 = vld [vmem:[%s2533 + $0x24] sm:$0xf]
        %v2544 = vld [vmem:[%s2533 + $0x28] sm:$0xf]
        %v2545 = vld [vmem:[%s2533 + $0x2c] sm:$0xf]
        %v2546 = vld [vmem:[%s2533 + $0x30] sm:$0xf]
        %v2547 = vld [vmem:[%s2533 + $0x34] sm:$0xf]
        %v2548 = vld [vmem:[%s2533 + $0x38] sm:$0xf]
        %v2549 = vld [vmem:[%s2533 + $0x3c] sm:$0xf]
        %v2550 = vrot.slane %v1996, 4
        %v2551 = vrot.slane %v1997, 3
        %v2552 = vsel %vm2013, %v2551, %v2550
        %v2553 = vrot.slane %v1998, 2
        %v2554 = vsel %vm2016, %v2553, %v2552
        %v2555 = vrot.slane %v1999, 1
        %v2556 = vsel %vm2019, %v2555, %v2554
        %v2557 = vsel %vm2022, %v2000, %v2556
        %v2558 = vrot.slane %v2001, 7
        %v2559 = vsel %vm2025, %v2558, %v2557
        %v2560 = vrot.slane %v2002, 6
        %v2561 = vsel %vm2028, %v2560, %v2559
        %v2562 = vrot.slane %v2003, 5
        %v2563 = vsel %vm2031, %v2562, %v2561
        %v2564 = vrot.slane %v2004, 4
        %v2565 = vrot.slane %v2005, 3
        %v2566 = vsel %vm2013, %v2565, %v2564
        %v2567 = vrot.slane %v2006, 2
        %v2568 = vsel %vm2016, %v2567, %v2566
        %v2569 = vrot.slane %v2007, 1
        %v2570 = vsel %vm2019, %v2569, %v2568
        %v2571 = vsel %vm2022, %v2008, %v2570
        %v2572 = vrot.slane %v2009, 7
        %v2573 = vsel %vm2025, %v2572, %v2571
        %v2574 = vrot.slane %v2010, 6
        %v2575 = vsel %vm2028, %v2574, %v2573
        %v2576 = vrot.slane %v2011, 5
        %v2577 = vsel %vm2031, %v2576, %v2575
        %v2578 = vpack.c.b16 %v2577, %v2563
        %v2596 = vunpack.c.l.b16 %v2534
        %v2597 = vunpack.c.l.b16 %v2535
        %v2598 = vunpack.c.l.b16 %v2536
        %v2599 = vunpack.c.l.b16 %v2537
        %v2600 = vunpack.c.l.b16 %v2538
        %v2601 = vunpack.c.l.b16 %v2539
        %v2602 = vunpack.c.l.b16 %v2540
        %v2603 = vunpack.c.l.b16 %v2541
        %v2604 = vunpack.c.l.b16 %v2542
        %v2605 = vunpack.c.l.b16 %v2543
        %v2606 = vunpack.c.l.b16 %v2544
        %v2607 = vunpack.c.l.b16 %v2545
        %v2608 = vunpack.c.l.b16 %v2546
        %v2609 = vunpack.c.l.b16 %v2547
        %v2610 = vunpack.c.l.b16 %v2548
        %v2611 = vunpack.c.l.b16 %v2549
        %v2612 = vpack.c.b16 %v2597, %v2596
        %v2613 = vpack.c.b16 %v2599, %v2598
        %v2614 = vpack.c.b16 %v2601, %v2600
        %v2615 = vpack.c.b16 %v2603, %v2602
        %v2616 = vpack.c.b16 %v2605, %v2604
        %v2617 = vpack.c.b16 %v2607, %v2606
        %v2618 = vpack.c.b16 %v2609, %v2608
        %v2619 = vpack.c.b16 %v2611, %v2610
        %2628 = vmatprep.subr.bf16.mxu0 0
        %2629 = vmatpush1.bf16.msra.mxu0 %v2619
        %2630 = vmatprep.subr.bf16.mxu0 0
        %2631 = vmatpush1.bf16.msra.mxu0 %v2618
        %2632 = vmatprep.subr.bf16.mxu0 0
        %2633 = vmatpush1.bf16.msra.mxu0 %v2617
        %2634 = vmatprep.subr.bf16.mxu0 0
        %2635 = vmatpush1.bf16.msra.mxu0 %v2616
        %2636 = vmatprep.subr.bf16.mxu0 0
        %2637 = vmatpush1.bf16.msra.mxu0 %v2615
        %2638 = vmatprep.subr.bf16.mxu0 0
        %2639 = vmatpush1.bf16.msra.mxu0 %v2614
        %2640 = vmatprep.subr.bf16.mxu0 0
        %2641 = vmatpush1.bf16.msra.mxu0 %v2613
        %2642 = vmatprep.subr.bf16.mxu0 0
        %2643 = vmatpush1.bf16.msra.mxu0 %v2612
        %2644 = vmatprep.subr.bf16.mxu0 0
        %2645 = vmatpush2.bf16.msra.mxu0 0
        %2646 = vmatprep.subr.bf16.mxu0 0
        %2647 = vmatpush2.bf16.msra.mxu0 0
        %2648 = vmatprep.subr.bf16.mxu0 0
        %2649 = vmatpush2.bf16.msra.mxu0 0
        %2650 = vmatprep.subr.bf16.mxu0 0
        %2651 = vmatpush2.bf16.msra.mxu0 0
        %2652 = vmatprep.subr.bf16.mxu0 0
        %2653 = vmatpush2.bf16.msra.mxu0 0
        %2654 = vmatprep.subr.bf16.mxu0 0
        %2655 = vmatpush2.bf16.msra.mxu0 0
        %2656 = vmatprep.subr.bf16.mxu0 0
        %2657 = vmatpush2.bf16.msra.mxu0 0
        %2658 = vmatprep.subr.bf16.mxu0 0
        %2659 = vmatpush2.bf16.msra.mxu0 0
        %2660 = vmatprep.mubr.bf16.mxu0 0
        %2661 = vmatmul.mubr.bf16.gmra.mxu0 %v2578
        %v2662 = vpop.f32.mrf.mxu0
        %v2663 = vadd.f32 0.0, %v2662
        %v2664 = vpop.f32.mrf.mxu0
        %v2665 = vpop.f32.mrf.mxu0
        %v2666 = vadd.f32 0.0, %v2665
        %v2667 = vpop.f32.mrf.mxu0
        %2668 = vdwg.mxu0
        %v2669 = vadd.f32 %v2531, %v2663
        %v2670 = vadd.f32 %v2532, %v2666
        %s2671 = scalar_lea.vmem %s4, 320
        %v2672 = vld [vmem:[%s2671] sm:$0xf]
        %v2673 = vld [vmem:[%s2671 + $0x4] sm:$0xf]
        %v2674 = vld [vmem:[%s2671 + $0x8] sm:$0xf]
        %v2675 = vld [vmem:[%s2671 + $0xc] sm:$0xf]
        %v2676 = vld [vmem:[%s2671 + $0x10] sm:$0xf]
        %v2677 = vld [vmem:[%s2671 + $0x14] sm:$0xf]
        %v2678 = vld [vmem:[%s2671 + $0x18] sm:$0xf]
        %v2679 = vld [vmem:[%s2671 + $0x1c] sm:$0xf]
        %v2680 = vld [vmem:[%s2671 + $0x20] sm:$0xf]
        %v2681 = vld [vmem:[%s2671 + $0x24] sm:$0xf]
        %v2682 = vld [vmem:[%s2671 + $0x28] sm:$0xf]
        %v2683 = vld [vmem:[%s2671 + $0x2c] sm:$0xf]
        %v2684 = vld [vmem:[%s2671 + $0x30] sm:$0xf]
        %v2685 = vld [vmem:[%s2671 + $0x34] sm:$0xf]
        %v2686 = vld [vmem:[%s2671 + $0x38] sm:$0xf]
        %v2687 = vld [vmem:[%s2671 + $0x3c] sm:$0xf]
        %v2688 = vrot.slane %v1996, 5
        %v2689 = vrot.slane %v1997, 4
        %v2690 = vsel %vm2013, %v2689, %v2688
        %v2691 = vrot.slane %v1998, 3
        %v2692 = vsel %vm2016, %v2691, %v2690
        %v2693 = vrot.slane %v1999, 2
        %v2694 = vsel %vm2019, %v2693, %v2692
        %v2695 = vrot.slane %v2000, 1
        %v2696 = vsel %vm2022, %v2695, %v2694
        %v2697 = vsel %vm2025, %v2001, %v2696
        %v2698 = vrot.slane %v2002, 7
        %v2699 = vsel %vm2028, %v2698, %v2697
        %v2700 = vrot.slane %v2003, 6
        %v2701 = vsel %vm2031, %v2700, %v2699
        %v2702 = vrot.slane %v2004, 5
        %v2703 = vrot.slane %v2005, 4
        %v2704 = vsel %vm2013, %v2703, %v2702
        %v2705 = vrot.slane %v2006, 3
        %v2706 = vsel %vm2016, %v2705, %v2704
        %v2707 = vrot.slane %v2007, 2
        %v2708 = vsel %vm2019, %v2707, %v2706
        %v2709 = vrot.slane %v2008, 1
        %v2710 = vsel %vm2022, %v2709, %v2708
        %v2711 = vsel %vm2025, %v2009, %v2710
        %v2712 = vrot.slane %v2010, 7
        %v2713 = vsel %vm2028, %v2712, %v2711
        %v2714 = vrot.slane %v2011, 6
        %v2715 = vsel %vm2031, %v2714, %v2713
        %v2716 = vpack.c.b16 %v2715, %v2701
        %v2734 = vunpack.c.l.b16 %v2672
        %v2735 = vunpack.c.l.b16 %v2673
        %v2736 = vunpack.c.l.b16 %v2674
        %v2737 = vunpack.c.l.b16 %v2675
        %v2738 = vunpack.c.l.b16 %v2676
        %v2739 = vunpack.c.l.b16 %v2677
        %v2740 = vunpack.c.l.b16 %v2678
        %v2741 = vunpack.c.l.b16 %v2679
        %v2742 = vunpack.c.l.b16 %v2680
        %v2743 = vunpack.c.l.b16 %v2681
        %v2744 = vunpack.c.l.b16 %v2682
        %v2745 = vunpack.c.l.b16 %v2683
        %v2746 = vunpack.c.l.b16 %v2684
        %v2747 = vunpack.c.l.b16 %v2685
        %v2748 = vunpack.c.l.b16 %v2686
        %v2749 = vunpack.c.l.b16 %v2687
        %v2750 = vpack.c.b16 %v2735, %v2734
        %v2751 = vpack.c.b16 %v2737, %v2736
        %v2752 = vpack.c.b16 %v2739, %v2738
        %v2753 = vpack.c.b16 %v2741, %v2740
        %v2754 = vpack.c.b16 %v2743, %v2742
        %v2755 = vpack.c.b16 %v2745, %v2744
        %v2756 = vpack.c.b16 %v2747, %v2746
        %v2757 = vpack.c.b16 %v2749, %v2748
        %2766 = vmatprep.subr.bf16.mxu0 0
        %2767 = vmatpush1.bf16.msra.mxu0 %v2757
        %2768 = vmatprep.subr.bf16.mxu0 0
        %2769 = vmatpush1.bf16.msra.mxu0 %v2756
        %2770 = vmatprep.subr.bf16.mxu0 0
        %2771 = vmatpush1.bf16.msra.mxu0 %v2755
        %2772 = vmatprep.subr.bf16.mxu0 0
        %2773 = vmatpush1.bf16.msra.mxu0 %v2754
        %2774 = vmatprep.subr.bf16.mxu0 0
        %2775 = vmatpush1.bf16.msra.mxu0 %v2753
        %2776 = vmatprep.subr.bf16.mxu0 0
        %2777 = vmatpush1.bf16.msra.mxu0 %v2752
        %2778 = vmatprep.subr.bf16.mxu0 0
        %2779 = vmatpush1.bf16.msra.mxu0 %v2751
        %2780 = vmatprep.subr.bf16.mxu0 0
        %2781 = vmatpush1.bf16.msra.mxu0 %v2750
        %2782 = vmatprep.subr.bf16.mxu0 0
        %2783 = vmatpush2.bf16.msra.mxu0 0
        %2784 = vmatprep.subr.bf16.mxu0 0
        %2785 = vmatpush2.bf16.msra.mxu0 0
        %2786 = vmatprep.subr.bf16.mxu0 0
        %2787 = vmatpush2.bf16.msra.mxu0 0
        %2788 = vmatprep.subr.bf16.mxu0 0
        %2789 = vmatpush2.bf16.msra.mxu0 0
        %2790 = vmatprep.subr.bf16.mxu0 0
        %2791 = vmatpush2.bf16.msra.mxu0 0
        %2792 = vmatprep.subr.bf16.mxu0 0
        %2793 = vmatpush2.bf16.msra.mxu0 0
        %2794 = vmatprep.subr.bf16.mxu0 0
        %2795 = vmatpush2.bf16.msra.mxu0 0
        %2796 = vmatprep.subr.bf16.mxu0 0
        %2797 = vmatpush2.bf16.msra.mxu0 0
        %2798 = vmatprep.mubr.bf16.mxu0 0
        %2799 = vmatmul.mubr.bf16.gmra.mxu0 %v2716
        %v2800 = vpop.f32.mrf.mxu0
        %v2801 = vadd.f32 0.0, %v2800
        %v2802 = vpop.f32.mrf.mxu0
        %v2803 = vpop.f32.mrf.mxu0
        %v2804 = vadd.f32 0.0, %v2803
        %v2805 = vpop.f32.mrf.mxu0
        %2806 = vdwg.mxu0
        %v2807 = vadd.f32 %v2669, %v2801
        %v2808 = vadd.f32 %v2670, %v2804
        %s2809 = scalar_lea.vmem %s4, 384
        %v2810 = vld [vmem:[%s2809] sm:$0xf]
        %v2811 = vld [vmem:[%s2809 + $0x4] sm:$0xf]
        %v2812 = vld [vmem:[%s2809 + $0x8] sm:$0xf]
        %v2813 = vld [vmem:[%s2809 + $0xc] sm:$0xf]
        %v2814 = vld [vmem:[%s2809 + $0x10] sm:$0xf]
        %v2815 = vld [vmem:[%s2809 + $0x14] sm:$0xf]
        %v2816 = vld [vmem:[%s2809 + $0x18] sm:$0xf]
        %v2817 = vld [vmem:[%s2809 + $0x1c] sm:$0xf]
        %v2818 = vld [vmem:[%s2809 + $0x20] sm:$0xf]
        %v2819 = vld [vmem:[%s2809 + $0x24] sm:$0xf]
        %v2820 = vld [vmem:[%s2809 + $0x28] sm:$0xf]
        %v2821 = vld [vmem:[%s2809 + $0x2c] sm:$0xf]
        %v2822 = vld [vmem:[%s2809 + $0x30] sm:$0xf]
        %v2823 = vld [vmem:[%s2809 + $0x34] sm:$0xf]
        %v2824 = vld [vmem:[%s2809 + $0x38] sm:$0xf]
        %v2825 = vld [vmem:[%s2809 + $0x3c] sm:$0xf]
        %v2826 = vrot.slane %v1996, 6
        %v2827 = vrot.slane %v1997, 5
        %v2828 = vsel %vm2013, %v2827, %v2826
        %v2829 = vrot.slane %v1998, 4
        %v2830 = vsel %vm2016, %v2829, %v2828
        %v2831 = vrot.slane %v1999, 3
        %v2832 = vsel %vm2019, %v2831, %v2830
        %v2833 = vrot.slane %v2000, 2
        %v2834 = vsel %vm2022, %v2833, %v2832
        %v2835 = vrot.slane %v2001, 1
        %v2836 = vsel %vm2025, %v2835, %v2834
        %v2837 = vsel %vm2028, %v2002, %v2836
        %v2838 = vrot.slane %v2003, 7
        %v2839 = vsel %vm2031, %v2838, %v2837
        %v2840 = vrot.slane %v2004, 6
        %v2841 = vrot.slane %v2005, 5
        %v2842 = vsel %vm2013, %v2841, %v2840
        %v2843 = vrot.slane %v2006, 4
        %v2844 = vsel %vm2016, %v2843, %v2842
        %v2845 = vrot.slane %v2007, 3
        %v2846 = vsel %vm2019, %v2845, %v2844
        %v2847 = vrot.slane %v2008, 2
        %v2848 = vsel %vm2022, %v2847, %v2846
        %v2849 = vrot.slane %v2009, 1
        %v2850 = vsel %vm2025, %v2849, %v2848
        %v2851 = vsel %vm2028, %v2010, %v2850
        %v2852 = vrot.slane %v2011, 7
        %v2853 = vsel %vm2031, %v2852, %v2851
        %v2854 = vpack.c.b16 %v2853, %v2839
        %v2872 = vunpack.c.l.b16 %v2810
        %v2873 = vunpack.c.l.b16 %v2811
        %v2874 = vunpack.c.l.b16 %v2812
        %v2875 = vunpack.c.l.b16 %v2813
        %v2876 = vunpack.c.l.b16 %v2814
        %v2877 = vunpack.c.l.b16 %v2815
        %v2878 = vunpack.c.l.b16 %v2816
        %v2879 = vunpack.c.l.b16 %v2817
        %v2880 = vunpack.c.l.b16 %v2818
        %v2881 = vunpack.c.l.b16 %v2819
        %v2882 = vunpack.c.l.b16 %v2820
        %v2883 = vunpack.c.l.b16 %v2821
        %v2884 = vunpack.c.l.b16 %v2822
        %v2885 = vunpack.c.l.b16 %v2823
        %v2886 = vunpack.c.l.b16 %v2824
        %v2887 = vunpack.c.l.b16 %v2825
        %v2888 = vpack.c.b16 %v2873, %v2872
        %v2889 = vpack.c.b16 %v2875, %v2874
        %v2890 = vpack.c.b16 %v2877, %v2876
        %v2891 = vpack.c.b16 %v2879, %v2878
        %v2892 = vpack.c.b16 %v2881, %v2880
        %v2893 = vpack.c.b16 %v2883, %v2882
        %v2894 = vpack.c.b16 %v2885, %v2884
        %v2895 = vpack.c.b16 %v2887, %v2886
        %2904 = vmatprep.subr.bf16.mxu0 0
        %2905 = vmatpush1.bf16.msra.mxu0 %v2895
        %2906 = vmatprep.subr.bf16.mxu0 0
        %2907 = vmatpush1.bf16.msra.mxu0 %v2894
        %2908 = vmatprep.subr.bf16.mxu0 0
        %2909 = vmatpush1.bf16.msra.mxu0 %v2893
        %2910 = vmatprep.subr.bf16.mxu0 0
        %2911 = vmatpush1.bf16.msra.mxu0 %v2892
        %2912 = vmatprep.subr.bf16.mxu0 0
        %2913 = vmatpush1.bf16.msra.mxu0 %v2891
        %2914 = vmatprep.subr.bf16.mxu0 0
        %2915 = vmatpush1.bf16.msra.mxu0 %v2890
        %2916 = vmatprep.subr.bf16.mxu0 0
        %2917 = vmatpush1.bf16.msra.mxu0 %v2889
        %2918 = vmatprep.subr.bf16.mxu0 0
        %2919 = vmatpush1.bf16.msra.mxu0 %v2888
        %2920 = vmatprep.subr.bf16.mxu0 0
        %2921 = vmatpush2.bf16.msra.mxu0 0
        %2922 = vmatprep.subr.bf16.mxu0 0
        %2923 = vmatpush2.bf16.msra.mxu0 0
        %2924 = vmatprep.subr.bf16.mxu0 0
        %2925 = vmatpush2.bf16.msra.mxu0 0
        %2926 = vmatprep.subr.bf16.mxu0 0
        %2927 = vmatpush2.bf16.msra.mxu0 0
        %2928 = vmatprep.subr.bf16.mxu0 0
        %2929 = vmatpush2.bf16.msra.mxu0 0
        %2930 = vmatprep.subr.bf16.mxu0 0
        %2931 = vmatpush2.bf16.msra.mxu0 0
        %2932 = vmatprep.subr.bf16.mxu0 0
        %2933 = vmatpush2.bf16.msra.mxu0 0
        %2934 = vmatprep.subr.bf16.mxu0 0
        %2935 = vmatpush2.bf16.msra.mxu0 0
        %2936 = vmatprep.mubr.bf16.mxu0 0
        %2937 = vmatmul.mubr.bf16.gmra.mxu0 %v2854
        %v2938 = vpop.f32.mrf.mxu0
        %v2939 = vadd.f32 0.0, %v2938
        %v2940 = vpop.f32.mrf.mxu0
        %v2941 = vpop.f32.mrf.mxu0
        %v2942 = vadd.f32 0.0, %v2941
        %v2943 = vpop.f32.mrf.mxu0
        %2944 = vdwg.mxu0
        %v2945 = vadd.f32 %v2807, %v2939
        %v2946 = vadd.f32 %v2808, %v2942
        %s2947 = scalar_lea.vmem %s4, 448
        %v2948 = vld [vmem:[%s2947] sm:$0xf]
        %v2949 = vld [vmem:[%s2947 + $0x4] sm:$0xf]
        %v2950 = vld [vmem:[%s2947 + $0x8] sm:$0xf]
        %v2951 = vld [vmem:[%s2947 + $0xc] sm:$0xf]
        %v2952 = vld [vmem:[%s2947 + $0x10] sm:$0xf]
        %v2953 = vld [vmem:[%s2947 + $0x14] sm:$0xf]
        %v2954 = vld [vmem:[%s2947 + $0x18] sm:$0xf]
        %v2955 = vld [vmem:[%s2947 + $0x1c] sm:$0xf]
        %v2956 = vld [vmem:[%s2947 + $0x20] sm:$0xf]
        %v2957 = vld [vmem:[%s2947 + $0x24] sm:$0xf]
        %v2958 = vld [vmem:[%s2947 + $0x28] sm:$0xf]
        %v2959 = vld [vmem:[%s2947 + $0x2c] sm:$0xf]
        %v2960 = vld [vmem:[%s2947 + $0x30] sm:$0xf]
        %v2961 = vld [vmem:[%s2947 + $0x34] sm:$0xf]
        %v2962 = vld [vmem:[%s2947 + $0x38] sm:$0xf]
        %v2963 = vld [vmem:[%s2947 + $0x3c] sm:$0xf]
        %v2964 = vrot.slane %v1996, 7
        %v2965 = vrot.slane %v1997, 6
        %v2966 = vsel %vm2013, %v2965, %v2964
        %v2967 = vrot.slane %v1998, 5
        %v2968 = vsel %vm2016, %v2967, %v2966
        %v2969 = vrot.slane %v1999, 4
        %v2970 = vsel %vm2019, %v2969, %v2968
        %v2971 = vrot.slane %v2000, 3
        %v2972 = vsel %vm2022, %v2971, %v2970
        %v2973 = vrot.slane %v2001, 2
        %v2974 = vsel %vm2025, %v2973, %v2972
        %v2975 = vrot.slane %v2002, 1
        %v2976 = vsel %vm2028, %v2975, %v2974
        %v2977 = vsel %vm2031, %v2003, %v2976
        %v2978 = vrot.slane %v2004, 7
        %v2979 = vrot.slane %v2005, 6
        %v2980 = vsel %vm2013, %v2979, %v2978
        %v2981 = vrot.slane %v2006, 5
        %v2982 = vsel %vm2016, %v2981, %v2980
        %v2983 = vrot.slane %v2007, 4
        %v2984 = vsel %vm2019, %v2983, %v2982
        %v2985 = vrot.slane %v2008, 3
        %v2986 = vsel %vm2022, %v2985, %v2984
        %v2987 = vrot.slane %v2009, 2
        %v2988 = vsel %vm2025, %v2987, %v2986
        %v2989 = vrot.slane %v2010, 1
        %v2990 = vsel %vm2028, %v2989, %v2988
        %v2991 = vsel %vm2031, %v2011, %v2990
        %v2992 = vpack.c.b16 %v2991, %v2977
        %v3010 = vunpack.c.l.b16 %v2948
        %v3011 = vunpack.c.l.b16 %v2949
        %v3012 = vunpack.c.l.b16 %v2950
        %v3013 = vunpack.c.l.b16 %v2951
        %v3014 = vunpack.c.l.b16 %v2952
        %v3015 = vunpack.c.l.b16 %v2953
        %v3016 = vunpack.c.l.b16 %v2954
        %v3017 = vunpack.c.l.b16 %v2955
        %v3018 = vunpack.c.l.b16 %v2956
        %v3019 = vunpack.c.l.b16 %v2957
        %v3020 = vunpack.c.l.b16 %v2958
        %v3021 = vunpack.c.l.b16 %v2959
        %v3022 = vunpack.c.l.b16 %v2960
        %v3023 = vunpack.c.l.b16 %v2961
        %v3024 = vunpack.c.l.b16 %v2962
        %v3025 = vunpack.c.l.b16 %v2963
        %v3026 = vpack.c.b16 %v3011, %v3010
        %v3027 = vpack.c.b16 %v3013, %v3012
        %v3028 = vpack.c.b16 %v3015, %v3014
        %v3029 = vpack.c.b16 %v3017, %v3016
        %v3030 = vpack.c.b16 %v3019, %v3018
        %v3031 = vpack.c.b16 %v3021, %v3020
        %v3032 = vpack.c.b16 %v3023, %v3022
        %v3033 = vpack.c.b16 %v3025, %v3024
        %3042 = vmatprep.subr.bf16.mxu0 0
        %3043 = vmatpush1.bf16.msra.mxu0 %v3033
        %3044 = vmatprep.subr.bf16.mxu0 0
        %3045 = vmatpush1.bf16.msra.mxu0 %v3032
        %3046 = vmatprep.subr.bf16.mxu0 0
        %3047 = vmatpush1.bf16.msra.mxu0 %v3031
        %3048 = vmatprep.subr.bf16.mxu0 0
        %3049 = vmatpush1.bf16.msra.mxu0 %v3030
        %3050 = vmatprep.subr.bf16.mxu0 0
        %3051 = vmatpush1.bf16.msra.mxu0 %v3029
        %3052 = vmatprep.subr.bf16.mxu0 0
        %3053 = vmatpush1.bf16.msra.mxu0 %v3028
        %3054 = vmatprep.subr.bf16.mxu0 0
        %3055 = vmatpush1.bf16.msra.mxu0 %v3027
        %3056 = vmatprep.subr.bf16.mxu0 0
        %3057 = vmatpush1.bf16.msra.mxu0 %v3026
        %3058 = vmatprep.subr.bf16.mxu0 0
        %3059 = vmatpush2.bf16.msra.mxu0 0
        %3060 = vmatprep.subr.bf16.mxu0 0
        %3061 = vmatpush2.bf16.msra.mxu0 0
        %3062 = vmatprep.subr.bf16.mxu0 0
        %3063 = vmatpush2.bf16.msra.mxu0 0
        %3064 = vmatprep.subr.bf16.mxu0 0
        %3065 = vmatpush2.bf16.msra.mxu0 0
        %3066 = vmatprep.subr.bf16.mxu0 0
        %3067 = vmatpush2.bf16.msra.mxu0 0
        %3068 = vmatprep.subr.bf16.mxu0 0
        %3069 = vmatpush2.bf16.msra.mxu0 0
        %3070 = vmatprep.subr.bf16.mxu0 0
        %3071 = vmatpush2.bf16.msra.mxu0 0
        %3072 = vmatprep.subr.bf16.mxu0 0
        %3073 = vmatpush2.bf16.msra.mxu0 0
        %3074 = vmatprep.mubr.bf16.mxu0 0
        %3075 = vmatmul.mubr.bf16.gmra.mxu0 %v2992
        %v3076 = vpop.f32.mrf.mxu0
        %v3077 = vadd.f32 0.0, %v3076
        %v3078 = vpop.f32.mrf.mxu0
        %v3079 = vpop.f32.mrf.mxu0
        %v3080 = vadd.f32 0.0, %v3079
        %v3081 = vpop.f32.mrf.mxu0
        %3082 = vdwg.mxu0
        %v3083 = vadd.f32 %v2945, %v3077
        %v3084 = vadd.f32 %v2946, %v3080
        %s3085 = scalar_lea.vmem %s4, 512
        %v3086 = vld [vmem:[%s3085] sm:$0xf]
        %v3087 = vld [vmem:[%s3085 + $0x4] sm:$0xf]
        %v3088 = vld [vmem:[%s3085 + $0x8] sm:$0xf]
        %v3089 = vld [vmem:[%s3085 + $0xc] sm:$0xf]
        %v3090 = vld [vmem:[%s3085 + $0x10] sm:$0xf]
        %v3091 = vld [vmem:[%s3085 + $0x14] sm:$0xf]
        %v3092 = vld [vmem:[%s3085 + $0x18] sm:$0xf]
        %v3093 = vld [vmem:[%s3085 + $0x1c] sm:$0xf]
        %v3094 = vld [vmem:[%s3085 + $0x20] sm:$0xf]
        %v3095 = vld [vmem:[%s3085 + $0x24] sm:$0xf]
        %v3096 = vld [vmem:[%s3085 + $0x28] sm:$0xf]
        %v3097 = vld [vmem:[%s3085 + $0x2c] sm:$0xf]
        %v3098 = vld [vmem:[%s3085 + $0x30] sm:$0xf]
        %v3099 = vld [vmem:[%s3085 + $0x34] sm:$0xf]
        %v3100 = vld [vmem:[%s3085 + $0x38] sm:$0xf]
        %v3101 = vld [vmem:[%s3085 + $0x3c] sm:$0xf]
        %v3102 = vunpack.c.h.b16 %v1931
        %v3103 = vunpack.c.h.b16 %v1932
        %v3104 = vunpack.c.h.b16 %v1933
        %v3105 = vunpack.c.h.b16 %v1934
        %v3106 = vunpack.c.h.b16 %v1935
        %v3107 = vunpack.c.h.b16 %v1936
        %v3108 = vunpack.c.h.b16 %v1937
        %v3109 = vunpack.c.h.b16 %v1938
        %v3110 = vunpack.c.h.b16 %v1939
        %v3111 = vunpack.c.h.b16 %v1940
        %v3112 = vunpack.c.h.b16 %v1941
        %v3113 = vunpack.c.h.b16 %v1942
        %v3114 = vunpack.c.h.b16 %v1943
        %v3115 = vunpack.c.h.b16 %v1944
        %v3116 = vunpack.c.h.b16 %v1945
        %v3117 = vunpack.c.h.b16 %v1946
        %v3118 = vrot.slane %v3103, 7
        %v3119 = vsel %vm2013, %v3118, %v3102
        %v3120 = vrot.slane %v3104, 6
        %v3121 = vsel %vm2016, %v3120, %v3119
        %v3122 = vrot.slane %v3105, 5
        %v3123 = vsel %vm2019, %v3122, %v3121
        %v3124 = vrot.slane %v3106, 4
        %v3125 = vsel %vm2022, %v3124, %v3123
        %v3126 = vrot.slane %v3107, 3
        %v3127 = vsel %vm2025, %v3126, %v3125
        %v3128 = vrot.slane %v3108, 2
        %v3129 = vsel %vm2028, %v3128, %v3127
        %v3130 = vrot.slane %v3109, 1
        %v3131 = vsel %vm2031, %v3130, %v3129
        %v3132 = vrot.slane %v3111, 7
        %v3133 = vsel %vm2013, %v3132, %v3110
        %v3134 = vrot.slane %v3112, 6
        %v3135 = vsel %vm2016, %v3134, %v3133
        %v3136 = vrot.slane %v3113, 5
        %v3137 = vsel %vm2019, %v3136, %v3135
        %v3138 = vrot.slane %v3114, 4
        %v3139 = vsel %vm2022, %v3138, %v3137
        %v3140 = vrot.slane %v3115, 3
        %v3141 = vsel %vm2025, %v3140, %v3139
        %v3142 = vrot.slane %v3116, 2
        %v3143 = vsel %vm2028, %v3142, %v3141
        %v3144 = vrot.slane %v3117, 1
        %v3145 = vsel %vm2031, %v3144, %v3143
        %v3146 = vpack.c.b16 %v3145, %v3131
        %v3164 = vunpack.c.l.b16 %v3086
        %v3165 = vunpack.c.l.b16 %v3087
        %v3166 = vunpack.c.l.b16 %v3088
        %v3167 = vunpack.c.l.b16 %v3089
        %v3168 = vunpack.c.l.b16 %v3090
        %v3169 = vunpack.c.l.b16 %v3091
        %v3170 = vunpack.c.l.b16 %v3092
        %v3171 = vunpack.c.l.b16 %v3093
        %v3172 = vunpack.c.l.b16 %v3094
        %v3173 = vunpack.c.l.b16 %v3095
        %v3174 = vunpack.c.l.b16 %v3096
        %v3175 = vunpack.c.l.b16 %v3097
        %v3176 = vunpack.c.l.b16 %v3098
        %v3177 = vunpack.c.l.b16 %v3099
        %v3178 = vunpack.c.l.b16 %v3100
        %v3179 = vunpack.c.l.b16 %v3101
        %v3180 = vpack.c.b16 %v3165, %v3164
        %v3181 = vpack.c.b16 %v3167, %v3166
        %v3182 = vpack.c.b16 %v3169, %v3168
        %v3183 = vpack.c.b16 %v3171, %v3170
        %v3184 = vpack.c.b16 %v3173, %v3172
        %v3185 = vpack.c.b16 %v3175, %v3174
        %v3186 = vpack.c.b16 %v3177, %v3176
        %v3187 = vpack.c.b16 %v3179, %v3178
        %3196 = vmatprep.subr.bf16.mxu0 0
        %3197 = vmatpush1.bf16.msra.mxu0 %v3187
        %3198 = vmatprep.subr.bf16.mxu0 0
        %3199 = vmatpush1.bf16.msra.mxu0 %v3186
        %3200 = vmatprep.subr.bf16.mxu0 0
        %3201 = vmatpush1.bf16.msra.mxu0 %v3185
        %3202 = vmatprep.subr.bf16.mxu0 0
        %3203 = vmatpush1.bf16.msra.mxu0 %v3184
        %3204 = vmatprep.subr.bf16.mxu0 0
        %3205 = vmatpush1.bf16.msra.mxu0 %v3183
        %3206 = vmatprep.subr.bf16.mxu0 0
        %3207 = vmatpush1.bf16.msra.mxu0 %v3182
        %3208 = vmatprep.subr.bf16.mxu0 0
        %3209 = vmatpush1.bf16.msra.mxu0 %v3181
        %3210 = vmatprep.subr.bf16.mxu0 0
        %3211 = vmatpush1.bf16.msra.mxu0 %v3180
        %3212 = vmatprep.subr.bf16.mxu0 0
        %3213 = vmatpush2.bf16.msra.mxu0 0
        %3214 = vmatprep.subr.bf16.mxu0 0
        %3215 = vmatpush2.bf16.msra.mxu0 0
        %3216 = vmatprep.subr.bf16.mxu0 0
        %3217 = vmatpush2.bf16.msra.mxu0 0
        %3218 = vmatprep.subr.bf16.mxu0 0
        %3219 = vmatpush2.bf16.msra.mxu0 0
        %3220 = vmatprep.subr.bf16.mxu0 0
        %3221 = vmatpush2.bf16.msra.mxu0 0
        %3222 = vmatprep.subr.bf16.mxu0 0
        %3223 = vmatpush2.bf16.msra.mxu0 0
        %3224 = vmatprep.subr.bf16.mxu0 0
        %3225 = vmatpush2.bf16.msra.mxu0 0
        %3226 = vmatprep.subr.bf16.mxu0 0
        %3227 = vmatpush2.bf16.msra.mxu0 0
        %3228 = vmatprep.mubr.bf16.mxu0 0
        %3229 = vmatmul.mubr.bf16.gmra.mxu0 %v3146
        %v3230 = vpop.f32.mrf.mxu0
        %v3231 = vadd.f32 0.0, %v3230
        %v3232 = vpop.f32.mrf.mxu0
        %v3233 = vpop.f32.mrf.mxu0
        %v3234 = vadd.f32 0.0, %v3233
        %v3235 = vpop.f32.mrf.mxu0
        %3236 = vdwg.mxu0
        %v3237 = vadd.f32 %v3083, %v3231
        %v3238 = vadd.f32 %v3084, %v3234
        %s3239 = scalar_lea.vmem %s4, 576
        %v3240 = vld [vmem:[%s3239] sm:$0xf]
        %v3241 = vld [vmem:[%s3239 + $0x4] sm:$0xf]
        %v3242 = vld [vmem:[%s3239 + $0x8] sm:$0xf]
        %v3243 = vld [vmem:[%s3239 + $0xc] sm:$0xf]
        %v3244 = vld [vmem:[%s3239 + $0x10] sm:$0xf]
        %v3245 = vld [vmem:[%s3239 + $0x14] sm:$0xf]
        %v3246 = vld [vmem:[%s3239 + $0x18] sm:$0xf]
        %v3247 = vld [vmem:[%s3239 + $0x1c] sm:$0xf]
        %v3248 = vld [vmem:[%s3239 + $0x20] sm:$0xf]
        %v3249 = vld [vmem:[%s3239 + $0x24] sm:$0xf]
        %v3250 = vld [vmem:[%s3239 + $0x28] sm:$0xf]
        %v3251 = vld [vmem:[%s3239 + $0x2c] sm:$0xf]
        %v3252 = vld [vmem:[%s3239 + $0x30] sm:$0xf]
        %v3253 = vld [vmem:[%s3239 + $0x34] sm:$0xf]
        %v3254 = vld [vmem:[%s3239 + $0x38] sm:$0xf]
        %v3255 = vld [vmem:[%s3239 + $0x3c] sm:$0xf]
        %v3256 = vrot.slane %v3102, 1
        %v3257 = vsel %vm2013, %v3103, %v3256
        %v3258 = vrot.slane %v3104, 7
        %v3259 = vsel %vm2016, %v3258, %v3257
        %v3260 = vrot.slane %v3105, 6
        %v3261 = vsel %vm2019, %v3260, %v3259
        %v3262 = vrot.slane %v3106, 5
        %v3263 = vsel %vm2022, %v3262, %v3261
        %v3264 = vrot.slane %v3107, 4
        %v3265 = vsel %vm2025, %v3264, %v3263
        %v3266 = vrot.slane %v3108, 3
        %v3267 = vsel %vm2028, %v3266, %v3265
        %v3268 = vrot.slane %v3109, 2
        %v3269 = vsel %vm2031, %v3268, %v3267
        %v3270 = vrot.slane %v3110, 1
        %v3271 = vsel %vm2013, %v3111, %v3270
        %v3272 = vrot.slane %v3112, 7
        %v3273 = vsel %vm2016, %v3272, %v3271
        %v3274 = vrot.slane %v3113, 6
        %v3275 = vsel %vm2019, %v3274, %v3273
        %v3276 = vrot.slane %v3114, 5
        %v3277 = vsel %vm2022, %v3276, %v3275
        %v3278 = vrot.slane %v3115, 4
        %v3279 = vsel %vm2025, %v3278, %v3277
        %v3280 = vrot.slane %v3116, 3
        %v3281 = vsel %vm2028, %v3280, %v3279
        %v3282 = vrot.slane %v3117, 2
        %v3283 = vsel %vm2031, %v3282, %v3281
        %v3284 = vpack.c.b16 %v3283, %v3269
        %v3302 = vunpack.c.l.b16 %v3240
        %v3303 = vunpack.c.l.b16 %v3241
        %v3304 = vunpack.c.l.b16 %v3242
        %v3305 = vunpack.c.l.b16 %v3243
        %v3306 = vunpack.c.l.b16 %v3244
        %v3307 = vunpack.c.l.b16 %v3245
        %v3308 = vunpack.c.l.b16 %v3246
        %v3309 = vunpack.c.l.b16 %v3247
        %v3310 = vunpack.c.l.b16 %v3248
        %v3311 = vunpack.c.l.b16 %v3249
        %v3312 = vunpack.c.l.b16 %v3250
        %v3313 = vunpack.c.l.b16 %v3251
        %v3314 = vunpack.c.l.b16 %v3252
        %v3315 = vunpack.c.l.b16 %v3253
        %v3316 = vunpack.c.l.b16 %v3254
        %v3317 = vunpack.c.l.b16 %v3255
        %v3318 = vpack.c.b16 %v3303, %v3302
        %v3319 = vpack.c.b16 %v3305, %v3304
        %v3320 = vpack.c.b16 %v3307, %v3306
        %v3321 = vpack.c.b16 %v3309, %v3308
        %v3322 = vpack.c.b16 %v3311, %v3310
        %v3323 = vpack.c.b16 %v3313, %v3312
        %v3324 = vpack.c.b16 %v3315, %v3314
        %v3325 = vpack.c.b16 %v3317, %v3316
        %3334 = vmatprep.subr.bf16.mxu0 0
        %3335 = vmatpush1.bf16.msra.mxu0 %v3325
        %3336 = vmatprep.subr.bf16.mxu0 0
        %3337 = vmatpush1.bf16.msra.mxu0 %v3324
        %3338 = vmatprep.subr.bf16.mxu0 0
        %3339 = vmatpush1.bf16.msra.mxu0 %v3323
        %3340 = vmatprep.subr.bf16.mxu0 0
        %3341 = vmatpush1.bf16.msra.mxu0 %v3322
        %3342 = vmatprep.subr.bf16.mxu0 0
        %3343 = vmatpush1.bf16.msra.mxu0 %v3321
        %3344 = vmatprep.subr.bf16.mxu0 0
        %3345 = vmatpush1.bf16.msra.mxu0 %v3320
        %3346 = vmatprep.subr.bf16.mxu0 0
        %3347 = vmatpush1.bf16.msra.mxu0 %v3319
        %3348 = vmatprep.subr.bf16.mxu0 0
        %3349 = vmatpush1.bf16.msra.mxu0 %v3318
        %3350 = vmatprep.subr.bf16.mxu0 0
        %3351 = vmatpush2.bf16.msra.mxu0 0
        %3352 = vmatprep.subr.bf16.mxu0 0
        %3353 = vmatpush2.bf16.msra.mxu0 0
        %3354 = vmatprep.subr.bf16.mxu0 0
        %3355 = vmatpush2.bf16.msra.mxu0 0
        %3356 = vmatprep.subr.bf16.mxu0 0
        %3357 = vmatpush2.bf16.msra.mxu0 0
        %3358 = vmatprep.subr.bf16.mxu0 0
        %3359 = vmatpush2.bf16.msra.mxu0 0
        %3360 = vmatprep.subr.bf16.mxu0 0
        %3361 = vmatpush2.bf16.msra.mxu0 0
        %3362 = vmatprep.subr.bf16.mxu0 0
        %3363 = vmatpush2.bf16.msra.mxu0 0
        %3364 = vmatprep.subr.bf16.mxu0 0
        %3365 = vmatpush2.bf16.msra.mxu0 0
        %3366 = vmatprep.mubr.bf16.mxu0 0
        %3367 = vmatmul.mubr.bf16.gmra.mxu0 %v3284
        %v3368 = vpop.f32.mrf.mxu0
        %v3369 = vadd.f32 0.0, %v3368
        %v3370 = vpop.f32.mrf.mxu0
        %v3371 = vpop.f32.mrf.mxu0
        %v3372 = vadd.f32 0.0, %v3371
        %v3373 = vpop.f32.mrf.mxu0
        %3374 = vdwg.mxu0
        %v3375 = vadd.f32 %v3237, %v3369
        %v3376 = vadd.f32 %v3238, %v3372
        %s3377 = scalar_lea.vmem %s4, 640
        %v3378 = vld [vmem:[%s3377] sm:$0xf]
        %v3379 = vld [vmem:[%s3377 + $0x4] sm:$0xf]
        %v3380 = vld [vmem:[%s3377 + $0x8] sm:$0xf]
        %v3381 = vld [vmem:[%s3377 + $0xc] sm:$0xf]
        %v3382 = vld [vmem:[%s3377 + $0x10] sm:$0xf]
        %v3383 = vld [vmem:[%s3377 + $0x14] sm:$0xf]
        %v3384 = vld [vmem:[%s3377 + $0x18] sm:$0xf]
        %v3385 = vld [vmem:[%s3377 + $0x1c] sm:$0xf]
        %v3386 = vld [vmem:[%s3377 + $0x20] sm:$0xf]
        %v3387 = vld [vmem:[%s3377 + $0x24] sm:$0xf]
        %v3388 = vld [vmem:[%s3377 + $0x28] sm:$0xf]
        %v3389 = vld [vmem:[%s3377 + $0x2c] sm:$0xf]
        %v3390 = vld [vmem:[%s3377 + $0x30] sm:$0xf]
        %v3391 = vld [vmem:[%s3377 + $0x34] sm:$0xf]
        %v3392 = vld [vmem:[%s3377 + $0x38] sm:$0xf]
        %v3393 = vld [vmem:[%s3377 + $0x3c] sm:$0xf]
        %v3394 = vrot.slane %v3102, 2
        %v3395 = vrot.slane %v3103, 1
        %v3396 = vsel %vm2013, %v3395, %v3394
        %v3397 = vsel %vm2016, %v3104, %v3396
        %v3398 = vrot.slane %v3105, 7
        %v3399 = vsel %vm2019, %v3398, %v3397
        %v3400 = vrot.slane %v3106, 6
        %v3401 = vsel %vm2022, %v3400, %v3399
        %v3402 = vrot.slane %v3107, 5
        %v3403 = vsel %vm2025, %v3402, %v3401
        %v3404 = vrot.slane %v3108, 4
        %v3405 = vsel %vm2028, %v3404, %v3403
        %v3406 = vrot.slane %v3109, 3
        %v3407 = vsel %vm2031, %v3406, %v3405
        %v3408 = vrot.slane %v3110, 2
        %v3409 = vrot.slane %v3111, 1
        %v3410 = vsel %vm2013, %v3409, %v3408
        %v3411 = vsel %vm2016, %v3112, %v3410
        %v3412 = vrot.slane %v3113, 7
        %v3413 = vsel %vm2019, %v3412, %v3411
        %v3414 = vrot.slane %v3114, 6
        %v3415 = vsel %vm2022, %v3414, %v3413
        %v3416 = vrot.slane %v3115, 5
        %v3417 = vsel %vm2025, %v3416, %v3415
        %v3418 = vrot.slane %v3116, 4
        %v3419 = vsel %vm2028, %v3418, %v3417
        %v3420 = vrot.slane %v3117, 3
        %v3421 = vsel %vm2031, %v3420, %v3419
        %v3422 = vpack.c.b16 %v3421, %v3407
        %v3440 = vunpack.c.l.b16 %v3378
        %v3441 = vunpack.c.l.b16 %v3379
        %v3442 = vunpack.c.l.b16 %v3380
        %v3443 = vunpack.c.l.b16 %v3381
        %v3444 = vunpack.c.l.b16 %v3382
        %v3445 = vunpack.c.l.b16 %v3383
        %v3446 = vunpack.c.l.b16 %v3384
        %v3447 = vunpack.c.l.b16 %v3385
        %v3448 = vunpack.c.l.b16 %v3386
        %v3449 = vunpack.c.l.b16 %v3387
        %v3450 = vunpack.c.l.b16 %v3388
        %v3451 = vunpack.c.l.b16 %v3389
        %v3452 = vunpack.c.l.b16 %v3390
        %v3453 = vunpack.c.l.b16 %v3391
        %v3454 = vunpack.c.l.b16 %v3392
        %v3455 = vunpack.c.l.b16 %v3393
        %v3456 = vpack.c.b16 %v3441, %v3440
        %v3457 = vpack.c.b16 %v3443, %v3442
        %v3458 = vpack.c.b16 %v3445, %v3444
        %v3459 = vpack.c.b16 %v3447, %v3446
        %v3460 = vpack.c.b16 %v3449, %v3448
        %v3461 = vpack.c.b16 %v3451, %v3450
        %v3462 = vpack.c.b16 %v3453, %v3452
        %v3463 = vpack.c.b16 %v3455, %v3454
        %3472 = vmatprep.subr.bf16.mxu0 0
        %3473 = vmatpush1.bf16.msra.mxu0 %v3463
        %3474 = vmatprep.subr.bf16.mxu0 0
        %3475 = vmatpush1.bf16.msra.mxu0 %v3462
        %3476 = vmatprep.subr.bf16.mxu0 0
        %3477 = vmatpush1.bf16.msra.mxu0 %v3461
        %3478 = vmatprep.subr.bf16.mxu0 0
        %3479 = vmatpush1.bf16.msra.mxu0 %v3460
        %3480 = vmatprep.subr.bf16.mxu0 0
        %3481 = vmatpush1.bf16.msra.mxu0 %v3459
        %3482 = vmatprep.subr.bf16.mxu0 0
        %3483 = vmatpush1.bf16.msra.mxu0 %v3458
        %3484 = vmatprep.subr.bf16.mxu0 0
        %3485 = vmatpush1.bf16.msra.mxu0 %v3457
        %3486 = vmatprep.subr.bf16.mxu0 0
        %3487 = vmatpush1.bf16.msra.mxu0 %v3456
        %3488 = vmatprep.subr.bf16.mxu0 0
        %3489 = vmatpush2.bf16.msra.mxu0 0
        %3490 = vmatprep.subr.bf16.mxu0 0
        %3491 = vmatpush2.bf16.msra.mxu0 0
        %3492 = vmatprep.subr.bf16.mxu0 0
        %3493 = vmatpush2.bf16.msra.mxu0 0
        %3494 = vmatprep.subr.bf16.mxu0 0
        %3495 = vmatpush2.bf16.msra.mxu0 0
        %3496 = vmatprep.subr.bf16.mxu0 0
        %3497 = vmatpush2.bf16.msra.mxu0 0
        %3498 = vmatprep.subr.bf16.mxu0 0
        %3499 = vmatpush2.bf16.msra.mxu0 0
        %3500 = vmatprep.subr.bf16.mxu0 0
        %3501 = vmatpush2.bf16.msra.mxu0 0
        %3502 = vmatprep.subr.bf16.mxu0 0
        %3503 = vmatpush2.bf16.msra.mxu0 0
        %3504 = vmatprep.mubr.bf16.mxu0 0
        %3505 = vmatmul.mubr.bf16.gmra.mxu0 %v3422
        %v3506 = vpop.f32.mrf.mxu0
        %v3507 = vadd.f32 0.0, %v3506
        %v3508 = vpop.f32.mrf.mxu0
        %v3509 = vpop.f32.mrf.mxu0
        %v3510 = vadd.f32 0.0, %v3509
        %v3511 = vpop.f32.mrf.mxu0
        %3512 = vdwg.mxu0
        %v3513 = vadd.f32 %v3375, %v3507
        %v3514 = vadd.f32 %v3376, %v3510
        %s3515 = scalar_lea.vmem %s4, 704
        %v3516 = vld [vmem:[%s3515] sm:$0xf]
        %v3517 = vld [vmem:[%s3515 + $0x4] sm:$0xf]
        %v3518 = vld [vmem:[%s3515 + $0x8] sm:$0xf]
        %v3519 = vld [vmem:[%s3515 + $0xc] sm:$0xf]
        %v3520 = vld [vmem:[%s3515 + $0x10] sm:$0xf]
        %v3521 = vld [vmem:[%s3515 + $0x14] sm:$0xf]
        %v3522 = vld [vmem:[%s3515 + $0x18] sm:$0xf]
        %v3523 = vld [vmem:[%s3515 + $0x1c] sm:$0xf]
        %v3524 = vld [vmem:[%s3515 + $0x20] sm:$0xf]
        %v3525 = vld [vmem:[%s3515 + $0x24] sm:$0xf]
        %v3526 = vld [vmem:[%s3515 + $0x28] sm:$0xf]
        %v3527 = vld [vmem:[%s3515 + $0x2c] sm:$0xf]
        %v3528 = vld [vmem:[%s3515 + $0x30] sm:$0xf]
        %v3529 = vld [vmem:[%s3515 + $0x34] sm:$0xf]
        %v3530 = vld [vmem:[%s3515 + $0x38] sm:$0xf]
        %v3531 = vld [vmem:[%s3515 + $0x3c] sm:$0xf]
        %v3532 = vrot.slane %v3102, 3
        %v3533 = vrot.slane %v3103, 2
        %v3534 = vsel %vm2013, %v3533, %v3532
        %v3535 = vrot.slane %v3104, 1
        %v3536 = vsel %vm2016, %v3535, %v3534
        %v3537 = vsel %vm2019, %v3105, %v3536
        %v3538 = vrot.slane %v3106, 7
        %v3539 = vsel %vm2022, %v3538, %v3537
        %v3540 = vrot.slane %v3107, 6
        %v3541 = vsel %vm2025, %v3540, %v3539
        %v3542 = vrot.slane %v3108, 5
        %v3543 = vsel %vm2028, %v3542, %v3541
        %v3544 = vrot.slane %v3109, 4
        %v3545 = vsel %vm2031, %v3544, %v3543
        %v3546 = vrot.slane %v3110, 3
        %v3547 = vrot.slane %v3111, 2
        %v3548 = vsel %vm2013, %v3547, %v3546
        %v3549 = vrot.slane %v3112, 1
        %v3550 = vsel %vm2016, %v3549, %v3548
        %v3551 = vsel %vm2019, %v3113, %v3550
        %v3552 = vrot.slane %v3114, 7
        %v3553 = vsel %vm2022, %v3552, %v3551
        %v3554 = vrot.slane %v3115, 6
        %v3555 = vsel %vm2025, %v3554, %v3553
        %v3556 = vrot.slane %v3116, 5
        %v3557 = vsel %vm2028, %v3556, %v3555
        %v3558 = vrot.slane %v3117, 4
        %v3559 = vsel %vm2031, %v3558, %v3557
        %v3560 = vpack.c.b16 %v3559, %v3545
        %v3578 = vunpack.c.l.b16 %v3516
        %v3579 = vunpack.c.l.b16 %v3517
        %v3580 = vunpack.c.l.b16 %v3518
        %v3581 = vunpack.c.l.b16 %v3519
        %v3582 = vunpack.c.l.b16 %v3520
        %v3583 = vunpack.c.l.b16 %v3521
        %v3584 = vunpack.c.l.b16 %v3522
        %v3585 = vunpack.c.l.b16 %v3523
        %v3586 = vunpack.c.l.b16 %v3524
        %v3587 = vunpack.c.l.b16 %v3525
        %v3588 = vunpack.c.l.b16 %v3526
        %v3589 = vunpack.c.l.b16 %v3527
        %v3590 = vunpack.c.l.b16 %v3528
        %v3591 = vunpack.c.l.b16 %v3529
        %v3592 = vunpack.c.l.b16 %v3530
        %v3593 = vunpack.c.l.b16 %v3531
        %v3594 = vpack.c.b16 %v3579, %v3578
        %v3595 = vpack.c.b16 %v3581, %v3580
        %v3596 = vpack.c.b16 %v3583, %v3582
        %v3597 = vpack.c.b16 %v3585, %v3584
        %v3598 = vpack.c.b16 %v3587, %v3586
        %v3599 = vpack.c.b16 %v3589, %v3588
        %v3600 = vpack.c.b16 %v3591, %v3590
        %v3601 = vpack.c.b16 %v3593, %v3592
        %3610 = vmatprep.subr.bf16.mxu0 0
        %3611 = vmatpush1.bf16.msra.mxu0 %v3601
        %3612 = vmatprep.subr.bf16.mxu0 0
        %3613 = vmatpush1.bf16.msra.mxu0 %v3600
        %3614 = vmatprep.subr.bf16.mxu0 0
        %3615 = vmatpush1.bf16.msra.mxu0 %v3599
        %3616 = vmatprep.subr.bf16.mxu0 0
        %3617 = vmatpush1.bf16.msra.mxu0 %v3598
        %3618 = vmatprep.subr.bf16.mxu0 0
        %3619 = vmatpush1.bf16.msra.mxu0 %v3597
        %3620 = vmatprep.subr.bf16.mxu0 0
        %3621 = vmatpush1.bf16.msra.mxu0 %v3596
        %3622 = vmatprep.subr.bf16.mxu0 0
        %3623 = vmatpush1.bf16.msra.mxu0 %v3595
        %3624 = vmatprep.subr.bf16.mxu0 0
        %3625 = vmatpush1.bf16.msra.mxu0 %v3594
        %3626 = vmatprep.subr.bf16.mxu0 0
        %3627 = vmatpush2.bf16.msra.mxu0 0
        %3628 = vmatprep.subr.bf16.mxu0 0
        %3629 = vmatpush2.bf16.msra.mxu0 0
        %3630 = vmatprep.subr.bf16.mxu0 0
        %3631 = vmatpush2.bf16.msra.mxu0 0
        %3632 = vmatprep.subr.bf16.mxu0 0
        %3633 = vmatpush2.bf16.msra.mxu0 0
        %3634 = vmatprep.subr.bf16.mxu0 0
        %3635 = vmatpush2.bf16.msra.mxu0 0
        %3636 = vmatprep.subr.bf16.mxu0 0
        %3637 = vmatpush2.bf16.msra.mxu0 0
        %3638 = vmatprep.subr.bf16.mxu0 0
        %3639 = vmatpush2.bf16.msra.mxu0 0
        %3640 = vmatprep.subr.bf16.mxu0 0
        %3641 = vmatpush2.bf16.msra.mxu0 0
        %3642 = vmatprep.mubr.bf16.mxu0 0
        %3643 = vmatmul.mubr.bf16.gmra.mxu0 %v3560
        %v3644 = vpop.f32.mrf.mxu0
        %v3645 = vadd.f32 0.0, %v3644
        %v3646 = vpop.f32.mrf.mxu0
        %v3647 = vpop.f32.mrf.mxu0
        %v3648 = vadd.f32 0.0, %v3647
        %v3649 = vpop.f32.mrf.mxu0
        %3650 = vdwg.mxu0
        %v3651 = vadd.f32 %v3513, %v3645
        %v3652 = vadd.f32 %v3514, %v3648
        %s3653 = scalar_lea.vmem %s4, 768
        %v3654 = vld [vmem:[%s3653] sm:$0xf]
        %v3655 = vld [vmem:[%s3653 + $0x4] sm:$0xf]
        %v3656 = vld [vmem:[%s3653 + $0x8] sm:$0xf]
        %v3657 = vld [vmem:[%s3653 + $0xc] sm:$0xf]
        %v3658 = vld [vmem:[%s3653 + $0x10] sm:$0xf]
        %v3659 = vld [vmem:[%s3653 + $0x14] sm:$0xf]
        %v3660 = vld [vmem:[%s3653 + $0x18] sm:$0xf]
        %v3661 = vld [vmem:[%s3653 + $0x1c] sm:$0xf]
        %v3662 = vld [vmem:[%s3653 + $0x20] sm:$0xf]
        %v3663 = vld [vmem:[%s3653 + $0x24] sm:$0xf]
        %v3664 = vld [vmem:[%s3653 + $0x28] sm:$0xf]
        %v3665 = vld [vmem:[%s3653 + $0x2c] sm:$0xf]
        %v3666 = vld [vmem:[%s3653 + $0x30] sm:$0xf]
        %v3667 = vld [vmem:[%s3653 + $0x34] sm:$0xf]
        %v3668 = vld [vmem:[%s3653 + $0x38] sm:$0xf]
        %v3669 = vld [vmem:[%s3653 + $0x3c] sm:$0xf]
        %v3670 = vrot.slane %v3102, 4
        %v3671 = vrot.slane %v3103, 3
        %v3672 = vsel %vm2013, %v3671, %v3670
        %v3673 = vrot.slane %v3104, 2
        %v3674 = vsel %vm2016, %v3673, %v3672
        %v3675 = vrot.slane %v3105, 1
        %v3676 = vsel %vm2019, %v3675, %v3674
        %v3677 = vsel %vm2022, %v3106, %v3676
        %v3678 = vrot.slane %v3107, 7
        %v3679 = vsel %vm2025, %v3678, %v3677
        %v3680 = vrot.slane %v3108, 6
        %v3681 = vsel %vm2028, %v3680, %v3679
        %v3682 = vrot.slane %v3109, 5
        %v3683 = vsel %vm2031, %v3682, %v3681
        %v3684 = vrot.slane %v3110, 4
        %v3685 = vrot.slane %v3111, 3
        %v3686 = vsel %vm2013, %v3685, %v3684
        %v3687 = vrot.slane %v3112, 2
        %v3688 = vsel %vm2016, %v3687, %v3686
        %v3689 = vrot.slane %v3113, 1
        %v3690 = vsel %vm2019, %v3689, %v3688
        %v3691 = vsel %vm2022, %v3114, %v3690
        %v3692 = vrot.slane %v3115, 7
        %v3693 = vsel %vm2025, %v3692, %v3691
        %v3694 = vrot.slane %v3116, 6
        %v3695 = vsel %vm2028, %v3694, %v3693
        %v3696 = vrot.slane %v3117, 5
        %v3697 = vsel %vm2031, %v3696, %v3695
        %v3698 = vpack.c.b16 %v3697, %v3683
        %v3716 = vunpack.c.l.b16 %v3654
        %v3717 = vunpack.c.l.b16 %v3655
        %v3718 = vunpack.c.l.b16 %v3656
        %v3719 = vunpack.c.l.b16 %v3657
        %v3720 = vunpack.c.l.b16 %v3658
        %v3721 = vunpack.c.l.b16 %v3659
        %v3722 = vunpack.c.l.b16 %v3660
        %v3723 = vunpack.c.l.b16 %v3661
        %v3724 = vunpack.c.l.b16 %v3662
        %v3725 = vunpack.c.l.b16 %v3663
        %v3726 = vunpack.c.l.b16 %v3664
        %v3727 = vunpack.c.l.b16 %v3665
        %v3728 = vunpack.c.l.b16 %v3666
        %v3729 = vunpack.c.l.b16 %v3667
        %v3730 = vunpack.c.l.b16 %v3668
        %v3731 = vunpack.c.l.b16 %v3669
        %v3732 = vpack.c.b16 %v3717, %v3716
        %v3733 = vpack.c.b16 %v3719, %v3718
        %v3734 = vpack.c.b16 %v3721, %v3720
        %v3735 = vpack.c.b16 %v3723, %v3722
        %v3736 = vpack.c.b16 %v3725, %v3724
        %v3737 = vpack.c.b16 %v3727, %v3726
        %v3738 = vpack.c.b16 %v3729, %v3728
        %v3739 = vpack.c.b16 %v3731, %v3730
        %3748 = vmatprep.subr.bf16.mxu0 0
        %3749 = vmatpush1.bf16.msra.mxu0 %v3739
        %3750 = vmatprep.subr.bf16.mxu0 0
        %3751 = vmatpush1.bf16.msra.mxu0 %v3738
        %3752 = vmatprep.subr.bf16.mxu0 0
        %3753 = vmatpush1.bf16.msra.mxu0 %v3737
        %3754 = vmatprep.subr.bf16.mxu0 0
        %3755 = vmatpush1.bf16.msra.mxu0 %v3736
        %3756 = vmatprep.subr.bf16.mxu0 0
        %3757 = vmatpush1.bf16.msra.mxu0 %v3735
        %3758 = vmatprep.subr.bf16.mxu0 0
        %3759 = vmatpush1.bf16.msra.mxu0 %v3734
        %3760 = vmatprep.subr.bf16.mxu0 0
        %3761 = vmatpush1.bf16.msra.mxu0 %v3733
        %3762 = vmatprep.subr.bf16.mxu0 0
        %3763 = vmatpush1.bf16.msra.mxu0 %v3732
        %3764 = vmatprep.subr.bf16.mxu0 0
        %3765 = vmatpush2.bf16.msra.mxu0 0
        %3766 = vmatprep.subr.bf16.mxu0 0
        %3767 = vmatpush2.bf16.msra.mxu0 0
        %3768 = vmatprep.subr.bf16.mxu0 0
        %3769 = vmatpush2.bf16.msra.mxu0 0
        %3770 = vmatprep.subr.bf16.mxu0 0
        %3771 = vmatpush2.bf16.msra.mxu0 0
        %3772 = vmatprep.subr.bf16.mxu0 0
        %3773 = vmatpush2.bf16.msra.mxu0 0
        %3774 = vmatprep.subr.bf16.mxu0 0
        %3775 = vmatpush2.bf16.msra.mxu0 0
        %3776 = vmatprep.subr.bf16.mxu0 0
        %3777 = vmatpush2.bf16.msra.mxu0 0
        %3778 = vmatprep.subr.bf16.mxu0 0
        %3779 = vmatpush2.bf16.msra.mxu0 0
        %3780 = vmatprep.mubr.bf16.mxu0 0
        %3781 = vmatmul.mubr.bf16.gmra.mxu0 %v3698
        %v3782 = vpop.f32.mrf.mxu0
        %v3783 = vadd.f32 0.0, %v3782
        %v3784 = vpop.f32.mrf.mxu0
        %v3785 = vpop.f32.mrf.mxu0
        %v3786 = vadd.f32 0.0, %v3785
        %v3787 = vpop.f32.mrf.mxu0
        %3788 = vdwg.mxu0
        %v3789 = vadd.f32 %v3651, %v3783
        %v3790 = vadd.f32 %v3652, %v3786
        %s3791 = scalar_lea.vmem %s4, 832
        %v3792 = vld [vmem:[%s3791] sm:$0xf]
        %v3793 = vld [vmem:[%s3791 + $0x4] sm:$0xf]
        %v3794 = vld [vmem:[%s3791 + $0x8] sm:$0xf]
        %v3795 = vld [vmem:[%s3791 + $0xc] sm:$0xf]
        %v3796 = vld [vmem:[%s3791 + $0x10] sm:$0xf]
        %v3797 = vld [vmem:[%s3791 + $0x14] sm:$0xf]
        %v3798 = vld [vmem:[%s3791 + $0x18] sm:$0xf]
        %v3799 = vld [vmem:[%s3791 + $0x1c] sm:$0xf]
        %v3800 = vld [vmem:[%s3791 + $0x20] sm:$0xf]
        %v3801 = vld [vmem:[%s3791 + $0x24] sm:$0xf]
        %v3802 = vld [vmem:[%s3791 + $0x28] sm:$0xf]
        %v3803 = vld [vmem:[%s3791 + $0x2c] sm:$0xf]
        %v3804 = vld [vmem:[%s3791 + $0x30] sm:$0xf]
        %v3805 = vld [vmem:[%s3791 + $0x34] sm:$0xf]
        %v3806 = vld [vmem:[%s3791 + $0x38] sm:$0xf]
        %v3807 = vld [vmem:[%s3791 + $0x3c] sm:$0xf]
        %v3808 = vrot.slane %v3102, 5
        %v3809 = vrot.slane %v3103, 4
        %v3810 = vsel %vm2013, %v3809, %v3808
        %v3811 = vrot.slane %v3104, 3
        %v3812 = vsel %vm2016, %v3811, %v3810
        %v3813 = vrot.slane %v3105, 2
        %v3814 = vsel %vm2019, %v3813, %v3812
        %v3815 = vrot.slane %v3106, 1
        %v3816 = vsel %vm2022, %v3815, %v3814
        %v3817 = vsel %vm2025, %v3107, %v3816
        %v3818 = vrot.slane %v3108, 7
        %v3819 = vsel %vm2028, %v3818, %v3817
        %v3820 = vrot.slane %v3109, 6
        %v3821 = vsel %vm2031, %v3820, %v3819
        %v3822 = vrot.slane %v3110, 5
        %v3823 = vrot.slane %v3111, 4
        %v3824 = vsel %vm2013, %v3823, %v3822
        %v3825 = vrot.slane %v3112, 3
        %v3826 = vsel %vm2016, %v3825, %v3824
        %v3827 = vrot.slane %v3113, 2
        %v3828 = vsel %vm2019, %v3827, %v3826
        %v3829 = vrot.slane %v3114, 1
        %v3830 = vsel %vm2022, %v3829, %v3828
        %v3831 = vsel %vm2025, %v3115, %v3830
        %v3832 = vrot.slane %v3116, 7
        %v3833 = vsel %vm2028, %v3832, %v3831
        %v3834 = vrot.slane %v3117, 6
        %v3835 = vsel %vm2031, %v3834, %v3833
        %v3836 = vpack.c.b16 %v3835, %v3821
        %v3854 = vunpack.c.l.b16 %v3792
        %v3855 = vunpack.c.l.b16 %v3793
        %v3856 = vunpack.c.l.b16 %v3794
        %v3857 = vunpack.c.l.b16 %v3795
        %v3858 = vunpack.c.l.b16 %v3796
        %v3859 = vunpack.c.l.b16 %v3797
        %v3860 = vunpack.c.l.b16 %v3798
        %v3861 = vunpack.c.l.b16 %v3799
        %v3862 = vunpack.c.l.b16 %v3800
        %v3863 = vunpack.c.l.b16 %v3801
        %v3864 = vunpack.c.l.b16 %v3802
        %v3865 = vunpack.c.l.b16 %v3803
        %v3866 = vunpack.c.l.b16 %v3804
        %v3867 = vunpack.c.l.b16 %v3805
        %v3868 = vunpack.c.l.b16 %v3806
        %v3869 = vunpack.c.l.b16 %v3807
        %v3870 = vpack.c.b16 %v3855, %v3854
        %v3871 = vpack.c.b16 %v3857, %v3856
        %v3872 = vpack.c.b16 %v3859, %v3858
        %v3873 = vpack.c.b16 %v3861, %v3860
        %v3874 = vpack.c.b16 %v3863, %v3862
        %v3875 = vpack.c.b16 %v3865, %v3864
        %v3876 = vpack.c.b16 %v3867, %v3866
        %v3877 = vpack.c.b16 %v3869, %v3868
        %3886 = vmatprep.subr.bf16.mxu0 0
        %3887 = vmatpush1.bf16.msra.mxu0 %v3877
        %3888 = vmatprep.subr.bf16.mxu0 0
        %3889 = vmatpush1.bf16.msra.mxu0 %v3876
        %3890 = vmatprep.subr.bf16.mxu0 0
        %3891 = vmatpush1.bf16.msra.mxu0 %v3875
        %3892 = vmatprep.subr.bf16.mxu0 0
        %3893 = vmatpush1.bf16.msra.mxu0 %v3874
        %3894 = vmatprep.subr.bf16.mxu0 0
        %3895 = vmatpush1.bf16.msra.mxu0 %v3873
        %3896 = vmatprep.subr.bf16.mxu0 0
        %3897 = vmatpush1.bf16.msra.mxu0 %v3872
        %3898 = vmatprep.subr.bf16.mxu0 0
        %3899 = vmatpush1.bf16.msra.mxu0 %v3871
        %3900 = vmatprep.subr.bf16.mxu0 0
        %3901 = vmatpush1.bf16.msra.mxu0 %v3870
        %3902 = vmatprep.subr.bf16.mxu0 0
        %3903 = vmatpush2.bf16.msra.mxu0 0
        %3904 = vmatprep.subr.bf16.mxu0 0
        %3905 = vmatpush2.bf16.msra.mxu0 0
        %3906 = vmatprep.subr.bf16.mxu0 0
        %3907 = vmatpush2.bf16.msra.mxu0 0
        %3908 = vmatprep.subr.bf16.mxu0 0
        %3909 = vmatpush2.bf16.msra.mxu0 0
        %3910 = vmatprep.subr.bf16.mxu0 0
        %3911 = vmatpush2.bf16.msra.mxu0 0
        %3912 = vmatprep.subr.bf16.mxu0 0
        %3913 = vmatpush2.bf16.msra.mxu0 0
        %3914 = vmatprep.subr.bf16.mxu0 0
        %3915 = vmatpush2.bf16.msra.mxu0 0
        %3916 = vmatprep.subr.bf16.mxu0 0
        %3917 = vmatpush2.bf16.msra.mxu0 0
        %3918 = vmatprep.mubr.bf16.mxu0 0
        %3919 = vmatmul.mubr.bf16.gmra.mxu0 %v3836
        %v3920 = vpop.f32.mrf.mxu0
        %v3921 = vadd.f32 0.0, %v3920
        %v3922 = vpop.f32.mrf.mxu0
        %v3923 = vpop.f32.mrf.mxu0
        %v3924 = vadd.f32 0.0, %v3923
        %v3925 = vpop.f32.mrf.mxu0
        %3926 = vdwg.mxu0
        %v3927 = vadd.f32 %v3789, %v3921
        %v3928 = vadd.f32 %v3790, %v3924
        %s3929 = scalar_lea.vmem %s4, 896
        %v3930 = vld [vmem:[%s3929] sm:$0xf]
        %v3931 = vld [vmem:[%s3929 + $0x4] sm:$0xf]
        %v3932 = vld [vmem:[%s3929 + $0x8] sm:$0xf]
        %v3933 = vld [vmem:[%s3929 + $0xc] sm:$0xf]
        %v3934 = vld [vmem:[%s3929 + $0x10] sm:$0xf]
        %v3935 = vld [vmem:[%s3929 + $0x14] sm:$0xf]
        %v3936 = vld [vmem:[%s3929 + $0x18] sm:$0xf]
        %v3937 = vld [vmem:[%s3929 + $0x1c] sm:$0xf]
        %v3938 = vld [vmem:[%s3929 + $0x20] sm:$0xf]
        %v3939 = vld [vmem:[%s3929 + $0x24] sm:$0xf]
        %v3940 = vld [vmem:[%s3929 + $0x28] sm:$0xf]
        %v3941 = vld [vmem:[%s3929 + $0x2c] sm:$0xf]
        %v3942 = vld [vmem:[%s3929 + $0x30] sm:$0xf]
        %v3943 = vld [vmem:[%s3929 + $0x34] sm:$0xf]
        %v3944 = vld [vmem:[%s3929 + $0x38] sm:$0xf]
        %v3945 = vld [vmem:[%s3929 + $0x3c] sm:$0xf]
        %v3946 = vrot.slane %v3102, 6
        %v3947 = vrot.slane %v3103, 5
        %v3948 = vsel %vm2013, %v3947, %v3946
        %v3949 = vrot.slane %v3104, 4
        %v3950 = vsel %vm2016, %v3949, %v3948
        %v3951 = vrot.slane %v3105, 3
        %v3952 = vsel %vm2019, %v3951, %v3950
        %v3953 = vrot.slane %v3106, 2
        %v3954 = vsel %vm2022, %v3953, %v3952
        %v3955 = vrot.slane %v3107, 1
        %v3956 = vsel %vm2025, %v3955, %v3954
        %v3957 = vsel %vm2028, %v3108, %v3956
        %v3958 = vrot.slane %v3109, 7
        %v3959 = vsel %vm2031, %v3958, %v3957
        %v3960 = vrot.slane %v3110, 6
        %v3961 = vrot.slane %v3111, 5
        %v3962 = vsel %vm2013, %v3961, %v3960
        %v3963 = vrot.slane %v3112, 4
        %v3964 = vsel %vm2016, %v3963, %v3962
        %v3965 = vrot.slane %v3113, 3
        %v3966 = vsel %vm2019, %v3965, %v3964
        %v3967 = vrot.slane %v3114, 2
        %v3968 = vsel %vm2022, %v3967, %v3966
        %v3969 = vrot.slane %v3115, 1
        %v3970 = vsel %vm2025, %v3969, %v3968
        %v3971 = vsel %vm2028, %v3116, %v3970
        %v3972 = vrot.slane %v3117, 7
        %v3973 = vsel %vm2031, %v3972, %v3971
        %v3974 = vpack.c.b16 %v3973, %v3959
        %v3992 = vunpack.c.l.b16 %v3930
        %v3993 = vunpack.c.l.b16 %v3931
        %v3994 = vunpack.c.l.b16 %v3932
        %v3995 = vunpack.c.l.b16 %v3933
        %v3996 = vunpack.c.l.b16 %v3934
        %v3997 = vunpack.c.l.b16 %v3935
        %v3998 = vunpack.c.l.b16 %v3936
        %v3999 = vunpack.c.l.b16 %v3937
        %v4000 = vunpack.c.l.b16 %v3938
        %v4001 = vunpack.c.l.b16 %v3939
        %v4002 = vunpack.c.l.b16 %v3940
        %v4003 = vunpack.c.l.b16 %v3941
        %v4004 = vunpack.c.l.b16 %v3942
        %v4005 = vunpack.c.l.b16 %v3943
        %v4006 = vunpack.c.l.b16 %v3944
        %v4007 = vunpack.c.l.b16 %v3945
        %v4008 = vpack.c.b16 %v3993, %v3992
        %v4009 = vpack.c.b16 %v3995, %v3994
        %v4010 = vpack.c.b16 %v3997, %v3996
        %v4011 = vpack.c.b16 %v3999, %v3998
        %v4012 = vpack.c.b16 %v4001, %v4000
        %v4013 = vpack.c.b16 %v4003, %v4002
        %v4014 = vpack.c.b16 %v4005, %v4004
        %v4015 = vpack.c.b16 %v4007, %v4006
        %4024 = vmatprep.subr.bf16.mxu0 0
        %4025 = vmatpush1.bf16.msra.mxu0 %v4015
        %4026 = vmatprep.subr.bf16.mxu0 0
        %4027 = vmatpush1.bf16.msra.mxu0 %v4014
        %4028 = vmatprep.subr.bf16.mxu0 0
        %4029 = vmatpush1.bf16.msra.mxu0 %v4013
        %4030 = vmatprep.subr.bf16.mxu0 0
        %4031 = vmatpush1.bf16.msra.mxu0 %v4012
        %4032 = vmatprep.subr.bf16.mxu0 0
        %4033 = vmatpush1.bf16.msra.mxu0 %v4011
        %4034 = vmatprep.subr.bf16.mxu0 0
        %4035 = vmatpush1.bf16.msra.mxu0 %v4010
        %4036 = vmatprep.subr.bf16.mxu0 0
        %4037 = vmatpush1.bf16.msra.mxu0 %v4009
        %4038 = vmatprep.subr.bf16.mxu0 0
        %4039 = vmatpush1.bf16.msra.mxu0 %v4008
        %4040 = vmatprep.subr.bf16.mxu0 0
        %4041 = vmatpush2.bf16.msra.mxu0 0
        %4042 = vmatprep.subr.bf16.mxu0 0
        %4043 = vmatpush2.bf16.msra.mxu0 0
        %4044 = vmatprep.subr.bf16.mxu0 0
        %4045 = vmatpush2.bf16.msra.mxu0 0
        %4046 = vmatprep.subr.bf16.mxu0 0
        %4047 = vmatpush2.bf16.msra.mxu0 0
        %4048 = vmatprep.subr.bf16.mxu0 0
        %4049 = vmatpush2.bf16.msra.mxu0 0
        %4050 = vmatprep.subr.bf16.mxu0 0
        %4051 = vmatpush2.bf16.msra.mxu0 0
        %4052 = vmatprep.subr.bf16.mxu0 0
        %4053 = vmatpush2.bf16.msra.mxu0 0
        %4054 = vmatprep.subr.bf16.mxu0 0
        %4055 = vmatpush2.bf16.msra.mxu0 0
        %4056 = vmatprep.mubr.bf16.mxu0 0
        %4057 = vmatmul.mubr.bf16.gmra.mxu0 %v3974
        %v4058 = vpop.f32.mrf.mxu0
        %v4059 = vadd.f32 0.0, %v4058
        %v4060 = vpop.f32.mrf.mxu0
        %v4061 = vpop.f32.mrf.mxu0
        %v4062 = vadd.f32 0.0, %v4061
        %v4063 = vpop.f32.mrf.mxu0
        %4064 = vdwg.mxu0
        %v4065 = vadd.f32 %v3927, %v4059
        %v4066 = vadd.f32 %v3928, %v4062
        %s4067 = scalar_lea.vmem %s4, 960
        %v4068 = vld [vmem:[%s4067] sm:$0xf]
        %v4069 = vld [vmem:[%s4067 + $0x4] sm:$0xf]
        %v4070 = vld [vmem:[%s4067 + $0x8] sm:$0xf]
        %v4071 = vld [vmem:[%s4067 + $0xc] sm:$0xf]
        %v4072 = vld [vmem:[%s4067 + $0x10] sm:$0xf]
        %v4073 = vld [vmem:[%s4067 + $0x14] sm:$0xf]
        %v4074 = vld [vmem:[%s4067 + $0x18] sm:$0xf]
        %v4075 = vld [vmem:[%s4067 + $0x1c] sm:$0xf]
        %v4076 = vld [vmem:[%s4067 + $0x20] sm:$0xf]
        %v4077 = vld [vmem:[%s4067 + $0x24] sm:$0xf]
        %v4078 = vld [vmem:[%s4067 + $0x28] sm:$0xf]
        %v4079 = vld [vmem:[%s4067 + $0x2c] sm:$0xf]
        %v4080 = vld [vmem:[%s4067 + $0x30] sm:$0xf]
        %v4081 = vld [vmem:[%s4067 + $0x34] sm:$0xf]
        %v4082 = vld [vmem:[%s4067 + $0x38] sm:$0xf]
        %v4083 = vld [vmem:[%s4067 + $0x3c] sm:$0xf]
        %v4084 = vrot.slane %v3102, 7
        %v4085 = vrot.slane %v3103, 6
        %v4086 = vsel %vm2013, %v4085, %v4084
        %v4087 = vrot.slane %v3104, 5
        %v4088 = vsel %vm2016, %v4087, %v4086
        %v4089 = vrot.slane %v3105, 4
        %v4090 = vsel %vm2019, %v4089, %v4088
        %v4091 = vrot.slane %v3106, 3
        %v4092 = vsel %vm2022, %v4091, %v4090
        %v4093 = vrot.slane %v3107, 2
        %v4094 = vsel %vm2025, %v4093, %v4092
        %v4095 = vrot.slane %v3108, 1
        %v4096 = vsel %vm2028, %v4095, %v4094
        %v4097 = vsel %vm2031, %v3109, %v4096
        %v4098 = vrot.slane %v3110, 7
        %v4099 = vrot.slane %v3111, 6
        %v4100 = vsel %vm2013, %v4099, %v4098
        %v4101 = vrot.slane %v3112, 5
        %v4102 = vsel %vm2016, %v4101, %v4100
        %v4103 = vrot.slane %v3113, 4
        %v4104 = vsel %vm2019, %v4103, %v4102
        %v4105 = vrot.slane %v3114, 3
        %v4106 = vsel %vm2022, %v4105, %v4104
        %v4107 = vrot.slane %v3115, 2
        %v4108 = vsel %vm2025, %v4107, %v4106
        %v4109 = vrot.slane %v3116, 1
        %v4110 = vsel %vm2028, %v4109, %v4108
        %v4111 = vsel %vm2031, %v3117, %v4110
        %v4112 = vpack.c.b16 %v4111, %v4097
        %v4130 = vunpack.c.l.b16 %v4068
        %v4131 = vunpack.c.l.b16 %v4069
        %v4132 = vunpack.c.l.b16 %v4070
        %v4133 = vunpack.c.l.b16 %v4071
        %v4134 = vunpack.c.l.b16 %v4072
        %v4135 = vunpack.c.l.b16 %v4073
        %v4136 = vunpack.c.l.b16 %v4074
        %v4137 = vunpack.c.l.b16 %v4075
        %v4138 = vunpack.c.l.b16 %v4076
        %v4139 = vunpack.c.l.b16 %v4077
        %v4140 = vunpack.c.l.b16 %v4078
        %v4141 = vunpack.c.l.b16 %v4079
        %v4142 = vunpack.c.l.b16 %v4080
        %v4143 = vunpack.c.l.b16 %v4081
        %v4144 = vunpack.c.l.b16 %v4082
        %v4145 = vunpack.c.l.b16 %v4083
        %v4146 = vpack.c.b16 %v4131, %v4130
        %v4147 = vpack.c.b16 %v4133, %v4132
        %v4148 = vpack.c.b16 %v4135, %v4134
        %v4149 = vpack.c.b16 %v4137, %v4136
        %v4150 = vpack.c.b16 %v4139, %v4138
        %v4151 = vpack.c.b16 %v4141, %v4140
        %v4152 = vpack.c.b16 %v4143, %v4142
        %v4153 = vpack.c.b16 %v4145, %v4144
        %4162 = vmatprep.subr.bf16.mxu0 0
        %4163 = vmatpush1.bf16.msra.mxu0 %v4153
        %4164 = vmatprep.subr.bf16.mxu0 0
        %4165 = vmatpush1.bf16.msra.mxu0 %v4152
        %4166 = vmatprep.subr.bf16.mxu0 0
        %4167 = vmatpush1.bf16.msra.mxu0 %v4151
        %4168 = vmatprep.subr.bf16.mxu0 0
        %4169 = vmatpush1.bf16.msra.mxu0 %v4150
        %4170 = vmatprep.subr.bf16.mxu0 0
        %4171 = vmatpush1.bf16.msra.mxu0 %v4149
        %4172 = vmatprep.subr.bf16.mxu0 0
        %4173 = vmatpush1.bf16.msra.mxu0 %v4148
        %4174 = vmatprep.subr.bf16.mxu0 0
        %4175 = vmatpush1.bf16.msra.mxu0 %v4147
        %4176 = vmatprep.subr.bf16.mxu0 0
        %4177 = vmatpush1.bf16.msra.mxu0 %v4146
        %4178 = vmatprep.subr.bf16.mxu0 0
        %4179 = vmatpush2.bf16.msra.mxu0 0
        %4180 = vmatprep.subr.bf16.mxu0 0
        %4181 = vmatpush2.bf16.msra.mxu0 0
        %4182 = vmatprep.subr.bf16.mxu0 0
        %4183 = vmatpush2.bf16.msra.mxu0 0
        %4184 = vmatprep.subr.bf16.mxu0 0
        %4185 = vmatpush2.bf16.msra.mxu0 0
        %4186 = vmatprep.subr.bf16.mxu0 0
        %4187 = vmatpush2.bf16.msra.mxu0 0
        %4188 = vmatprep.subr.bf16.mxu0 0
        %4189 = vmatpush2.bf16.msra.mxu0 0
        %4190 = vmatprep.subr.bf16.mxu0 0
        %4191 = vmatpush2.bf16.msra.mxu0 0
        %4192 = vmatprep.subr.bf16.mxu0 0
        %4193 = vmatpush2.bf16.msra.mxu0 0
        %4194 = vmatprep.mubr.bf16.mxu0 0
        %4195 = vmatmul.mubr.bf16.gmra.mxu0 %v4112
        %v4196 = vpop.f32.mrf.mxu0
        %v4197 = vadd.f32 0.0, %v4196
        %v4198 = vpop.f32.mrf.mxu0
        %v4199 = vpop.f32.mrf.mxu0
        %v4200 = vadd.f32 0.0, %v4199
        %v4201 = vpop.f32.mrf.mxu0
        %4202 = vdwg.mxu0
        %v4203 = vadd.f32 %v4065, %v4197
        %v4204 = vadd.f32 %v4066, %v4200
        %v4205 = vld [vmem:[%s5] sm:$0x1]
        %v4207 = vlaneseq
        %v4208 = vshrl.u32 %v4207, 7
        %v4209 = vsub.s32 0, %v4208
        %v4210 = vrot.slane %v4205, %v4209
        %v4212 = vadd.f32 %v4203, %v4210
        %v4213 = vadd.f32 %v4204, %v4210
        %vm4214 = vcmask 261120
        %4215 = vst.msk [vmem:[%s247] sm:$0xff] %vm4214, %v4212
        %4216 = vst.msk [vmem:[%s247 + $0x8] sm:$0xff] %vm4214, %v4213
        %s4217 = sand.u32 %s159, 1
        %s4218 = scalar_lea.sflag [#allocation3], %s4217
        %s4219 = sand.u32 %s159, 1
        %s4220 = smul.addr %s4219, 16
        %s4221 = scalar_lea.vmem [#allocation2], %s4220
        // Predicated region
        $region45: #{trainable_net_forward.1} parent=43 // pred_check
          %p4222 = pneg %p169
        $region46: #{trainable_net_forward.1} parent=43 // pred_check_branch
          %4224 = sbr.rel (%p4222) target = $region48
        $region47: #{trainable_net_forward.1} parent=43 // pred_region
          %s4225 = smul.u32 2, %s20
          %s4227 = ssub.s32 256, 256
          %4228 = vsyncadd %s4218, %s4227
          %s4229 = smul.addr %s4225, 128
          %s4230 = scalar_lea.hbm %s6, %s4229
          %s4231 = sshll.u32 %s4221, 4
          %s4232 = int_to_ptr.vmem [resolvable:$true] %s4231
          %4237 = dma.vmem_to_hbm [thread:$0]  %s4232, 256, %s4230, %s4218, 128, 128, 8
        $region48: #{trainable_net_forward.1} parent=43 // pred_fallthru
          _
      $region44: #{trainable_net_forward.1} parent=5 // pred_fallthru
        _
      %p4238 = scmp.le.s32.totalorder 2, %s15
      // Predicated region
      $region49: #{trainable_net_forward.1} parent=5 // pred_check
        %p4239 = pneg %p4238
      $region50: #{trainable_net_forward.1} parent=5 // pred_check_branch
        %4241 = sbr.rel (%p4239) target = $region52
      $region51: #{trainable_net_forward.1} parent=5 // pred_region
        %s4242 = ssub.s32 %s15, 2
        // Predicated region
        $region53: #{trainable_net_forward.1} parent=51 // pred_check
          %p4243 = pneg %p175
        $region54: #{trainable_net_forward.1} parent=51 // pred_check_branch
          %4245 = sbr.rel (%p4243) target = $region56
        $region55: #{trainable_net_forward.1} parent=51 // pred_region
          %s4246 = sand.u32 %s160, 1
          %s4247 = scalar_lea.sflag [#allocation3], %s4246
          %s4248 = sand.u32 %s160, 1
          %s4249 = smul.addr %s4248, 16
          %s4250 = scalar_lea.vmem [#allocation2], %s4249
          %4251 = dma.done %s4247, 256
        $region56: #{trainable_net_forward.1} parent=51 // pred_fallthru
          _
      $region52: #{trainable_net_forward.1} parent=5 // pred_fallthru
        _
    $region6: #{trainable_net_forward.1} parent=1 // loop_footer
      %s19 = sadd.s32 1, %s15
    $region7: #{trainable_net_forward.1} parent=1 // loop_footer_branch
      %14 = sbr.rel target = $region3
    $region8: #{trainable_net_forward.1} parent=1 // loop_exit
      _
    %4252 = vsyncpa [#allocation3], 1
    %s4253 = scalar_lea.sflag [#allocation3], 1
    %4254 = vsyncpa %s4253, 1

</llo_original>
